<compile_context>
chip_gen: v5e
topology: v5e:2x2
jax: 0.10.0
libtpu: 0.0.40
codegen_flags: <defaults>
</compile_context>

<pallas_src>
import jax
import jax.numpy as jnp
import numpy as np
from jax.experimental import pallas as pl


# ----------------------------------------------------------------------------
# Shared math: used by the Pallas kernel body (slabs slice Refs) AND by the
# plain-JAX reference (slabs slice arrays), so the kernel is validated against
# literally the same computation graph.
# ----------------------------------------------------------------------------
def _slab(buf, bounds):
    r0, r1, c0, c1 = bounds
    return buf[r0:r1, c0:c1]


def _forward_math(x0T, sslab, fslab, layout, dot):
    """Fused encoder + VQ in transposed (channels, positions) layout.

    Returns (quantized^T (D, npos), encodings^T (D, npos))."""
    f32 = jnp.float32
    xT = 1.0 - x0T                                       # (C0, H*W)

    for li, lyr in enumerate(layout["layers"]):
        cin, cout, taps, m = lyr["cin"], lyr["cout"], lyr["taps"], lyr["m"]
        sT = sslab(lyr["s"])                             # bf16 (P_in, taps*m)
        # Layer 1: native bf16 MXU matmul (S exact in bf16, x cast is 2 vregs).
        # Later layers: tiny slabs, promote them instead and keep h1/h2 in f32.
        if li == 0:
            gT = dot(xT.astype(jnp.bfloat16), sT)        # (cin, taps*m) f32
        else:
            gT = dot(xT, sT.astype(f32))
        wT = fslab(lyr["w"])                             # (cout, taps*cin) f32

        def tap(t, wT=wT, gT=gT, cin=cin, m=m):
            return dot(wT[:, t * cin:(t + 1) * cin], gT[:, t * m:(t + 1) * m])

        # 4 independent partial accumulators + pairwise tree: breaks the long
        # serial MXU-pop -> VPU-add dependency chain (perf-review item).
        nacc = min(4, taps)
        accs = [tap(t) for t in range(nacc)]
        for t in range(nacc, taps):
            accs[t % nacc] = accs[t % nacc] + tap(t)
        while len(accs) > 1:
            pairs = [accs[i] + accs[i + 1] for i in range(0, len(accs) - 1, 2)]
            if len(accs) % 2:
                pairs.append(accs[-1])
            accs = pairs

        xT = accs[0] + fslab(lyr["b"])                   # (cout, m) + (cout, 1)
        if lyr["relu"]:
            xT = jnp.maximum(xT, 0.0)

    encT = xT                                            # (D, npos)

    # VectorQuantizerEMA (inference): nearest codebook row per position.
    #   argmin_k ||e - c_k||^2  ==  argmax_k (<e, c_k> - 0.5*||c_k||^2)
    scores = dot(fslab("emb"), encT)                     # (K, npos)
    val = scores - fslab("hsq")
    kdim = layout["k"]
    kio = jax.lax.broadcasted_iota(jnp.int32, val.shape, 0)
    vmax = jnp.max(val, axis=0, keepdims=True)
    # first-index tie-break (matches jnp/np argmin). NaN scores would give an
    # all-zero one-hot column -- benign for sane inputs.
    idx = jnp.min(jnp.where(val == vmax, kio, kdim), axis=0, keepdims=True)
    onehot = (kio == idx).astype(f32)                    # (K, npos)
    qT = dot(fslab("embt"), onehot)                      # (D, npos): MXU code gather
    return qT, encT


# ----------------------------------------------------------------------------
# The single fused Pallas kernel
# ----------------------------------------------------------------------------
def make_sensor_kernel(layout):
    """Returns the fused encoder+VQ kernel with the static pack layout baked in."""

    def dot_f32(a, b):
        return jnp.dot(a, b, preferred_element_type=jnp.float32)

    def kernel(x0_ref, spack_ref, fpack_ref, q_ref):
        qT, _ = _forward_math(
            x0_ref[...],
            lambda n: _slab(spack_ref, layout["s_slabs"][n]),
            lambda n: _slab(fpack_ref, layout["f_slabs"][n]),
            layout, dot_f32)
        q_ref[...] = qT

    return kernel


def _full_spec(shape):
    """Full-array block (legal at any shape); index_map ignores its (zero) args."""
    return pl.BlockSpec(shape, lambda *_: (0,) * len(shape))


def make_sensor_forward(layout):
    kernel = make_sensor_kernel(layout)
    d, npos = layout["d"], layout["npos"]

    @jax.jit
    def sensor_forward(ops, prev_screen, curr_screen):
        """prev/curr screens: (1, H, W) float32 in [0, 1].

        Returns (quantized.reshape(1, -1), curr_screen), mirroring Sensor.forward."""
        hw = prev_screen.shape[1] * prev_screen.shape[2]
        # torch.cat((prev, curr)).reshape(1, 2, h, w): channel 0 = prev, 1 = curr.
        x0T = jnp.concatenate([prev_screen.reshape(1, hw),
                               curr_screen.reshape(1, hw)], axis=0)
        spack, fpack = ops["spack"], ops["fpack"]
        qT = pl.pallas_call(
            kernel,
            out_shape=jax.ShapeDtypeStruct((d, npos), jnp.float32),
            in_specs=[_full_spec(x0T.shape),
                      _full_spec(spack.shape),
                      _full_spec(fpack.shape)],
            out_specs=_full_spec((d, npos)),
        )(x0T, spack, fpack)
        # PyTorch's quantized is NCHW; (D, he*we).reshape(1, -1) is the same
        # flatten, so no wrapper transpose is needed (perf-review item).
        return qT.reshape(1, -1), curr_screen

    return sensor_forward


# ----------------------------------------------------------------------------
# One-time (numpy) lowering of conv/VQ parameters into the packed operands
# ----------------------------------------------------------------------------
def _conv_out_size(n, k, s, p):
    return (n + 2 * p - k) // s + 1


def _gather_matrix(h_in, w_in, kh, kw, stride, pad):
    """0/1 matrix S (kh*kw*M_out, h_in*w_in): row t*M_out + m selects the input pixel
    read by conv tap t at output position m (all-zero row in the padding halo)."""
    h_out = _conv_out_size(h_in, kh, stride, pad)
    w_out = _conv_out_size(w_in, kw, stride, pad)
    m_out = h_out * w_out
    s = np.zeros((kh * kw * m_out, h_in * w_in), np.float32)
    for ki in range(kh):
        for kj in range(kw):
            t = ki * kw + kj
            for oy in range(h_out):
                for ox in range(w_out):
                    iy = oy * stride + ki - pad
                    ix = ox * stride + kj - pad
                    if 0 <= iy < h_in and 0 <= ix < w_in:
                        s[t * m_out + oy * w_out + ox, iy * w_in + ix] = 1.0
    return s, h_out, w_out


def _pack_rows(entries):
    """Pack 2-D float arrays into one buffer stacked along rows (sublanes), each
    section starting at a multiple-of-8 row, left-aligned in lanes.
    Returns (packed float32 array, {name: (row0, row1, col0, col1)})."""
    width = max(a.shape[1] for _, a in entries)
    blocks, slabs, r = [], {}, 0
    for name, a in entries:
        a = np.asarray(a, np.float32)
        rows_pad = -(-a.shape[0] // 8) * 8
        blk = np.zeros((rows_pad, width), np.float32)
        blk[:a.shape[0], :a.shape[1]] = a
        blocks.append(blk)
        slabs[name] = (r, r + a.shape[0], 0, a.shape[1])
        r += rows_pad
    return np.concatenate(blocks, axis=0), slabs


def init_params(key, hidden1=16, hidden2=32, embedding_dim=16, num_embeddings=32):
    ks = jax.random.split(key, 8)
    scale = 0.1
    return {
        "w1": scale * jax.random.normal(ks[0], (4, 4, 2, hidden1), jnp.float32),
        "b1": scale * jax.random.normal(ks[1], (hidden1,), jnp.float32),
        "w2": scale * jax.random.normal(ks[2], (4, 4, hidden1, hidden2), jnp.float32),
        "b2": scale * jax.random.normal(ks[3], (hidden2,), jnp.float32),
        "w3": scale * jax.random.normal(ks[4], (3, 3, hidden2, embedding_dim), jnp.float32),
        "b3": scale * jax.random.normal(ks[5], (embedding_dim,), jnp.float32),
        "codebook": jax.random.normal(ks[6], (num_embeddings, embedding_dim), jnp.float32),
    }


def build_operands(params, h=16, w=16):
    """Lower conv/VQ parameters into 2 packed kernel operands + a static layout."""
    wgt = {k: np.asarray(params[k], np.float32) for k in ("w1", "w2", "w3")}
    bias = {k: np.asarray(params[k], np.float32) for k in ("b1", "b2", "b3")}
    emb = np.asarray(params["codebook"], np.float32)             # (K, D)

    s1, oh1, ow1 = _gather_matrix(h, w, 4, 4, 2, 1)
    s2, oh2, ow2 = _gather_matrix(oh1, ow1, 4, 4, 2, 1)
    s3, oh3, ow3 = _gather_matrix(oh2, ow2, 3, 3, 1, 1)

    def w_lane_packed(x):                                        # HWIO -> (Cout, taps*Cin)
        kh, kw, cin, cout = x.shape
        return np.transpose(x.reshape(kh * kw, cin, cout), (2, 0, 1)).reshape(
            cout, kh * kw * cin)

    # Pack 1: bf16 patch-gather matrices (transposed: (P_in, taps*M)).
    spack, s_slabs = _pack_rows(
        [("s1t", s1.T.copy()), ("s2t", s2.T.copy()), ("s3t", s3.T.copy())])
    # Pack 2: f32 weights / biases / codebook slabs.
    fpack, f_slabs = _pack_rows(
        [("w1t", w_lane_packed(wgt["w1"])),
         ("w2t", w_lane_packed(wgt["w2"])),
         ("w3t", w_lane_packed(wgt["w3"])),
         ("emb", emb),
         ("embt", emb.T.copy()),
         ("b1", bias["b1"].reshape(-1, 1)),
         ("b2", bias["b2"].reshape(-1, 1)),
         ("b3", bias["b3"].reshape(-1, 1)),
         ("hsq", 0.5 * np.sum(emb * emb, axis=-1, keepdims=True))])

    def layer_cfg(wname, s_name, w_name, b_name, m, relu):
        kh, kw, cin, cout = wgt[wname].shape
        return dict(s=s_name, w=w_name, b=b_name, cin=cin, cout=cout,
                    taps=kh * kw, m=m, relu=relu)

    layout = dict(
        s_slabs=s_slabs, f_slabs=f_slabs,
        layers=[layer_cfg("w1", "s1t", "w1t", "b1", oh1 * ow1, True),
                layer_cfg("w2", "s2t", "w2t", "b2", oh2 * ow2, True),
                layer_cfg("w3", "s3t", "w3t", "b3", oh3 * ow3, False)],
        d=emb.shape[1], k=emb.shape[0], npos=oh3 * ow3)

    ops = {"spack": jnp.asarray(spack, jnp.bfloat16),   # 0/1 values: exact in bf16
           "fpack": jnp.asarray(fpack, jnp.float32)}
    return ops, layout


# ----------------------------------------------------------------------------
# Pure-JAX references for the correctness cross-checks
# ----------------------------------------------------------------------------
def sensor_forward_gather_ref(ops, layout, prev_screen, curr_screen, precision=None):
    """Plain-JAX replay of the exact packed/transposed math used inside the kernel."""
    hw = prev_screen.shape[1] * prev_screen.shape[2]
    x0T = jnp.concatenate([prev_screen.reshape(1, hw),
                           curr_screen.reshape(1, hw)], axis=0)

    def dot(a, b):
        return jnp.dot(a, b, preferred_element_type=jnp.float32, precision=precision)

    qT, encT = _forward_math(
        x0T,
        lambda n: _slab(ops["spack"], layout["s_slabs"][n]),
        lambda n: _slab(ops["fpack"], layout["f_slabs"][n]),
        layout, dot)
    return qT.reshape(1, -1), curr_screen, encT


def _im2col(x_nhwc, kh, kw, stride, pad):
    x = jnp.pad(x_nhwc, ((0, 0), (pad, pad), (pad, pad), (0, 0)))
    B, H, W, C = x.shape
    oh = (H - kh) // stride + 1
    ow = (W - kw) // stride + 1
    patches = []
    for i in range(kh):
        for j in range(kw):
            patches.append(x[:, i:i + stride * oh:stride, j:j + stride * ow:stride, :])
    cols = jnp.concatenate(patches, axis=-1)
    return cols.reshape(B * oh * ow, kh * kw * C), oh, ow


def sensor_forward_conv_ref(params, prev_screen, curr_screen, precision=None):
    """Plain-JAX reference in the original conv/VQ formulation (PyTorch semantics)."""
    _, h, w = curr_screen.shape
    x = 1.0 - jnp.concatenate([prev_screen, curr_screen], 0).reshape(1, 2, h, w)
    x = jnp.transpose(x, (0, 2, 3, 1))                     # NCHW -> NHWC

    def conv(x, wgt, b, stride, pad, relu):
        kh, kw, cin, cout = wgt.shape
        cols, oh, ow = _im2col(x, kh, kw, stride, pad)
        y = jnp.dot(cols, wgt.reshape(kh * kw * cin, cout), precision=precision) + b[None, :]
        if relu:
            y = jnp.maximum(y, 0.0)
        return y.reshape(x.shape[0], oh, ow, cout)

    x = conv(x, params["w1"], params["b1"], 2, 1, True)
    x = conv(x, params["w2"], params["b2"], 2, 1, True)
    enc = conv(x, params["w3"], params["b3"], 1, 1, False)
    B, he, we, d = enc.shape
    flat = enc.reshape(-1, d)
    emb = params["codebook"]
    dist = (jnp.sum(flat ** 2, 1, keepdims=True) + jnp.sum(emb ** 2, 1)[None, :]
            - 2.0 * jnp.dot(flat, emb.T, precision=precision))
    idx = jnp.argmin(dist, axis=-1)
    q = emb[idx]
    q_nchw = jnp.transpose(q.reshape(B, he, we, d), (0, 3, 1, 2))
    return q_nchw.reshape(1, -1), curr_screen


# ----------------------------------------------------------------------------
if __name__ == "__main__":
    key = jax.random.PRNGKey(0)
    k_param, k_prev, k_curr = jax.random.split(key, 3)

    H = W = 16
    params = init_params(k_param)
    ops, layout = build_operands(params, H, W)
    sensor_forward = make_sensor_forward(layout)

    # Deterministic synthetic "screens" (stand-in for get_screen(env)); 8-bit-style
    # k/256 pixel values are exactly representable in bf16 and f32.
    prev_screen = jax.random.randint(k_prev, (1, H, W), 0, 256).astype(jnp.float32) / 256.0
    curr_screen = jax.random.randint(k_curr, (1, H, W), 0, 256).astype(jnp.float32) / 256.0

    quantized_flat, curr_out = sensor_forward(ops, prev_screen, curr_screen)
    quantized_flat = jax.block_until_ready(quantized_flat)

    D, npos, K = layout["d"], layout["npos"], layout["k"]
    hi = jax.lax.Precision.HIGHEST
    ref_g_hi, _, encT_ref = sensor_forward_gather_ref(
        ops, layout, prev_screen, curr_screen, precision=hi)

    codebook = np.asarray(params["codebook"], np.float32)          # (K, D)
    assert codebook.shape == (K, D)
    q_cols = np.asarray(quantized_flat, np.float32).reshape(D, npos).T   # (npos, D)
    e_rows = np.asarray(encT_ref, np.float32).T                    # (npos, D)

    # Check 1a: every kernel output column is an exact codebook row (the one-hot
    # gather matmul copies rows through unchanged).
    d_q = ((q_cols[:, None, :] - codebook[None, :, :]) ** 2).sum(-1)     # (npos, K)
    chosen = d_q.argmin(axis=1)
    np.testing.assert_allclose(q_cols, codebook[chosen], rtol=0, atol=1e-5)

    # Check 1b: the chosen code is the nearest code for the reference encodings
    # (tiny margin so a genuine fp near-tie between two codes cannot flake the test).
    d_e = ((e_rows[:, None, :] - codebook[None, :, :]) ** 2).sum(-1)     # (npos, K)
    gap = d_e[np.arange(npos), chosen] - d_e.min(axis=1)
    assert np.all(gap <= 1e-3), f"kernel picked a non-nearest code (max gap {gap.max()})"

    # Check 2: packed/transposed gather-matmul lowering vs the original conv/VQ
    # formulation (PyTorch semantics), both in plain JAX at HIGHEST precision.
    ref_c_hi, _ = sensor_forward_conv_ref(params, prev_screen, curr_screen, precision=hi)
    np.testing.assert_allclose(np.asarray(ref_g_hi), np.asarray(ref_c_hi),
                               rtol=1e-3, atol=1e-3)

    assert quantized_flat.shape == (1, 4 * 4 * 16)
    assert curr_out.shape == (1, H, W)

    print("KERNEL_OK")
</pallas_src>

<mosaic_0001>
module attributes {stable_mosaic.version = 11 : i64} {
  func.func @kernel(%arg0: memref<2x256xf32, #tpu.memory_space<vmem>>, %arg1: memref<336x1024xbf16, #tpu.memory_space<vmem>>, %arg2: memref<208x288xf32, #tpu.memory_space<vmem>>, %arg3: memref<16x16xf32, #tpu.memory_space<vmem>>) attributes {dimension_semantics = [], scalar_prefetch = 0 : i64, scratch_operands = 0 : i64, tpu.core_type = #tpu.core_type<tc>} {
    %c0 = arith.constant 0 : index
    %c0_0 = arith.constant 0 : index
    %0 = vector.load %arg0[%c0, %c0_0] : memref<2x256xf32, #tpu.memory_space<vmem>>, vector<2x256xf32>
    %cst = arith.constant 1.000000e+00 : f32
    %1 = vector.broadcast %cst : f32 to vector<2x256xf32>
    %2 = arith.subf %1, %0 : vector<2x256xf32>
    %c0_1 = arith.constant 0 : index
    %c0_2 = arith.constant 0 : index
    %3 = vector.load %arg1[%c0_1, %c0_2] : memref<336x1024xbf16, #tpu.memory_space<vmem>>, vector<256x1024xbf16>
    %4 = arith.truncf %2 : vector<2x256xf32> to vector<2x256xbf16>
    %cst_3 = arith.constant dense<0.000000e+00> : vector<2x1024xf32>
    %5 = tpu.matmul %4, %3, %cst_3 {dimension_numbers = #tpu.dot_dimension_numbers<[1], [0], [0], [1], [0, 0, 1, 1], [], []>} : vector<2x256xbf16>, vector<256x1024xbf16>, vector<2x1024xf32> -> vector<2x1024xf32>
    %c0_4 = arith.constant 0 : index
    %c0_5 = arith.constant 0 : index
    %6 = vector.load %arg2[%c0_4, %c0_5] : memref<208x288xf32, #tpu.memory_space<vmem>>, vector<16x32xf32>
    %7 = vector.extract_strided_slice %6 {offsets = [0, 0], sizes = [16, 2], strides = [1, 1]} : vector<16x32xf32> to vector<16x2xf32>
    %8 = vector.extract_strided_slice %5 {offsets = [0, 0], sizes = [2, 64], strides = [1, 1]} : vector<2x1024xf32> to vector<2x64xf32>
    %cst_6 = arith.constant dense<0.000000e+00> : vector<16x64xf32>
    %9 = tpu.matmul %7, %8, %cst_6 {dimension_numbers = #tpu.dot_dimension_numbers<[1], [0], [0], [1], [0, 0, 1, 1], [], []>} : vector<16x2xf32>, vector<2x64xf32>, vector<16x64xf32> -> vector<16x64xf32>
    %10 = vector.extract_strided_slice %6 {offsets = [0, 2], sizes = [16, 2], strides = [1, 1]} : vector<16x32xf32> to vector<16x2xf32>
    %11 = vector.extract_strided_slice %5 {offsets = [0, 64], sizes = [2, 64], strides = [1, 1]} : vector<2x1024xf32> to vector<2x64xf32>
    %cst_7 = arith.constant dense<0.000000e+00> : vector<16x64xf32>
    %12 = tpu.matmul %10, %11, %cst_7 {dimension_numbers = #tpu.dot_dimension_numbers<[1], [0], [0], [1], [0, 0, 1, 1], [], []>} : vector<16x2xf32>, vector<2x64xf32>, vector<16x64xf32> -> vector<16x64xf32>
    %13 = vector.extract_strided_slice %6 {offsets = [0, 4], sizes = [16, 2], strides = [1, 1]} : vector<16x32xf32> to vector<16x2xf32>
    %14 = vector.extract_strided_slice %5 {offsets = [0, 128], sizes = [2, 64], strides = [1, 1]} : vector<2x1024xf32> to vector<2x64xf32>
    %cst_8 = arith.constant dense<0.000000e+00> : vector<16x64xf32>
    %15 = tpu.matmul %13, %14, %cst_8 {dimension_numbers = #tpu.dot_dimension_numbers<[1], [0], [0], [1], [0, 0, 1, 1], [], []>} : vector<16x2xf32>, vector<2x64xf32>, vector<16x64xf32> -> vector<16x64xf32>
    %16 = vector.extract_strided_slice %6 {offsets = [0, 6], sizes = [16, 2], strides = [1, 1]} : vector<16x32xf32> to vector<16x2xf32>
    %17 = vector.extract_strided_slice %5 {offsets = [0, 192], sizes = [2, 64], strides = [1, 1]} : vector<2x1024xf32> to vector<2x64xf32>
    %cst_9 = arith.constant dense<0.000000e+00> : vector<16x64xf32>
    %18 = tpu.matmul %16, %17, %cst_9 {dimension_numbers = #tpu.dot_dimension_numbers<[1], [0], [0], [1], [0, 0, 1, 1], [], []>} : vector<16x2xf32>, vector<2x64xf32>, vector<16x64xf32> -> vector<16x64xf32>
    %19 = vector.extract_strided_slice %6 {offsets = [0, 8], sizes = [16, 2], strides = [1, 1]} : vector<16x32xf32> to vector<16x2xf32>
    %20 = vector.extract_strided_slice %5 {offsets = [0, 256], sizes = [2, 64], strides = [1, 1]} : vector<2x1024xf32> to vector<2x64xf32>
    %cst_10 = arith.constant dense<0.000000e+00> : vector<16x64xf32>
    %21 = tpu.matmul %19, %20, %cst_10 {dimension_numbers = #tpu.dot_dimension_numbers<[1], [0], [0], [1], [0, 0, 1, 1], [], []>} : vector<16x2xf32>, vector<2x64xf32>, vector<16x64xf32> -> vector<16x64xf32>
    %22 = arith.addf %9, %21 : vector<16x64xf32>
    %23 = vector.extract_strided_slice %6 {offsets = [0, 10], sizes = [16, 2], strides = [1, 1]} : vector<16x32xf32> to vector<16x2xf32>
    %24 = vector.extract_strided_slice %5 {offsets = [0, 320], sizes = [2, 64], strides = [1, 1]} : vector<2x1024xf32> to vector<2x64xf32>
    %cst_11 = arith.constant dense<0.000000e+00> : vector<16x64xf32>
    %25 = tpu.matmul %23, %24, %cst_11 {dimension_numbers = #tpu.dot_dimension_numbers<[1], [0], [0], [1], [0, 0, 1, 1], [], []>} : vector<16x2xf32>, vector<2x64xf32>, vector<16x64xf32> -> vector<16x64xf32>
    %26 = arith.addf %12, %25 : vector<16x64xf32>
    %27 = vector.extract_strided_slice %6 {offsets = [0, 12], sizes = [16, 2], strides = [1, 1]} : vector<16x32xf32> to vector<16x2xf32>
    %28 = vector.extract_strided_slice %5 {offsets = [0, 384], sizes = [2, 64], strides = [1, 1]} : vector<2x1024xf32> to vector<2x64xf32>
    %cst_12 = arith.constant dense<0.000000e+00> : vector<16x64xf32>
    %29 = tpu.matmul %27, %28, %cst_12 {dimension_numbers = #tpu.dot_dimension_numbers<[1], [0], [0], [1], [0, 0, 1, 1], [], []>} : vector<16x2xf32>, vector<2x64xf32>, vector<16x64xf32> -> vector<16x64xf32>
    %30 = arith.addf %15, %29 : vector<16x64xf32>
    %31 = vector.extract_strided_slice %6 {offsets = [0, 14], sizes = [16, 2], strides = [1, 1]} : vector<16x32xf32> to vector<16x2xf32>
    %32 = vector.extract_strided_slice %5 {offsets = [0, 448], sizes = [2, 64], strides = [1, 1]} : vector<2x1024xf32> to vector<2x64xf32>
    %cst_13 = arith.constant dense<0.000000e+00> : vector<16x64xf32>
    %33 = tpu.matmul %31, %32, %cst_13 {dimension_numbers = #tpu.dot_dimension_numbers<[1], [0], [0], [1], [0, 0, 1, 1], [], []>} : vector<16x2xf32>, vector<2x64xf32>, vector<16x64xf32> -> vector<16x64xf32>
    %34 = arith.addf %18, %33 : vector<16x64xf32>
    %35 = vector.extract_strided_slice %6 {offsets = [0, 16], sizes = [16, 2], strides = [1, 1]} : vector<16x32xf32> to vector<16x2xf32>
    %36 = vector.extract_strided_slice %5 {offsets = [0, 512], sizes = [2, 64], strides = [1, 1]} : vector<2x1024xf32> to vector<2x64xf32>
    %cst_14 = arith.constant dense<0.000000e+00> : vector<16x64xf32>
    %37 = tpu.matmul %35, %36, %cst_14 {dimension_numbers = #tpu.dot_dimension_numbers<[1], [0], [0], [1], [0, 0, 1, 1], [], []>} : vector<16x2xf32>, vector<2x64xf32>, vector<16x64xf32> -> vector<16x64xf32>
    %38 = arith.addf %22, %37 : vector<16x64xf32>
    %39 = vector.extract_strided_slice %6 {offsets = [0, 18], sizes = [16, 2], strides = [1, 1]} : vector<16x32xf32> to vector<16x2xf32>
    %40 = vector.extract_strided_slice %5 {offsets = [0, 576], sizes = [2, 64], strides = [1, 1]} : vector<2x1024xf32> to vector<2x64xf32>
    %cst_15 = arith.constant dense<0.000000e+00> : vector<16x64xf32>
    %41 = tpu.matmul %39, %40, %cst_15 {dimension_numbers = #tpu.dot_dimension_numbers<[1], [0], [0], [1], [0, 0, 1, 1], [], []>} : vector<16x2xf32>, vector<2x64xf32>, vector<16x64xf32> -> vector<16x64xf32>
    %42 = arith.addf %26, %41 : vector<16x64xf32>
    %43 = vector.extract_strided_slice %6 {offsets = [0, 20], sizes = [16, 2], strides = [1, 1]} : vector<16x32xf32> to vector<16x2xf32>
    %44 = vector.extract_strided_slice %5 {offsets = [0, 640], sizes = [2, 64], strides = [1, 1]} : vector<2x1024xf32> to vector<2x64xf32>
    %cst_16 = arith.constant dense<0.000000e+00> : vector<16x64xf32>
    %45 = tpu.matmul %43, %44, %cst_16 {dimension_numbers = #tpu.dot_dimension_numbers<[1], [0], [0], [1], [0, 0, 1, 1], [], []>} : vector<16x2xf32>, vector<2x64xf32>, vector<16x64xf32> -> vector<16x64xf32>
    %46 = arith.addf %30, %45 : vector<16x64xf32>
    %47 = vector.extract_strided_slice %6 {offsets = [0, 22], sizes = [16, 2], strides = [1, 1]} : vector<16x32xf32> to vector<16x2xf32>
    %48 = vector.extract_strided_slice %5 {offsets = [0, 704], sizes = [2, 64], strides = [1, 1]} : vector<2x1024xf32> to vector<2x64xf32>
    %cst_17 = arith.constant dense<0.000000e+00> : vector<16x64xf32>
    %49 = tpu.matmul %47, %48, %cst_17 {dimension_numbers = #tpu.dot_dimension_numbers<[1], [0], [0], [1], [0, 0, 1, 1], [], []>} : vector<16x2xf32>, vector<2x64xf32>, vector<16x64xf32> -> vector<16x64xf32>
    %50 = arith.addf %34, %49 : vector<16x64xf32>
    %51 = vector.extract_strided_slice %6 {offsets = [0, 24], sizes = [16, 2], strides = [1, 1]} : vector<16x32xf32> to vector<16x2xf32>
    %52 = vector.extract_strided_slice %5 {offsets = [0, 768], sizes = [2, 64], strides = [1, 1]} : vector<2x1024xf32> to vector<2x64xf32>
    %cst_18 = arith.constant dense<0.000000e+00> : vector<16x64xf32>
    %53 = tpu.matmul %51, %52, %cst_18 {dimension_numbers = #tpu.dot_dimension_numbers<[1], [0], [0], [1], [0, 0, 1, 1], [], []>} : vector<16x2xf32>, vector<2x64xf32>, vector<16x64xf32> -> vector<16x64xf32>
    %54 = arith.addf %38, %53 : vector<16x64xf32>
    %55 = vector.extract_strided_slice %6 {offsets = [0, 26], sizes = [16, 2], strides = [1, 1]} : vector<16x32xf32> to vector<16x2xf32>
    %56 = vector.extract_strided_slice %5 {offsets = [0, 832], sizes = [2, 64], strides = [1, 1]} : vector<2x1024xf32> to vector<2x64xf32>
    %cst_19 = arith.constant dense<0.000000e+00> : vector<16x64xf32>
    %57 = tpu.matmul %55, %56, %cst_19 {dimension_numbers = #tpu.dot_dimension_numbers<[1], [0], [0], [1], [0, 0, 1, 1], [], []>} : vector<16x2xf32>, vector<2x64xf32>, vector<16x64xf32> -> vector<16x64xf32>
    %58 = arith.addf %42, %57 : vector<16x64xf32>
    %59 = vector.extract_strided_slice %6 {offsets = [0, 28], sizes = [16, 2], strides = [1, 1]} : vector<16x32xf32> to vector<16x2xf32>
    %60 = vector.extract_strided_slice %5 {offsets = [0, 896], sizes = [2, 64], strides = [1, 1]} : vector<2x1024xf32> to vector<2x64xf32>
    %cst_20 = arith.constant dense<0.000000e+00> : vector<16x64xf32>
    %61 = tpu.matmul %59, %60, %cst_20 {dimension_numbers = #tpu.dot_dimension_numbers<[1], [0], [0], [1], [0, 0, 1, 1], [], []>} : vector<16x2xf32>, vector<2x64xf32>, vector<16x64xf32> -> vector<16x64xf32>
    %62 = arith.addf %46, %61 : vector<16x64xf32>
    %63 = vector.extract_strided_slice %6 {offsets = [0, 30], sizes = [16, 2], strides = [1, 1]} : vector<16x32xf32> to vector<16x2xf32>
    %64 = vector.extract_strided_slice %5 {offsets = [0, 960], sizes = [2, 64], strides = [1, 1]} : vector<2x1024xf32> to vector<2x64xf32>
    %cst_21 = arith.constant dense<0.000000e+00> : vector<16x64xf32>
    %65 = tpu.matmul %63, %64, %cst_21 {dimension_numbers = #tpu.dot_dimension_numbers<[1], [0], [0], [1], [0, 0, 1, 1], [], []>} : vector<16x2xf32>, vector<2x64xf32>, vector<16x64xf32> -> vector<16x64xf32>
    %66 = arith.addf %50, %65 : vector<16x64xf32>
    %67 = arith.addf %54, %58 : vector<16x64xf32>
    %68 = arith.addf %62, %66 : vector<16x64xf32>
    %69 = arith.addf %67, %68 : vector<16x64xf32>
    %c112 = arith.constant 112 : index
    %c0_22 = arith.constant 0 : index
    %70 = vector.load %arg2[%c112, %c0_22] : memref<208x288xf32, #tpu.memory_space<vmem>>, vector<16x1xf32>
    %71 = vector.broadcast %70 : vector<16x1xf32> to vector<16x64xf32>
    %72 = arith.addf %69, %71 : vector<16x64xf32>
    %cst_23 = arith.constant 0.000000e+00 : f32
    %73 = vector.broadcast %cst_23 : f32 to vector<16x64xf32>
    %74 = arith.maximumf %72, %73 : vector<16x64xf32>
    %c256 = arith.constant 256 : index
    %c0_24 = arith.constant 0 : index
    %75 = vector.load %arg1[%c256, %c0_24] : memref<336x1024xbf16, #tpu.memory_space<vmem>>, vector<64x256xbf16>
    %76 = arith.extf %75 : vector<64x256xbf16> to vector<64x256xf32>
    %cst_25 = arith.constant dense<0.000000e+00> : vector<16x256xf32>
    %77 = tpu.matmul %74, %76, %cst_25 {dimension_numbers = #tpu.dot_dimension_numbers<[1], [0], [0], [1], [0, 0, 1, 1], [], []>} : vector<16x64xf32>, vector<64x256xf32>, vector<16x256xf32> -> vector<16x256xf32>
    %c16 = arith.constant 16 : index
    %c0_26 = arith.constant 0 : index
    %78 = vector.load %arg2[%c16, %c0_26] : memref<208x288xf32, #tpu.memory_space<vmem>>, vector<32x256xf32>
    %79 = vector.extract_strided_slice %78 {offsets = [0, 0], sizes = [32, 16], strides = [1, 1]} : vector<32x256xf32> to vector<32x16xf32>
    %80 = vector.extract_strided_slice %77 {offsets = [0, 0], sizes = [16, 16], strides = [1, 1]} : vector<16x256xf32> to vector<16x16xf32>
    %cst_27 = arith.constant dense<0.000000e+00> : vector<32x16xf32>
    %81 = tpu.matmul %79, %80, %cst_27 {dimension_numbers = #tpu.dot_dimension_numbers<[1], [0], [0], [1], [0, 0, 1, 1], [], []>} : vector<32x16xf32>, vector<16x16xf32>, vector<32x16xf32> -> vector<32x16xf32>
    %82 = vector.extract_strided_slice %78 {offsets = [0, 16], sizes = [32, 16], strides = [1, 1]} : vector<32x256xf32> to vector<32x16xf32>
    %83 = vector.extract_strided_slice %77 {offsets = [0, 16], sizes = [16, 16], strides = [1, 1]} : vector<16x256xf32> to vector<16x16xf32>
    %cst_28 = arith.constant dense<0.000000e+00> : vector<32x16xf32>
    %84 = tpu.matmul %82, %83, %cst_28 {dimension_numbers = #tpu.dot_dimension_numbers<[1], [0], [0], [1], [0, 0, 1, 1], [], []>} : vector<32x16xf32>, vector<16x16xf32>, vector<32x16xf32> -> vector<32x16xf32>
    %85 = vector.extract_strided_slice %78 {offsets = [0, 32], sizes = [32, 16], strides = [1, 1]} : vector<32x256xf32> to vector<32x16xf32>
    %86 = vector.extract_strided_slice %77 {offsets = [0, 32], sizes = [16, 16], strides = [1, 1]} : vector<16x256xf32> to vector<16x16xf32>
    %cst_29 = arith.constant dense<0.000000e+00> : vector<32x16xf32>
    %87 = tpu.matmul %85, %86, %cst_29 {dimension_numbers = #tpu.dot_dimension_numbers<[1], [0], [0], [1], [0, 0, 1, 1], [], []>} : vector<32x16xf32>, vector<16x16xf32>, vector<32x16xf32> -> vector<32x16xf32>
    %88 = vector.extract_strided_slice %78 {offsets = [0, 48], sizes = [32, 16], strides = [1, 1]} : vector<32x256xf32> to vector<32x16xf32>
    %89 = vector.extract_strided_slice %77 {offsets = [0, 48], sizes = [16, 16], strides = [1, 1]} : vector<16x256xf32> to vector<16x16xf32>
    %cst_30 = arith.constant dense<0.000000e+00> : vector<32x16xf32>
    %90 = tpu.matmul %88, %89, %cst_30 {dimension_numbers = #tpu.dot_dimension_numbers<[1], [0], [0], [1], [0, 0, 1, 1], [], []>} : vector<32x16xf32>, vector<16x16xf32>, vector<32x16xf32> -> vector<32x16xf32>
    %91 = vector.extract_strided_slice %78 {offsets = [0, 64], sizes = [32, 16], strides = [1, 1]} : vector<32x256xf32> to vector<32x16xf32>
    %92 = vector.extract_strided_slice %77 {offsets = [0, 64], sizes = [16, 16], strides = [1, 1]} : vector<16x256xf32> to vector<16x16xf32>
    %cst_31 = arith.constant dense<0.000000e+00> : vector<32x16xf32>
    %93 = tpu.matmul %91, %92, %cst_31 {dimension_numbers = #tpu.dot_dimension_numbers<[1], [0], [0], [1], [0, 0, 1, 1], [], []>} : vector<32x16xf32>, vector<16x16xf32>, vector<32x16xf32> -> vector<32x16xf32>
    %94 = arith.addf %81, %93 : vector<32x16xf32>
    %95 = vector.extract_strided_slice %78 {offsets = [0, 80], sizes = [32, 16], strides = [1, 1]} : vector<32x256xf32> to vector<32x16xf32>
    %96 = vector.extract_strided_slice %77 {offsets = [0, 80], sizes = [16, 16], strides = [1, 1]} : vector<16x256xf32> to vector<16x16xf32>
    %cst_32 = arith.constant dense<0.000000e+00> : vector<32x16xf32>
    %97 = tpu.matmul %95, %96, %cst_32 {dimension_numbers = #tpu.dot_dimension_numbers<[1], [0], [0], [1], [0, 0, 1, 1], [], []>} : vector<32x16xf32>, vector<16x16xf32>, vector<32x16xf32> -> vector<32x16xf32>
    %98 = arith.addf %84, %97 : vector<32x16xf32>
    %99 = vector.extract_strided_slice %78 {offsets = [0, 96], sizes = [32, 16], strides = [1, 1]} : vector<32x256xf32> to vector<32x16xf32>
    %100 = vector.extract_strided_slice %77 {offsets = [0, 96], sizes = [16, 16], strides = [1, 1]} : vector<16x256xf32> to vector<16x16xf32>
    %cst_33 = arith.constant dense<0.000000e+00> : vector<32x16xf32>
    %101 = tpu.matmul %99, %100, %cst_33 {dimension_numbers = #tpu.dot_dimension_numbers<[1], [0], [0], [1], [0, 0, 1, 1], [], []>} : vector<32x16xf32>, vector<16x16xf32>, vector<32x16xf32> -> vector<32x16xf32>
    %102 = arith.addf %87, %101 : vector<32x16xf32>
    %103 = vector.extract_strided_slice %78 {offsets = [0, 112], sizes = [32, 16], strides = [1, 1]} : vector<32x256xf32> to vector<32x16xf32>
    %104 = vector.extract_strided_slice %77 {offsets = [0, 112], sizes = [16, 16], strides = [1, 1]} : vector<16x256xf32> to vector<16x16xf32>
    %cst_34 = arith.constant dense<0.000000e+00> : vector<32x16xf32>
    %105 = tpu.matmul %103, %104, %cst_34 {dimension_numbers = #tpu.dot_dimension_numbers<[1], [0], [0], [1], [0, 0, 1, 1], [], []>} : vector<32x16xf32>, vector<16x16xf32>, vector<32x16xf32> -> vector<32x16xf32>
    %106 = arith.addf %90, %105 : vector<32x16xf32>
    %107 = vector.extract_strided_slice %78 {offsets = [0, 128], sizes = [32, 16], strides = [1, 1]} : vector<32x256xf32> to vector<32x16xf32>
    %108 = vector.extract_strided_slice %77 {offsets = [0, 128], sizes = [16, 16], strides = [1, 1]} : vector<16x256xf32> to vector<16x16xf32>
    %cst_35 = arith.constant dense<0.000000e+00> : vector<32x16xf32>
    %109 = tpu.matmul %107, %108, %cst_35 {dimension_numbers = #tpu.dot_dimension_numbers<[1], [0], [0], [1], [0, 0, 1, 1], [], []>} : vector<32x16xf32>, vector<16x16xf32>, vector<32x16xf32> -> vector<32x16xf32>
    %110 = arith.addf %94, %109 : vector<32x16xf32>
    %111 = vector.extract_strided_slice %78 {offsets = [0, 144], sizes = [32, 16], strides = [1, 1]} : vector<32x256xf32> to vector<32x16xf32>
    %112 = vector.extract_strided_slice %77 {offsets = [0, 144], sizes = [16, 16], strides = [1, 1]} : vector<16x256xf32> to vector<16x16xf32>
    %cst_36 = arith.constant dense<0.000000e+00> : vector<32x16xf32>
    %113 = tpu.matmul %111, %112, %cst_36 {dimension_numbers = #tpu.dot_dimension_numbers<[1], [0], [0], [1], [0, 0, 1, 1], [], []>} : vector<32x16xf32>, vector<16x16xf32>, vector<32x16xf32> -> vector<32x16xf32>
    %114 = arith.addf %98, %113 : vector<32x16xf32>
    %115 = vector.extract_strided_slice %78 {offsets = [0, 160], sizes = [32, 16], strides = [1, 1]} : vector<32x256xf32> to vector<32x16xf32>
    %116 = vector.extract_strided_slice %77 {offsets = [0, 160], sizes = [16, 16], strides = [1, 1]} : vector<16x256xf32> to vector<16x16xf32>
    %cst_37 = arith.constant dense<0.000000e+00> : vector<32x16xf32>
    %117 = tpu.matmul %115, %116, %cst_37 {dimension_numbers = #tpu.dot_dimension_numbers<[1], [0], [0], [1], [0, 0, 1, 1], [], []>} : vector<32x16xf32>, vector<16x16xf32>, vector<32x16xf32> -> vector<32x16xf32>
    %118 = arith.addf %102, %117 : vector<32x16xf32>
    %119 = vector.extract_strided_slice %78 {offsets = [0, 176], sizes = [32, 16], strides = [1, 1]} : vector<32x256xf32> to vector<32x16xf32>
    %120 = vector.extract_strided_slice %77 {offsets = [0, 176], sizes = [16, 16], strides = [1, 1]} : vector<16x256xf32> to vector<16x16xf32>
    %cst_38 = arith.constant dense<0.000000e+00> : vector<32x16xf32>
    %121 = tpu.matmul %119, %120, %cst_38 {dimension_numbers = #tpu.dot_dimension_numbers<[1], [0], [0], [1], [0, 0, 1, 1], [], []>} : vector<32x16xf32>, vector<16x16xf32>, vector<32x16xf32> -> vector<32x16xf32>
    %122 = arith.addf %106, %121 : vector<32x16xf32>
    %123 = vector.extract_strided_slice %78 {offsets = [0, 192], sizes = [32, 16], strides = [1, 1]} : vector<32x256xf32> to vector<32x16xf32>
    %124 = vector.extract_strided_slice %77 {offsets = [0, 192], sizes = [16, 16], strides = [1, 1]} : vector<16x256xf32> to vector<16x16xf32>
    %cst_39 = arith.constant dense<0.000000e+00> : vector<32x16xf32>
    %125 = tpu.matmul %123, %124, %cst_39 {dimension_numbers = #tpu.dot_dimension_numbers<[1], [0], [0], [1], [0, 0, 1, 1], [], []>} : vector<32x16xf32>, vector<16x16xf32>, vector<32x16xf32> -> vector<32x16xf32>
    %126 = arith.addf %110, %125 : vector<32x16xf32>
    %127 = vector.extract_strided_slice %78 {offsets = [0, 208], sizes = [32, 16], strides = [1, 1]} : vector<32x256xf32> to vector<32x16xf32>
    %128 = vector.extract_strided_slice %77 {offsets = [0, 208], sizes = [16, 16], strides = [1, 1]} : vector<16x256xf32> to vector<16x16xf32>
    %cst_40 = arith.constant dense<0.000000e+00> : vector<32x16xf32>
    %129 = tpu.matmul %127, %128, %cst_40 {dimension_numbers = #tpu.dot_dimension_numbers<[1], [0], [0], [1], [0, 0, 1, 1], [], []>} : vector<32x16xf32>, vector<16x16xf32>, vector<32x16xf32> -> vector<32x16xf32>
    %130 = arith.addf %114, %129 : vector<32x16xf32>
    %131 = vector.extract_strided_slice %78 {offsets = [0, 224], sizes = [32, 16], strides = [1, 1]} : vector<32x256xf32> to vector<32x16xf32>
    %132 = vector.extract_strided_slice %77 {offsets = [0, 224], sizes = [16, 16], strides = [1, 1]} : vector<16x256xf32> to vector<16x16xf32>
    %cst_41 = arith.constant dense<0.000000e+00> : vector<32x16xf32>
    %133 = tpu.matmul %131, %132, %cst_41 {dimension_numbers = #tpu.dot_dimension_numbers<[1], [0], [0], [1], [0, 0, 1, 1], [], []>} : vector<32x16xf32>, vector<16x16xf32>, vector<32x16xf32> -> vector<32x16xf32>
    %134 = arith.addf %118, %133 : vector<32x16xf32>
    %135 = vector.extract_strided_slice %78 {offsets = [0, 240], sizes = [32, 16], strides = [1, 1]} : vector<32x256xf32> to vector<32x16xf32>
    %136 = vector.extract_strided_slice %77 {offsets = [0, 240], sizes = [16, 16], strides = [1, 1]} : vector<16x256xf32> to vector<16x16xf32>
    %cst_42 = arith.constant dense<0.000000e+00> : vector<32x16xf32>
    %137 = tpu.matmul %135, %136, %cst_42 {dimension_numbers = #tpu.dot_dimension_numbers<[1], [0], [0], [1], [0, 0, 1, 1], [], []>} : vector<32x16xf32>, vector<16x16xf32>, vector<32x16xf32> -> vector<32x16xf32>
    %138 = arith.addf %122, %137 : vector<32x16xf32>
    %139 = arith.addf %126, %130 : vector<32x16xf32>
    %140 = arith.addf %134, %138 : vector<32x16xf32>
    %141 = arith.addf %139, %140 : vector<32x16xf32>
    %c128 = arith.constant 128 : index
    %c0_43 = arith.constant 0 : index
    %142 = vector.load %arg2[%c128, %c0_43] : memref<208x288xf32, #tpu.memory_space<vmem>>, vector<32x1xf32>
    %143 = vector.broadcast %142 : vector<32x1xf32> to vector<32x16xf32>
    %144 = arith.addf %141, %143 : vector<32x16xf32>
    %cst_44 = arith.constant 0.000000e+00 : f32
    %145 = vector.broadcast %cst_44 : f32 to vector<32x16xf32>
    %146 = arith.maximumf %144, %145 : vector<32x16xf32>
    %c320 = arith.constant 320 : index
    %c0_45 = arith.constant 0 : index
    %147 = vector.load %arg1[%c320, %c0_45] : memref<336x1024xbf16, #tpu.memory_space<vmem>>, vector<16x144xbf16>
    %148 = arith.extf %147 : vector<16x144xbf16> to vector<16x144xf32>
    %cst_46 = arith.constant dense<0.000000e+00> : vector<32x144xf32>
    %149 = tpu.matmul %146, %148, %cst_46 {dimension_numbers = #tpu.dot_dimension_numbers<[1], [0], [0], [1], [0, 0, 1, 1], [], []>} : vector<32x16xf32>, vector<16x144xf32>, vector<32x144xf32> -> vector<32x144xf32>
    %c48 = arith.constant 48 : index
    %c0_47 = arith.constant 0 : index
    %150 = vector.load %arg2[%c48, %c0_47] : memref<208x288xf32, #tpu.memory_space<vmem>>, vector<16x288xf32>
    %151 = vector.extract_strided_slice %150 {offsets = [0, 0], sizes = [16, 32], strides = [1, 1]} : vector<16x288xf32> to vector<16x32xf32>
    %152 = vector.extract_strided_slice %149 {offsets = [0, 0], sizes = [32, 16], strides = [1, 1]} : vector<32x144xf32> to vector<32x16xf32>
    %cst_48 = arith.constant dense<0.000000e+00> : vector<16x16xf32>
    %153 = tpu.matmul %151, %152, %cst_48 {dimension_numbers = #tpu.dot_dimension_numbers<[1], [0], [0], [1], [0, 0, 1, 1], [], []>} : vector<16x32xf32>, vector<32x16xf32>, vector<16x16xf32> -> vector<16x16xf32>
    %154 = vector.extract_strided_slice %150 {offsets = [0, 32], sizes = [16, 32], strides = [1, 1]} : vector<16x288xf32> to vector<16x32xf32>
    %155 = vector.extract_strided_slice %149 {offsets = [0, 16], sizes = [32, 16], strides = [1, 1]} : vector<32x144xf32> to vector<32x16xf32>
    %cst_49 = arith.constant dense<0.000000e+00> : vector<16x16xf32>
    %156 = tpu.matmul %154, %155, %cst_49 {dimension_numbers = #tpu.dot_dimension_numbers<[1], [0], [0], [1], [0, 0, 1, 1], [], []>} : vector<16x32xf32>, vector<32x16xf32>, vector<16x16xf32> -> vector<16x16xf32>
    %157 = vector.extract_strided_slice %150 {offsets = [0, 64], sizes = [16, 32], strides = [1, 1]} : vector<16x288xf32> to vector<16x32xf32>
    %158 = vector.extract_strided_slice %149 {offsets = [0, 32], sizes = [32, 16], strides = [1, 1]} : vector<32x144xf32> to vector<32x16xf32>
    %cst_50 = arith.constant dense<0.000000e+00> : vector<16x16xf32>
    %159 = tpu.matmul %157, %158, %cst_50 {dimension_numbers = #tpu.dot_dimension_numbers<[1], [0], [0], [1], [0, 0, 1, 1], [], []>} : vector<16x32xf32>, vector<32x16xf32>, vector<16x16xf32> -> vector<16x16xf32>
    %160 = vector.extract_strided_slice %150 {offsets = [0, 96], sizes = [16, 32], strides = [1, 1]} : vector<16x288xf32> to vector<16x32xf32>
    %161 = vector.extract_strided_slice %149 {offsets = [0, 48], sizes = [32, 16], strides = [1, 1]} : vector<32x144xf32> to vector<32x16xf32>
    %cst_51 = arith.constant dense<0.000000e+00> : vector<16x16xf32>
    %162 = tpu.matmul %160, %161, %cst_51 {dimension_numbers = #tpu.dot_dimension_numbers<[1], [0], [0], [1], [0, 0, 1, 1], [], []>} : vector<16x32xf32>, vector<32x16xf32>, vector<16x16xf32> -> vector<16x16xf32>
    %163 = vector.extract_strided_slice %150 {offsets = [0, 128], sizes = [16, 32], strides = [1, 1]} : vector<16x288xf32> to vector<16x32xf32>
    %164 = vector.extract_strided_slice %149 {offsets = [0, 64], sizes = [32, 16], strides = [1, 1]} : vector<32x144xf32> to vector<32x16xf32>
    %cst_52 = arith.constant dense<0.000000e+00> : vector<16x16xf32>
    %165 = tpu.matmul %163, %164, %cst_52 {dimension_numbers = #tpu.dot_dimension_numbers<[1], [0], [0], [1], [0, 0, 1, 1], [], []>} : vector<16x32xf32>, vector<32x16xf32>, vector<16x16xf32> -> vector<16x16xf32>
    %166 = arith.addf %153, %165 : vector<16x16xf32>
    %167 = vector.extract_strided_slice %150 {offsets = [0, 160], sizes = [16, 32], strides = [1, 1]} : vector<16x288xf32> to vector<16x32xf32>
    %168 = vector.extract_strided_slice %149 {offsets = [0, 80], sizes = [32, 16], strides = [1, 1]} : vector<32x144xf32> to vector<32x16xf32>
    %cst_53 = arith.constant dense<0.000000e+00> : vector<16x16xf32>
    %169 = tpu.matmul %167, %168, %cst_53 {dimension_numbers = #tpu.dot_dimension_numbers<[1], [0], [0], [1], [0, 0, 1, 1], [], []>} : vector<16x32xf32>, vector<32x16xf32>, vector<16x16xf32> -> vector<16x16xf32>
    %170 = arith.addf %156, %169 : vector<16x16xf32>
    %171 = vector.extract_strided_slice %150 {offsets = [0, 192], sizes = [16, 32], strides = [1, 1]} : vector<16x288xf32> to vector<16x32xf32>
    %172 = vector.extract_strided_slice %149 {offsets = [0, 96], sizes = [32, 16], strides = [1, 1]} : vector<32x144xf32> to vector<32x16xf32>
    %cst_54 = arith.constant dense<0.000000e+00> : vector<16x16xf32>
    %173 = tpu.matmul %171, %172, %cst_54 {dimension_numbers = #tpu.dot_dimension_numbers<[1], [0], [0], [1], [0, 0, 1, 1], [], []>} : vector<16x32xf32>, vector<32x16xf32>, vector<16x16xf32> -> vector<16x16xf32>
    %174 = arith.addf %159, %173 : vector<16x16xf32>
    %175 = vector.extract_strided_slice %150 {offsets = [0, 224], sizes = [16, 32], strides = [1, 1]} : vector<16x288xf32> to vector<16x32xf32>
    %176 = vector.extract_strided_slice %149 {offsets = [0, 112], sizes = [32, 16], strides = [1, 1]} : vector<32x144xf32> to vector<32x16xf32>
    %cst_55 = arith.constant dense<0.000000e+00> : vector<16x16xf32>
    %177 = tpu.matmul %175, %176, %cst_55 {dimension_numbers = #tpu.dot_dimension_numbers<[1], [0], [0], [1], [0, 0, 1, 1], [], []>} : vector<16x32xf32>, vector<32x16xf32>, vector<16x16xf32> -> vector<16x16xf32>
    %178 = arith.addf %162, %177 : vector<16x16xf32>
    %179 = vector.extract_strided_slice %150 {offsets = [0, 256], sizes = [16, 32], strides = [1, 1]} : vector<16x288xf32> to vector<16x32xf32>
    %180 = vector.extract_strided_slice %149 {offsets = [0, 128], sizes = [32, 16], strides = [1, 1]} : vector<32x144xf32> to vector<32x16xf32>
    %cst_56 = arith.constant dense<0.000000e+00> : vector<16x16xf32>
    %181 = tpu.matmul %179, %180, %cst_56 {dimension_numbers = #tpu.dot_dimension_numbers<[1], [0], [0], [1], [0, 0, 1, 1], [], []>} : vector<16x32xf32>, vector<32x16xf32>, vector<16x16xf32> -> vector<16x16xf32>
    %182 = arith.addf %166, %181 : vector<16x16xf32>
    %183 = arith.addf %182, %170 : vector<16x16xf32>
    %184 = arith.addf %174, %178 : vector<16x16xf32>
    %185 = arith.addf %183, %184 : vector<16x16xf32>
    %c160 = arith.constant 160 : index
    %c0_57 = arith.constant 0 : index
    %186 = vector.load %arg2[%c160, %c0_57] : memref<208x288xf32, #tpu.memory_space<vmem>>, vector<16x1xf32>
    %187 = vector.broadcast %186 : vector<16x1xf32> to vector<16x16xf32>
    %188 = arith.addf %185, %187 : vector<16x16xf32>
    %c64 = arith.constant 64 : index
    %c0_58 = arith.constant 0 : index
    %189 = vector.load %arg2[%c64, %c0_58] : memref<208x288xf32, #tpu.memory_space<vmem>>, vector<32x16xf32>
    %cst_59 = arith.constant dense<0.000000e+00> : vector<32x16xf32>
    %190 = tpu.matmul %189, %188, %cst_59 {dimension_numbers = #tpu.dot_dimension_numbers<[1], [0], [0], [1], [0, 0, 1, 1], [], []>} : vector<32x16xf32>, vector<16x16xf32>, vector<32x16xf32> -> vector<32x16xf32>
    %c176 = arith.constant 176 : index
    %c0_60 = arith.constant 0 : index
    %191 = vector.load %arg2[%c176, %c0_60] : memref<208x288xf32, #tpu.memory_space<vmem>>, vector<32x1xf32>
    %192 = vector.broadcast %191 : vector<32x1xf32> to vector<32x16xf32>
    %193 = arith.subf %190, %192 : vector<32x16xf32>
    %194 = tpu.iota {dimensions = array<i32: 0>} : vector<32x16xi32>
    %cst_61 = arith.constant dense<0xFF800000> : vector<16xf32>
    %195 = vector.multi_reduction <maximumf>, %193, %cst_61 [0] : vector<32x16xf32> to vector<16xf32>
    %196 = vector.shape_cast %195 : vector<16xf32> to vector<1x16xf32>
    %197 = vector.broadcast %196 : vector<1x16xf32> to vector<32x16xf32>
    %198 = arith.cmpf oeq, %193, %197 : vector<32x16xf32>
    %c32_i32 = arith.constant 32 : i32
    %199 = vector.broadcast %c32_i32 : i32 to vector<32x16xi32>
    %200 = arith.select %198, %194, %199 : vector<32x16xi1>, vector<32x16xi32>
    %cst_62 = arith.constant dense<2147483647> : vector<16xi32>
    %201 = vector.multi_reduction <minsi>, %200, %cst_62 [0] : vector<32x16xi32> to vector<16xi32>
    %202 = vector.shape_cast %201 : vector<16xi32> to vector<1x16xi32>
    %203 = vector.broadcast %202 : vector<1x16xi32> to vector<32x16xi32>
    %204 = arith.cmpi eq, %194, %203 : vector<32x16xi32>
    %205 = arith.extui %204 : vector<32x16xi1> to vector<32x16xi32>
    %206 = arith.sitofp %205 : vector<32x16xi32> to vector<32x16xf32>
    %c96 = arith.constant 96 : index
    %c0_63 = arith.constant 0 : index
    %207 = vector.load %arg2[%c96, %c0_63] : memref<208x288xf32, #tpu.memory_space<vmem>>, vector<16x32xf32>
    %cst_64 = arith.constant dense<0.000000e+00> : vector<16x16xf32>
    %208 = tpu.matmul %207, %206, %cst_64 {dimension_numbers = #tpu.dot_dimension_numbers<[1], [0], [0], [1], [0, 0, 1, 1], [], []>} : vector<16x32xf32>, vector<32x16xf32>, vector<16x16xf32> -> vector<16x16xf32>
    %c0_65 = arith.constant 0 : index
    %c0_66 = arith.constant 0 : index
    %209 = vector.load %arg3[%c0_65, %c0_66] : memref<16x16xf32, #tpu.memory_space<vmem>>, vector<16x16xf32>
    tpu.vector_store %arg3[%c0_65, %c0_66], %208 {strides = array<i32>} : memref<16x16xf32, #tpu.memory_space<vmem>>, vector<16x16xf32>,
    return
  }
}

</mosaic_0001>

<llo_original>
// kernel: sensor_forward.1
$region0: #{sensor_forward.1}
  #allocation0 [shape = 'u32[]', space=smem, size = 0x4, offset = 0x4, fixed_abs, tag = 'smem constant byte address 0x4 - core index']
  #allocation1 [shape = 'u32[72,128]{1,0:T(1,128)}', space=vmem, size = 0x9000, scoped, tag = 'internal scratch']
  %s0 = inlined_call_operand.vmem [shape: f32[2,256], index: 0, kind: input, shape index: {}]
  %s1 = inlined_call_operand.hbm [shape: bf16[336,1024], index: 1, kind: input, shape index: {}]
  %s2 = inlined_call_operand.vmem [shape: f32[208,288], index: 2, kind: input, shape index: {}]
  %s3 = inlined_call_operand.vmem [shape: f32[16,16], index: 3, kind: output, shape index: {}]
  %s4 = sld [smem:[#allocation0]]
  $region26: #{sensor_forward.1} parent=0
    _
  %s6 = ssub.s32 1, %s4
  %s7 = scalar_select 0, %s6, %s4
  $region1: #{sensor_forward.1} parent=0
    #allocation2 [shape = 'u8[688128]{0}', space=vmem, size = 0xa8000, scoped, tag = 'input window, operand 1, single buffered']
    #allocation3 [shape = 's32[1]{0}', space=sflag, size = 0x4, scoped, tag = 'scoped memory for sensor_forward.1']
    %8 = vsyncpa [#allocation3], 0
    // Predicated region
    $region2: #{sensor_forward.1} parent=1 // pred_check
      _
    $region3: #{sensor_forward.1} parent=1 // pred_check_branch
      %10 = sbr.rel (0) target = $region5
    $region4: #{sensor_forward.1} parent=1 // pred_region
      _
    $region5: #{sensor_forward.1} parent=1 // pred_fallthru
      _
    // Predicated region
    $region6: #{sensor_forward.1} parent=1 // pred_check
      _
    $region7: #{sensor_forward.1} parent=1 // pred_check_branch
      %12 = sbr.rel (0) target = $region9
    $region8: #{sensor_forward.1} parent=1 // pred_region
      %14 = vsyncadd [#allocation3], 0
      %s15 = sshll.u32 %s1, 4
      %s16 = int_to_ptr.hbm [resolvable:$true] %s15
      %s17 = sshll.u32 [#allocation2], 4
      %s18 = int_to_ptr.vmem [resolvable:$true] %s17
      %23 = dma.hbm_to_vmem [thread:$0]  %s16, 21504, %s18, [#allocation3], 512, 512, 32
    $region9: #{sensor_forward.1} parent=1 // pred_fallthru
      _
    // Predicated region
    $region10: #{sensor_forward.1} parent=1 // pred_check
      _
    $region11: #{sensor_forward.1} parent=1 // pred_check_branch
      %25 = sbr.rel (0) target = $region13
    $region12: #{sensor_forward.1} parent=1 // pred_region
      _
    $region13: #{sensor_forward.1} parent=1 // pred_fallthru
      _
    // Predicated region
    $region14: #{sensor_forward.1} parent=1 // pred_check
      _
    $region15: #{sensor_forward.1} parent=1 // pred_check_branch
      %27 = sbr.rel (0) target = $region17
    $region16: #{sensor_forward.1} parent=1 // pred_region
      %29 = dma.done [#allocation3], 21504
    $region17: #{sensor_forward.1} parent=1 // pred_fallthru
      _
    %v30 = vld [vmem:[%s0] sm:$0xf]
    %v31 = vsub.f32 1.0, %v30
    %v32 = vld [vmem:[#allocation2] sm:$0xff]
    %v33 = vld [vmem:[#allocation2 + $0x8] sm:$0xff]
    %v34 = vld [vmem:[#allocation2 + $0x10] sm:$0xff]
    %v35 = vld [vmem:[#allocation2 + $0x18] sm:$0xff]
    %v36 = vld [vmem:[#allocation2 + $0x20] sm:$0xff]
    %v37 = vld [vmem:[#allocation2 + $0x28] sm:$0xff]
    %v38 = vld [vmem:[#allocation2 + $0x30] sm:$0xff]
    %v39 = vld [vmem:[#allocation2 + $0x38] sm:$0xff]
    %v40 = vld [vmem:[#allocation2 + $0x40] sm:$0xff]
    %v41 = vld [vmem:[#allocation2 + $0x48] sm:$0xff]
    %v42 = vld [vmem:[#allocation2 + $0x50] sm:$0xff]
    %v43 = vld [vmem:[#allocation2 + $0x58] sm:$0xff]
    %v44 = vld [vmem:[#allocation2 + $0x60] sm:$0xff]
    %v45 = vld [vmem:[#allocation2 + $0x68] sm:$0xff]
    %v46 = vld [vmem:[#allocation2 + $0x70] sm:$0xff]
    %v47 = vld [vmem:[#allocation2 + $0x78] sm:$0xff]
    %v48 = vld [vmem:[#allocation2 + $0x80] sm:$0xff]
    %v49 = vld [vmem:[#allocation2 + $0x88] sm:$0xff]
    %v50 = vld [vmem:[#allocation2 + $0x90] sm:$0xff]
    %v51 = vld [vmem:[#allocation2 + $0x98] sm:$0xff]
    %v52 = vld [vmem:[#allocation2 + $0xa0] sm:$0xff]
    %v53 = vld [vmem:[#allocation2 + $0xa8] sm:$0xff]
    %v54 = vld [vmem:[#allocation2 + $0xb0] sm:$0xff]
    %v55 = vld [vmem:[#allocation2 + $0xb8] sm:$0xff]
    %v56 = vld [vmem:[#allocation2 + $0xc0] sm:$0xff]
    %v57 = vld [vmem:[#allocation2 + $0xc8] sm:$0xff]
    %v58 = vld [vmem:[#allocation2 + $0xd0] sm:$0xff]
    %v59 = vld [vmem:[#allocation2 + $0xd8] sm:$0xff]
    %v60 = vld [vmem:[#allocation2 + $0xe0] sm:$0xff]
    %v61 = vld [vmem:[#allocation2 + $0xe8] sm:$0xff]
    %v62 = vld [vmem:[#allocation2 + $0xf0] sm:$0xff]
    %v63 = vld [vmem:[#allocation2 + $0xf8] sm:$0xff]
    %v64 = vld [vmem:[#allocation2 + $0x100] sm:$0xff]
    %v65 = vld [vmem:[#allocation2 + $0x108] sm:$0xff]
    %v66 = vld [vmem:[#allocation2 + $0x110] sm:$0xff]
    %v67 = vld [vmem:[#allocation2 + $0x118] sm:$0xff]
    %v68 = vld [vmem:[#allocation2 + $0x120] sm:$0xff]
    %v69 = vld [vmem:[#allocation2 + $0x128] sm:$0xff]
    %v70 = vld [vmem:[#allocation2 + $0x130] sm:$0xff]
    %v71 = vld [vmem:[#allocation2 + $0x138] sm:$0xff]
    %v72 = vld [vmem:[#allocation2 + $0x140] sm:$0xff]
    %v73 = vld [vmem:[#allocation2 + $0x148] sm:$0xff]
    %v74 = vld [vmem:[#allocation2 + $0x150] sm:$0xff]
    %v75 = vld [vmem:[#allocation2 + $0x158] sm:$0xff]
    %v76 = vld [vmem:[#allocation2 + $0x160] sm:$0xff]
    %v77 = vld [vmem:[#allocation2 + $0x168] sm:$0xff]
    %v78 = vld [vmem:[#allocation2 + $0x170] sm:$0xff]
    %v79 = vld [vmem:[#allocation2 + $0x178] sm:$0xff]
    %v80 = vld [vmem:[#allocation2 + $0x180] sm:$0xff]
    %v81 = vld [vmem:[#allocation2 + $0x188] sm:$0xff]
    %v82 = vld [vmem:[#allocation2 + $0x190] sm:$0xff]
    %v83 = vld [vmem:[#allocation2 + $0x198] sm:$0xff]
    %v84 = vld [vmem:[#allocation2 + $0x1a0] sm:$0xff]
    %v85 = vld [vmem:[#allocation2 + $0x1a8] sm:$0xff]
    %v86 = vld [vmem:[#allocation2 + $0x1b0] sm:$0xff]
    %v87 = vld [vmem:[#allocation2 + $0x1b8] sm:$0xff]
    %v88 = vld [vmem:[#allocation2 + $0x1c0] sm:$0xff]
    %v89 = vld [vmem:[#allocation2 + $0x1c8] sm:$0xff]
    %v90 = vld [vmem:[#allocation2 + $0x1d0] sm:$0xff]
    %v91 = vld [vmem:[#allocation2 + $0x1d8] sm:$0xff]
    %v92 = vld [vmem:[#allocation2 + $0x1e0] sm:$0xff]
    %v93 = vld [vmem:[#allocation2 + $0x1e8] sm:$0xff]
    %v94 = vld [vmem:[#allocation2 + $0x1f0] sm:$0xff]
    %v95 = vld [vmem:[#allocation2 + $0x1f8] sm:$0xff]
    %v96 = vld [vmem:[#allocation2 + $0x200] sm:$0xff]
    %v97 = vld [vmem:[#allocation2 + $0x208] sm:$0xff]
    %v98 = vld [vmem:[#allocation2 + $0x210] sm:$0xff]
    %v99 = vld [vmem:[#allocation2 + $0x218] sm:$0xff]
    %v100 = vld [vmem:[#allocation2 + $0x220] sm:$0xff]
    %v101 = vld [vmem:[#allocation2 + $0x228] sm:$0xff]
    %v102 = vld [vmem:[#allocation2 + $0x230] sm:$0xff]
    %v103 = vld [vmem:[#allocation2 + $0x238] sm:$0xff]
    %v104 = vld [vmem:[#allocation2 + $0x240] sm:$0xff]
    %v105 = vld [vmem:[#allocation2 + $0x248] sm:$0xff]
    %v106 = vld [vmem:[#allocation2 + $0x250] sm:$0xff]
    %v107 = vld [vmem:[#allocation2 + $0x258] sm:$0xff]
    %v108 = vld [vmem:[#allocation2 + $0x260] sm:$0xff]
    %v109 = vld [vmem:[#allocation2 + $0x268] sm:$0xff]
    %v110 = vld [vmem:[#allocation2 + $0x270] sm:$0xff]
    %v111 = vld [vmem:[#allocation2 + $0x278] sm:$0xff]
    %v112 = vld [vmem:[#allocation2 + $0x280] sm:$0xff]
    %v113 = vld [vmem:[#allocation2 + $0x288] sm:$0xff]
    %v114 = vld [vmem:[#allocation2 + $0x290] sm:$0xff]
    %v115 = vld [vmem:[#allocation2 + $0x298] sm:$0xff]
    %v116 = vld [vmem:[#allocation2 + $0x2a0] sm:$0xff]
    %v117 = vld [vmem:[#allocation2 + $0x2a8] sm:$0xff]
    %v118 = vld [vmem:[#allocation2 + $0x2b0] sm:$0xff]
    %v119 = vld [vmem:[#allocation2 + $0x2b8] sm:$0xff]
    %v120 = vld [vmem:[#allocation2 + $0x2c0] sm:$0xff]
    %v121 = vld [vmem:[#allocation2 + $0x2c8] sm:$0xff]
    %v122 = vld [vmem:[#allocation2 + $0x2d0] sm:$0xff]
    %v123 = vld [vmem:[#allocation2 + $0x2d8] sm:$0xff]
    %v124 = vld [vmem:[#allocation2 + $0x2e0] sm:$0xff]
    %v125 = vld [vmem:[#allocation2 + $0x2e8] sm:$0xff]
    %v126 = vld [vmem:[#allocation2 + $0x2f0] sm:$0xff]
    %v127 = vld [vmem:[#allocation2 + $0x2f8] sm:$0xff]
    %v128 = vld [vmem:[#allocation2 + $0x300] sm:$0xff]
    %v129 = vld [vmem:[#allocation2 + $0x308] sm:$0xff]
    %v130 = vld [vmem:[#allocation2 + $0x310] sm:$0xff]
    %v131 = vld [vmem:[#allocation2 + $0x318] sm:$0xff]
    %v132 = vld [vmem:[#allocation2 + $0x320] sm:$0xff]
    %v133 = vld [vmem:[#allocation2 + $0x328] sm:$0xff]
    %v134 = vld [vmem:[#allocation2 + $0x330] sm:$0xff]
    %v135 = vld [vmem:[#allocation2 + $0x338] sm:$0xff]
    %v136 = vld [vmem:[#allocation2 + $0x340] sm:$0xff]
    %v137 = vld [vmem:[#allocation2 + $0x348] sm:$0xff]
    %v138 = vld [vmem:[#allocation2 + $0x350] sm:$0xff]
    %v139 = vld [vmem:[#allocation2 + $0x358] sm:$0xff]
    %v140 = vld [vmem:[#allocation2 + $0x360] sm:$0xff]
    %v141 = vld [vmem:[#allocation2 + $0x368] sm:$0xff]
    %v142 = vld [vmem:[#allocation2 + $0x370] sm:$0xff]
    %v143 = vld [vmem:[#allocation2 + $0x378] sm:$0xff]
    %v144 = vld [vmem:[#allocation2 + $0x380] sm:$0xff]
    %v145 = vld [vmem:[#allocation2 + $0x388] sm:$0xff]
    %v146 = vld [vmem:[#allocation2 + $0x390] sm:$0xff]
    %v147 = vld [vmem:[#allocation2 + $0x398] sm:$0xff]
    %v148 = vld [vmem:[#allocation2 + $0x3a0] sm:$0xff]
    %v149 = vld [vmem:[#allocation2 + $0x3a8] sm:$0xff]
    %v150 = vld [vmem:[#allocation2 + $0x3b0] sm:$0xff]
    %v151 = vld [vmem:[#allocation2 + $0x3b8] sm:$0xff]
    %v152 = vld [vmem:[#allocation2 + $0x3c0] sm:$0xff]
    %v153 = vld [vmem:[#allocation2 + $0x3c8] sm:$0xff]
    %v154 = vld [vmem:[#allocation2 + $0x3d0] sm:$0xff]
    %v155 = vld [vmem:[#allocation2 + $0x3d8] sm:$0xff]
    %v156 = vld [vmem:[#allocation2 + $0x3e0] sm:$0xff]
    %v157 = vld [vmem:[#allocation2 + $0x3e8] sm:$0xff]
    %v158 = vld [vmem:[#allocation2 + $0x3f0] sm:$0xff]
    %v159 = vld [vmem:[#allocation2 + $0x3f8] sm:$0xff]
    %161 = vst [vmem:[#allocation1] ss:$4 sm:$0xff] %v31
    %v162 = vld.sshfl [vmem:[#allocation1] sm:$0xff pattern:$0x73625140]
    %v163 = vld.sshfl [vmem:[#allocation1 + $0x8] sm:$0xff pattern:$0x73625140]
    %v166 = vpack.c.bf16 %v162, %v162
    %v167 = vpack.c.bf16 %v163, %v163
    %v296 = vunpack.c.l.b16 %v32
    %v297 = vunpack.c.h.b16 %v32
    %v298 = vunpack.c.l.b16 %v33
    %v299 = vunpack.c.h.b16 %v33
    %v300 = vunpack.c.l.b16 %v34
    %v301 = vunpack.c.h.b16 %v34
    %v302 = vunpack.c.l.b16 %v35
    %v303 = vunpack.c.h.b16 %v35
    %v304 = vunpack.c.l.b16 %v36
    %v305 = vunpack.c.h.b16 %v36
    %v306 = vunpack.c.l.b16 %v37
    %v307 = vunpack.c.h.b16 %v37
    %v308 = vunpack.c.l.b16 %v38
    %v309 = vunpack.c.h.b16 %v38
    %v310 = vunpack.c.l.b16 %v39
    %v311 = vunpack.c.h.b16 %v39
    %v312 = vunpack.c.l.b16 %v40
    %v313 = vunpack.c.h.b16 %v40
    %v314 = vunpack.c.l.b16 %v41
    %v315 = vunpack.c.h.b16 %v41
    %v316 = vunpack.c.l.b16 %v42
    %v317 = vunpack.c.h.b16 %v42
    %v318 = vunpack.c.l.b16 %v43
    %v319 = vunpack.c.h.b16 %v43
    %v320 = vunpack.c.l.b16 %v44
    %v321 = vunpack.c.h.b16 %v44
    %v322 = vunpack.c.l.b16 %v45
    %v323 = vunpack.c.h.b16 %v45
    %v324 = vunpack.c.l.b16 %v46
    %v325 = vunpack.c.h.b16 %v46
    %v326 = vunpack.c.l.b16 %v47
    %v327 = vunpack.c.h.b16 %v47
    %v328 = vunpack.c.l.b16 %v48
    %v329 = vunpack.c.h.b16 %v48
    %v330 = vunpack.c.l.b16 %v49
    %v331 = vunpack.c.h.b16 %v49
    %v332 = vunpack.c.l.b16 %v50
    %v333 = vunpack.c.h.b16 %v50
    %v334 = vunpack.c.l.b16 %v51
    %v335 = vunpack.c.h.b16 %v51
    %v336 = vunpack.c.l.b16 %v52
    %v337 = vunpack.c.h.b16 %v52
    %v338 = vunpack.c.l.b16 %v53
    %v339 = vunpack.c.h.b16 %v53
    %v340 = vunpack.c.l.b16 %v54
    %v341 = vunpack.c.h.b16 %v54
    %v342 = vunpack.c.l.b16 %v55
    %v343 = vunpack.c.h.b16 %v55
    %v344 = vunpack.c.l.b16 %v56
    %v345 = vunpack.c.h.b16 %v56
    %v346 = vunpack.c.l.b16 %v57
    %v347 = vunpack.c.h.b16 %v57
    %v348 = vunpack.c.l.b16 %v58
    %v349 = vunpack.c.h.b16 %v58
    %v350 = vunpack.c.l.b16 %v59
    %v351 = vunpack.c.h.b16 %v59
    %v352 = vunpack.c.l.b16 %v60
    %v353 = vunpack.c.h.b16 %v60
    %v354 = vunpack.c.l.b16 %v61
    %v355 = vunpack.c.h.b16 %v61
    %v356 = vunpack.c.l.b16 %v62
    %v357 = vunpack.c.h.b16 %v62
    %v358 = vunpack.c.l.b16 %v63
    %v359 = vunpack.c.h.b16 %v63
    %v360 = vunpack.c.l.b16 %v64
    %v361 = vunpack.c.h.b16 %v64
    %v362 = vunpack.c.l.b16 %v65
    %v363 = vunpack.c.h.b16 %v65
    %v364 = vunpack.c.l.b16 %v66
    %v365 = vunpack.c.h.b16 %v66
    %v366 = vunpack.c.l.b16 %v67
    %v367 = vunpack.c.h.b16 %v67
    %v368 = vunpack.c.l.b16 %v68
    %v369 = vunpack.c.h.b16 %v68
    %v370 = vunpack.c.l.b16 %v69
    %v371 = vunpack.c.h.b16 %v69
    %v372 = vunpack.c.l.b16 %v70
    %v373 = vunpack.c.h.b16 %v70
    %v374 = vunpack.c.l.b16 %v71
    %v375 = vunpack.c.h.b16 %v71
    %v376 = vunpack.c.l.b16 %v72
    %v377 = vunpack.c.h.b16 %v72
    %v378 = vunpack.c.l.b16 %v73
    %v379 = vunpack.c.h.b16 %v73
    %v380 = vunpack.c.l.b16 %v74
    %v381 = vunpack.c.h.b16 %v74
    %v382 = vunpack.c.l.b16 %v75
    %v383 = vunpack.c.h.b16 %v75
    %v384 = vunpack.c.l.b16 %v76
    %v385 = vunpack.c.h.b16 %v76
    %v386 = vunpack.c.l.b16 %v77
    %v387 = vunpack.c.h.b16 %v77
    %v388 = vunpack.c.l.b16 %v78
    %v389 = vunpack.c.h.b16 %v78
    %v390 = vunpack.c.l.b16 %v79
    %v391 = vunpack.c.h.b16 %v79
    %v392 = vunpack.c.l.b16 %v80
    %v393 = vunpack.c.h.b16 %v80
    %v394 = vunpack.c.l.b16 %v81
    %v395 = vunpack.c.h.b16 %v81
    %v396 = vunpack.c.l.b16 %v82
    %v397 = vunpack.c.h.b16 %v82
    %v398 = vunpack.c.l.b16 %v83
    %v399 = vunpack.c.h.b16 %v83
    %v400 = vunpack.c.l.b16 %v84
    %v401 = vunpack.c.h.b16 %v84
    %v402 = vunpack.c.l.b16 %v85
    %v403 = vunpack.c.h.b16 %v85
    %v404 = vunpack.c.l.b16 %v86
    %v405 = vunpack.c.h.b16 %v86
    %v406 = vunpack.c.l.b16 %v87
    %v407 = vunpack.c.h.b16 %v87
    %v408 = vunpack.c.l.b16 %v88
    %v409 = vunpack.c.h.b16 %v88
    %v410 = vunpack.c.l.b16 %v89
    %v411 = vunpack.c.h.b16 %v89
    %v412 = vunpack.c.l.b16 %v90
    %v413 = vunpack.c.h.b16 %v90
    %v414 = vunpack.c.l.b16 %v91
    %v415 = vunpack.c.h.b16 %v91
    %v416 = vunpack.c.l.b16 %v92
    %v417 = vunpack.c.h.b16 %v92
    %v418 = vunpack.c.l.b16 %v93
    %v419 = vunpack.c.h.b16 %v93
    %v420 = vunpack.c.l.b16 %v94
    %v421 = vunpack.c.h.b16 %v94
    %v422 = vunpack.c.l.b16 %v95
    %v423 = vunpack.c.h.b16 %v95
    %v424 = vunpack.c.l.b16 %v96
    %v425 = vunpack.c.h.b16 %v96
    %v426 = vunpack.c.l.b16 %v97
    %v427 = vunpack.c.h.b16 %v97
    %v428 = vunpack.c.l.b16 %v98
    %v429 = vunpack.c.h.b16 %v98
    %v430 = vunpack.c.l.b16 %v99
    %v431 = vunpack.c.h.b16 %v99
    %v432 = vunpack.c.l.b16 %v100
    %v433 = vunpack.c.h.b16 %v100
    %v434 = vunpack.c.l.b16 %v101
    %v435 = vunpack.c.h.b16 %v101
    %v436 = vunpack.c.l.b16 %v102
    %v437 = vunpack.c.h.b16 %v102
    %v438 = vunpack.c.l.b16 %v103
    %v439 = vunpack.c.h.b16 %v103
    %v440 = vunpack.c.l.b16 %v104
    %v441 = vunpack.c.h.b16 %v104
    %v442 = vunpack.c.l.b16 %v105
    %v443 = vunpack.c.h.b16 %v105
    %v444 = vunpack.c.l.b16 %v106
    %v445 = vunpack.c.h.b16 %v106
    %v446 = vunpack.c.l.b16 %v107
    %v447 = vunpack.c.h.b16 %v107
    %v448 = vunpack.c.l.b16 %v108
    %v449 = vunpack.c.h.b16 %v108
    %v450 = vunpack.c.l.b16 %v109
    %v451 = vunpack.c.h.b16 %v109
    %v452 = vunpack.c.l.b16 %v110
    %v453 = vunpack.c.h.b16 %v110
    %v454 = vunpack.c.l.b16 %v111
    %v455 = vunpack.c.h.b16 %v111
    %v456 = vunpack.c.l.b16 %v112
    %v457 = vunpack.c.h.b16 %v112
    %v458 = vunpack.c.l.b16 %v113
    %v459 = vunpack.c.h.b16 %v113
    %v460 = vunpack.c.l.b16 %v114
    %v461 = vunpack.c.h.b16 %v114
    %v462 = vunpack.c.l.b16 %v115
    %v463 = vunpack.c.h.b16 %v115
    %v464 = vunpack.c.l.b16 %v116
    %v465 = vunpack.c.h.b16 %v116
    %v466 = vunpack.c.l.b16 %v117
    %v467 = vunpack.c.h.b16 %v117
    %v468 = vunpack.c.l.b16 %v118
    %v469 = vunpack.c.h.b16 %v118
    %v470 = vunpack.c.l.b16 %v119
    %v471 = vunpack.c.h.b16 %v119
    %v472 = vunpack.c.l.b16 %v120
    %v473 = vunpack.c.h.b16 %v120
    %v474 = vunpack.c.l.b16 %v121
    %v475 = vunpack.c.h.b16 %v121
    %v476 = vunpack.c.l.b16 %v122
    %v477 = vunpack.c.h.b16 %v122
    %v478 = vunpack.c.l.b16 %v123
    %v479 = vunpack.c.h.b16 %v123
    %v480 = vunpack.c.l.b16 %v124
    %v481 = vunpack.c.h.b16 %v124
    %v482 = vunpack.c.l.b16 %v125
    %v483 = vunpack.c.h.b16 %v125
    %v484 = vunpack.c.l.b16 %v126
    %v485 = vunpack.c.h.b16 %v126
    %v486 = vunpack.c.l.b16 %v127
    %v487 = vunpack.c.h.b16 %v127
    %v488 = vunpack.c.l.b16 %v128
    %v489 = vunpack.c.h.b16 %v128
    %v490 = vunpack.c.l.b16 %v129
    %v491 = vunpack.c.h.b16 %v129
    %v492 = vunpack.c.l.b16 %v130
    %v493 = vunpack.c.h.b16 %v130
    %v494 = vunpack.c.l.b16 %v131
    %v495 = vunpack.c.h.b16 %v131
    %v496 = vunpack.c.l.b16 %v132
    %v497 = vunpack.c.h.b16 %v132
    %v498 = vunpack.c.l.b16 %v133
    %v499 = vunpack.c.h.b16 %v133
    %v500 = vunpack.c.l.b16 %v134
    %v501 = vunpack.c.h.b16 %v134
    %v502 = vunpack.c.l.b16 %v135
    %v503 = vunpack.c.h.b16 %v135
    %v504 = vunpack.c.l.b16 %v136
    %v505 = vunpack.c.h.b16 %v136
    %v506 = vunpack.c.l.b16 %v137
    %v507 = vunpack.c.h.b16 %v137
    %v508 = vunpack.c.l.b16 %v138
    %v509 = vunpack.c.h.b16 %v138
    %v510 = vunpack.c.l.b16 %v139
    %v511 = vunpack.c.h.b16 %v139
    %v512 = vunpack.c.l.b16 %v140
    %v513 = vunpack.c.h.b16 %v140
    %v514 = vunpack.c.l.b16 %v141
    %v515 = vunpack.c.h.b16 %v141
    %v516 = vunpack.c.l.b16 %v142
    %v517 = vunpack.c.h.b16 %v142
    %v518 = vunpack.c.l.b16 %v143
    %v519 = vunpack.c.h.b16 %v143
    %v520 = vunpack.c.l.b16 %v144
    %v521 = vunpack.c.h.b16 %v144
    %v522 = vunpack.c.l.b16 %v145
    %v523 = vunpack.c.h.b16 %v145
    %v524 = vunpack.c.l.b16 %v146
    %v525 = vunpack.c.h.b16 %v146
    %v526 = vunpack.c.l.b16 %v147
    %v527 = vunpack.c.h.b16 %v147
    %v528 = vunpack.c.l.b16 %v148
    %v529 = vunpack.c.h.b16 %v148
    %v530 = vunpack.c.l.b16 %v149
    %v531 = vunpack.c.h.b16 %v149
    %v532 = vunpack.c.l.b16 %v150
    %v533 = vunpack.c.h.b16 %v150
    %v534 = vunpack.c.l.b16 %v151
    %v535 = vunpack.c.h.b16 %v151
    %v536 = vunpack.c.l.b16 %v152
    %v537 = vunpack.c.h.b16 %v152
    %v538 = vunpack.c.l.b16 %v153
    %v539 = vunpack.c.h.b16 %v153
    %v540 = vunpack.c.l.b16 %v154
    %v541 = vunpack.c.h.b16 %v154
    %v542 = vunpack.c.l.b16 %v155
    %v543 = vunpack.c.h.b16 %v155
    %v544 = vunpack.c.l.b16 %v156
    %v545 = vunpack.c.h.b16 %v156
    %v546 = vunpack.c.l.b16 %v157
    %v547 = vunpack.c.h.b16 %v157
    %v548 = vunpack.c.l.b16 %v158
    %v549 = vunpack.c.h.b16 %v158
    %v550 = vunpack.c.l.b16 %v159
    %v551 = vunpack.c.h.b16 %v159
    %v552 = vpack.c.b16 %v304, %v296
    %v553 = vpack.c.b16 %v305, %v297
    %v554 = vpack.c.b16 %v306, %v298
    %v555 = vpack.c.b16 %v307, %v299
    %v556 = vpack.c.b16 %v308, %v300
    %v557 = vpack.c.b16 %v309, %v301
    %v558 = vpack.c.b16 %v310, %v302
    %v559 = vpack.c.b16 %v311, %v303
    %v560 = vpack.c.b16 %v320, %v312
    %v561 = vpack.c.b16 %v321, %v313
    %v562 = vpack.c.b16 %v322, %v314
    %v563 = vpack.c.b16 %v323, %v315
    %v564 = vpack.c.b16 %v324, %v316
    %v565 = vpack.c.b16 %v325, %v317
    %v566 = vpack.c.b16 %v326, %v318
    %v567 = vpack.c.b16 %v327, %v319
    %v568 = vpack.c.b16 %v336, %v328
    %v569 = vpack.c.b16 %v337, %v329
    %v570 = vpack.c.b16 %v338, %v330
    %v571 = vpack.c.b16 %v339, %v331
    %v572 = vpack.c.b16 %v340, %v332
    %v573 = vpack.c.b16 %v341, %v333
    %v574 = vpack.c.b16 %v342, %v334
    %v575 = vpack.c.b16 %v343, %v335
    %v576 = vpack.c.b16 %v352, %v344
    %v577 = vpack.c.b16 %v353, %v345
    %v578 = vpack.c.b16 %v354, %v346
    %v579 = vpack.c.b16 %v355, %v347
    %v580 = vpack.c.b16 %v356, %v348
    %v581 = vpack.c.b16 %v357, %v349
    %v582 = vpack.c.b16 %v358, %v350
    %v583 = vpack.c.b16 %v359, %v351
    %v584 = vpack.c.b16 %v368, %v360
    %v585 = vpack.c.b16 %v369, %v361
    %v586 = vpack.c.b16 %v370, %v362
    %v587 = vpack.c.b16 %v371, %v363
    %v588 = vpack.c.b16 %v372, %v364
    %v589 = vpack.c.b16 %v373, %v365
    %v590 = vpack.c.b16 %v374, %v366
    %v591 = vpack.c.b16 %v375, %v367
    %v592 = vpack.c.b16 %v384, %v376
    %v593 = vpack.c.b16 %v385, %v377
    %v594 = vpack.c.b16 %v386, %v378
    %v595 = vpack.c.b16 %v387, %v379
    %v596 = vpack.c.b16 %v388, %v380
    %v597 = vpack.c.b16 %v389, %v381
    %v598 = vpack.c.b16 %v390, %v382
    %v599 = vpack.c.b16 %v391, %v383
    %v600 = vpack.c.b16 %v400, %v392
    %v601 = vpack.c.b16 %v401, %v393
    %v602 = vpack.c.b16 %v402, %v394
    %v603 = vpack.c.b16 %v403, %v395
    %v604 = vpack.c.b16 %v404, %v396
    %v605 = vpack.c.b16 %v405, %v397
    %v606 = vpack.c.b16 %v406, %v398
    %v607 = vpack.c.b16 %v407, %v399
    %v608 = vpack.c.b16 %v416, %v408
    %v609 = vpack.c.b16 %v417, %v409
    %v610 = vpack.c.b16 %v418, %v410
    %v611 = vpack.c.b16 %v419, %v411
    %v612 = vpack.c.b16 %v420, %v412
    %v613 = vpack.c.b16 %v421, %v413
    %v614 = vpack.c.b16 %v422, %v414
    %v615 = vpack.c.b16 %v423, %v415
    %v616 = vpack.c.b16 %v432, %v424
    %v617 = vpack.c.b16 %v433, %v425
    %v618 = vpack.c.b16 %v434, %v426
    %v619 = vpack.c.b16 %v435, %v427
    %v620 = vpack.c.b16 %v436, %v428
    %v621 = vpack.c.b16 %v437, %v429
    %v622 = vpack.c.b16 %v438, %v430
    %v623 = vpack.c.b16 %v439, %v431
    %v624 = vpack.c.b16 %v448, %v440
    %v625 = vpack.c.b16 %v449, %v441
    %v626 = vpack.c.b16 %v450, %v442
    %v627 = vpack.c.b16 %v451, %v443
    %v628 = vpack.c.b16 %v452, %v444
    %v629 = vpack.c.b16 %v453, %v445
    %v630 = vpack.c.b16 %v454, %v446
    %v631 = vpack.c.b16 %v455, %v447
    %v632 = vpack.c.b16 %v464, %v456
    %v633 = vpack.c.b16 %v465, %v457
    %v634 = vpack.c.b16 %v466, %v458
    %v635 = vpack.c.b16 %v467, %v459
    %v636 = vpack.c.b16 %v468, %v460
    %v637 = vpack.c.b16 %v469, %v461
    %v638 = vpack.c.b16 %v470, %v462
    %v639 = vpack.c.b16 %v471, %v463
    %v640 = vpack.c.b16 %v480, %v472
    %v641 = vpack.c.b16 %v481, %v473
    %v642 = vpack.c.b16 %v482, %v474
    %v643 = vpack.c.b16 %v483, %v475
    %v644 = vpack.c.b16 %v484, %v476
    %v645 = vpack.c.b16 %v485, %v477
    %v646 = vpack.c.b16 %v486, %v478
    %v647 = vpack.c.b16 %v487, %v479
    %v648 = vpack.c.b16 %v496, %v488
    %v649 = vpack.c.b16 %v497, %v489
    %v650 = vpack.c.b16 %v498, %v490
    %v651 = vpack.c.b16 %v499, %v491
    %v652 = vpack.c.b16 %v500, %v492
    %v653 = vpack.c.b16 %v501, %v493
    %v654 = vpack.c.b16 %v502, %v494
    %v655 = vpack.c.b16 %v503, %v495
    %v656 = vpack.c.b16 %v512, %v504
    %v657 = vpack.c.b16 %v513, %v505
    %v658 = vpack.c.b16 %v514, %v506
    %v659 = vpack.c.b16 %v515, %v507
    %v660 = vpack.c.b16 %v516, %v508
    %v661 = vpack.c.b16 %v517, %v509
    %v662 = vpack.c.b16 %v518, %v510
    %v663 = vpack.c.b16 %v519, %v511
    %v664 = vpack.c.b16 %v528, %v520
    %v665 = vpack.c.b16 %v529, %v521
    %v666 = vpack.c.b16 %v530, %v522
    %v667 = vpack.c.b16 %v531, %v523
    %v668 = vpack.c.b16 %v532, %v524
    %v669 = vpack.c.b16 %v533, %v525
    %v670 = vpack.c.b16 %v534, %v526
    %v671 = vpack.c.b16 %v535, %v527
    %v672 = vpack.c.b16 %v544, %v536
    %v673 = vpack.c.b16 %v545, %v537
    %v674 = vpack.c.b16 %v546, %v538
    %v675 = vpack.c.b16 %v547, %v539
    %v676 = vpack.c.b16 %v548, %v540
    %v677 = vpack.c.b16 %v549, %v541
    %v678 = vpack.c.b16 %v550, %v542
    %v679 = vpack.c.b16 %v551, %v543
    %808 = vmatpush.bf16.msra.mxu0 %v608
    %809 = vmatpush.bf16.msra.mxu0 %v600
    %810 = vmatpush.bf16.msra.mxu0 %v592
    %811 = vmatpush.bf16.msra.mxu0 %v584
    %812 = vmatpush.bf16.msra.mxu0 %v576
    %813 = vmatpush.bf16.msra.mxu0 %v568
    %814 = vmatpush.bf16.msra.mxu0 %v560
    %815 = vmatpush.bf16.msra.mxu0 %v552
    %816 = vmatmul.bf16.gmra.mxu0 %v166
    %v817 = vpop.f32.mrf.mxu0
    %v818 = vadd.f32 0.0, %v817
    %v819 = vpop.f32.mrf.mxu0
    %820 = vdwg.mxu0
    %821 = vmatpush.bf16.msra.mxu0 %v672
    %822 = vmatpush.bf16.msra.mxu0 %v664
    %823 = vmatpush.bf16.msra.mxu0 %v656
    %824 = vmatpush.bf16.msra.mxu0 %v648
    %825 = vmatpush.bf16.msra.mxu0 %v640
    %826 = vmatpush.bf16.msra.mxu0 %v632
    %827 = vmatpush.bf16.msra.mxu0 %v624
    %828 = vmatpush.bf16.msra.mxu0 %v616
    %829 = vmatmul.bf16.gmra.mxu0 %v167
    %v830 = vpop.f32.mrf.mxu0
    %v831 = vadd.f32 %v818, %v830
    %v832 = vpop.f32.mrf.mxu0
    %833 = vdwg.mxu0
    %834 = vmatpush.bf16.msra.mxu0 %v609
    %835 = vmatpush.bf16.msra.mxu0 %v601
    %836 = vmatpush.bf16.msra.mxu0 %v593
    %837 = vmatpush.bf16.msra.mxu0 %v585
    %838 = vmatpush.bf16.msra.mxu0 %v577
    %839 = vmatpush.bf16.msra.mxu0 %v569
    %840 = vmatpush.bf16.msra.mxu0 %v561
    %841 = vmatpush.bf16.msra.mxu0 %v553
    %842 = vmatmul.bf16.gmra.mxu0 %v166
    %v843 = vpop.f32.mrf.mxu0
    %v844 = vadd.f32 0.0, %v843
    %v845 = vpop.f32.mrf.mxu0
    %846 = vdwg.mxu0
    %847 = vmatpush.bf16.msra.mxu0 %v673
    %848 = vmatpush.bf16.msra.mxu0 %v665
    %849 = vmatpush.bf16.msra.mxu0 %v657
    %850 = vmatpush.bf16.msra.mxu0 %v649
    %851 = vmatpush.bf16.msra.mxu0 %v641
    %852 = vmatpush.bf16.msra.mxu0 %v633
    %853 = vmatpush.bf16.msra.mxu0 %v625
    %854 = vmatpush.bf16.msra.mxu0 %v617
    %855 = vmatmul.bf16.gmra.mxu0 %v167
    %v856 = vpop.f32.mrf.mxu0
    %v857 = vadd.f32 %v844, %v856
    %v858 = vpop.f32.mrf.mxu0
    %859 = vdwg.mxu0
    %860 = vmatpush.bf16.msra.mxu0 %v610
    %861 = vmatpush.bf16.msra.mxu0 %v602
    %862 = vmatpush.bf16.msra.mxu0 %v594
    %863 = vmatpush.bf16.msra.mxu0 %v586
    %864 = vmatpush.bf16.msra.mxu0 %v578
    %865 = vmatpush.bf16.msra.mxu0 %v570
    %866 = vmatpush.bf16.msra.mxu0 %v562
    %867 = vmatpush.bf16.msra.mxu0 %v554
    %868 = vmatmul.bf16.gmra.mxu0 %v166
    %v869 = vpop.f32.mrf.mxu0
    %v870 = vadd.f32 0.0, %v869
    %v871 = vpop.f32.mrf.mxu0
    %872 = vdwg.mxu0
    %873 = vmatpush.bf16.msra.mxu0 %v674
    %874 = vmatpush.bf16.msra.mxu0 %v666
    %875 = vmatpush.bf16.msra.mxu0 %v658
    %876 = vmatpush.bf16.msra.mxu0 %v650
    %877 = vmatpush.bf16.msra.mxu0 %v642
    %878 = vmatpush.bf16.msra.mxu0 %v634
    %879 = vmatpush.bf16.msra.mxu0 %v626
    %880 = vmatpush.bf16.msra.mxu0 %v618
    %881 = vmatmul.bf16.gmra.mxu0 %v167
    %v882 = vpop.f32.mrf.mxu0
    %v883 = vadd.f32 %v870, %v882
    %v884 = vpop.f32.mrf.mxu0
    %885 = vdwg.mxu0
    %886 = vmatpush.bf16.msra.mxu0 %v611
    %887 = vmatpush.bf16.msra.mxu0 %v603
    %888 = vmatpush.bf16.msra.mxu0 %v595
    %889 = vmatpush.bf16.msra.mxu0 %v587
    %890 = vmatpush.bf16.msra.mxu0 %v579
    %891 = vmatpush.bf16.msra.mxu0 %v571
    %892 = vmatpush.bf16.msra.mxu0 %v563
    %893 = vmatpush.bf16.msra.mxu0 %v555
    %894 = vmatmul.bf16.gmra.mxu0 %v166
    %v895 = vpop.f32.mrf.mxu0
    %v896 = vadd.f32 0.0, %v895
    %v897 = vpop.f32.mrf.mxu0
    %898 = vdwg.mxu0
    %899 = vmatpush.bf16.msra.mxu0 %v675
    %900 = vmatpush.bf16.msra.mxu0 %v667
    %901 = vmatpush.bf16.msra.mxu0 %v659
    %902 = vmatpush.bf16.msra.mxu0 %v651
    %903 = vmatpush.bf16.msra.mxu0 %v643
    %904 = vmatpush.bf16.msra.mxu0 %v635
    %905 = vmatpush.bf16.msra.mxu0 %v627
    %906 = vmatpush.bf16.msra.mxu0 %v619
    %907 = vmatmul.bf16.gmra.mxu0 %v167
    %v908 = vpop.f32.mrf.mxu0
    %v909 = vadd.f32 %v896, %v908
    %v910 = vpop.f32.mrf.mxu0
    %911 = vdwg.mxu0
    %912 = vmatpush.bf16.msra.mxu0 %v612
    %913 = vmatpush.bf16.msra.mxu0 %v604
    %914 = vmatpush.bf16.msra.mxu0 %v596
    %915 = vmatpush.bf16.msra.mxu0 %v588
    %916 = vmatpush.bf16.msra.mxu0 %v580
    %917 = vmatpush.bf16.msra.mxu0 %v572
    %918 = vmatpush.bf16.msra.mxu0 %v564
    %919 = vmatpush.bf16.msra.mxu0 %v556
    %920 = vmatmul.bf16.gmra.mxu0 %v166
    %v921 = vpop.f32.mrf.mxu0
    %v922 = vadd.f32 0.0, %v921
    %v923 = vpop.f32.mrf.mxu0
    %924 = vdwg.mxu0
    %925 = vmatpush.bf16.msra.mxu0 %v676
    %926 = vmatpush.bf16.msra.mxu0 %v668
    %927 = vmatpush.bf16.msra.mxu0 %v660
    %928 = vmatpush.bf16.msra.mxu0 %v652
    %929 = vmatpush.bf16.msra.mxu0 %v644
    %930 = vmatpush.bf16.msra.mxu0 %v636
    %931 = vmatpush.bf16.msra.mxu0 %v628
    %932 = vmatpush.bf16.msra.mxu0 %v620
    %933 = vmatmul.bf16.gmra.mxu0 %v167
    %v934 = vpop.f32.mrf.mxu0
    %v935 = vadd.f32 %v922, %v934
    %v936 = vpop.f32.mrf.mxu0
    %937 = vdwg.mxu0
    %938 = vmatpush.bf16.msra.mxu0 %v613
    %939 = vmatpush.bf16.msra.mxu0 %v605
    %940 = vmatpush.bf16.msra.mxu0 %v597
    %941 = vmatpush.bf16.msra.mxu0 %v589
    %942 = vmatpush.bf16.msra.mxu0 %v581
    %943 = vmatpush.bf16.msra.mxu0 %v573
    %944 = vmatpush.bf16.msra.mxu0 %v565
    %945 = vmatpush.bf16.msra.mxu0 %v557
    %946 = vmatmul.bf16.gmra.mxu0 %v166
    %v947 = vpop.f32.mrf.mxu0
    %v948 = vadd.f32 0.0, %v947
    %v949 = vpop.f32.mrf.mxu0
    %950 = vdwg.mxu0
    %951 = vmatpush.bf16.msra.mxu0 %v677
    %952 = vmatpush.bf16.msra.mxu0 %v669
    %953 = vmatpush.bf16.msra.mxu0 %v661
    %954 = vmatpush.bf16.msra.mxu0 %v653
    %955 = vmatpush.bf16.msra.mxu0 %v645
    %956 = vmatpush.bf16.msra.mxu0 %v637
    %957 = vmatpush.bf16.msra.mxu0 %v629
    %958 = vmatpush.bf16.msra.mxu0 %v621
    %959 = vmatmul.bf16.gmra.mxu0 %v167
    %v960 = vpop.f32.mrf.mxu0
    %v961 = vadd.f32 %v948, %v960
    %v962 = vpop.f32.mrf.mxu0
    %963 = vdwg.mxu0
    %964 = vmatpush.bf16.msra.mxu0 %v614
    %965 = vmatpush.bf16.msra.mxu0 %v606
    %966 = vmatpush.bf16.msra.mxu0 %v598
    %967 = vmatpush.bf16.msra.mxu0 %v590
    %968 = vmatpush.bf16.msra.mxu0 %v582
    %969 = vmatpush.bf16.msra.mxu0 %v574
    %970 = vmatpush.bf16.msra.mxu0 %v566
    %971 = vmatpush.bf16.msra.mxu0 %v558
    %972 = vmatmul.bf16.gmra.mxu0 %v166
    %v973 = vpop.f32.mrf.mxu0
    %v974 = vadd.f32 0.0, %v973
    %v975 = vpop.f32.mrf.mxu0
    %976 = vdwg.mxu0
    %977 = vmatpush.bf16.msra.mxu0 %v678
    %978 = vmatpush.bf16.msra.mxu0 %v670
    %979 = vmatpush.bf16.msra.mxu0 %v662
    %980 = vmatpush.bf16.msra.mxu0 %v654
    %981 = vmatpush.bf16.msra.mxu0 %v646
    %982 = vmatpush.bf16.msra.mxu0 %v638
    %983 = vmatpush.bf16.msra.mxu0 %v630
    %984 = vmatpush.bf16.msra.mxu0 %v622
    %985 = vmatmul.bf16.gmra.mxu0 %v167
    %v986 = vpop.f32.mrf.mxu0
    %v987 = vadd.f32 %v974, %v986
    %v988 = vpop.f32.mrf.mxu0
    %989 = vdwg.mxu0
    %990 = vmatpush.bf16.msra.mxu0 %v615
    %991 = vmatpush.bf16.msra.mxu0 %v607
    %992 = vmatpush.bf16.msra.mxu0 %v599
    %993 = vmatpush.bf16.msra.mxu0 %v591
    %994 = vmatpush.bf16.msra.mxu0 %v583
    %995 = vmatpush.bf16.msra.mxu0 %v575
    %996 = vmatpush.bf16.msra.mxu0 %v567
    %997 = vmatpush.bf16.msra.mxu0 %v559
    %998 = vmatmul.bf16.gmra.mxu0 %v166
    %v999 = vpop.f32.mrf.mxu0
    %v1000 = vadd.f32 0.0, %v999
    %v1001 = vpop.f32.mrf.mxu0
    %1002 = vdwg.mxu0
    %1003 = vmatpush.bf16.msra.mxu0 %v679
    %1004 = vmatpush.bf16.msra.mxu0 %v671
    %1005 = vmatpush.bf16.msra.mxu0 %v663
    %1006 = vmatpush.bf16.msra.mxu0 %v655
    %1007 = vmatpush.bf16.msra.mxu0 %v647
    %1008 = vmatpush.bf16.msra.mxu0 %v639
    %1009 = vmatpush.bf16.msra.mxu0 %v631
    %1010 = vmatpush.bf16.msra.mxu0 %v623
    %1011 = vmatmul.bf16.gmra.mxu0 %v167
    %v1012 = vpop.f32.mrf.mxu0
    %v1013 = vadd.f32 %v1000, %v1012
    %v1014 = vpop.f32.mrf.mxu0
    %1015 = vdwg.mxu0
    %v1016 = vld [vmem:[%s2] sm:$0xff]
    %v1017 = vld [vmem:[%s2 + $0x18] sm:$0xff]
    %1020 = vrot.lane.b32.xlu0 %v1016, 120
    %v1021 = vpop.permute.xlu0 %1020
    %1022 = vrot.lane.b32.xlu0 %v1017, 120
    %v1023 = vpop.permute.xlu0 %1022
    %vm1024 = vcmask 15360
    %v1025 = vsel %vm1024, %v1021, 0
    %v1027 = vsel %vm1024, %v1023, 0
    %vm1029 = vcmask 1041408
    %v1031 = vsel %vm1029, %v883, 0
    %1033 = vmatpush.msra.mxu0 0.0
    %1034 = vmatpush.msra.mxu0 0.0
    %1035 = vmatpush.msra.mxu0 0.0
    %1036 = vmatpush.msra.mxu0 0.0
    %1037 = vmatpush.msra.mxu0 0.0
    %1038 = vmatpush.msra.mxu0 0.0
    %1039 = vmatpush.msra.mxu0 0.0
    %1040 = vmatpush.msra.mxu0 0.0
    %1041 = vmatpush.msra.mxu0 0.0
    %1042 = vmatpush.msra.mxu0 0.0
    %1043 = vmatpush.msra.mxu0 0.0
    %1044 = vmatpush.msra.mxu0 0.0
    %1045 = vmatpush.msra.mxu0 0.0
    %1046 = vmatpush.msra.mxu0 0.0
    %1047 = vmatpush.msra.mxu0 0.0
    %1048 = vmatpush.msra.mxu0 %v1031
    %1049 = vmatmul.f32.gmra.mxu0 %v1025
    %v1050 = vpop.f32.mrf.mxu0
    %v1051 = vadd.f32 0.0, %v1050
    %1052 = vmatmul.f32.gmra.mxu0 %v1027
    %v1053 = vpop.f32.mrf.mxu0
    %v1054 = vadd.f32 0.0, %v1053
    %1055 = vdwg.mxu0
    %v1056 = vsel %vm1024, %v1016, 0
    %v1058 = vsel %vm1024, %v1017, 0
    %v1061 = vsel %vm1029, %v831, 0
    %1063 = vmatpush.msra.mxu0 0.0
    %1064 = vmatpush.msra.mxu0 0.0
    %1065 = vmatpush.msra.mxu0 0.0
    %1066 = vmatpush.msra.mxu0 0.0
    %1067 = vmatpush.msra.mxu0 0.0
    %1068 = vmatpush.msra.mxu0 0.0
    %1069 = vmatpush.msra.mxu0 0.0
    %1070 = vmatpush.msra.mxu0 0.0
    %1071 = vmatpush.msra.mxu0 0.0
    %1072 = vmatpush.msra.mxu0 0.0
    %1073 = vmatpush.msra.mxu0 0.0
    %1074 = vmatpush.msra.mxu0 0.0
    %1075 = vmatpush.msra.mxu0 0.0
    %1076 = vmatpush.msra.mxu0 0.0
    %1077 = vmatpush.msra.mxu0 0.0
    %1078 = vmatpush.msra.mxu0 %v1061
    %1079 = vmatmul.f32.gmra.mxu0 %v1056
    %v1080 = vpop.f32.mrf.mxu0
    %v1081 = vadd.f32 %v1051, %v1080
    %1082 = vmatmul.f32.gmra.mxu0 %v1058
    %v1083 = vpop.f32.mrf.mxu0
    %v1084 = vadd.f32 %v1054, %v1083
    %1085 = vdwg.mxu0
    %1086 = vrot.lane.b32.xlu0 %v1016, 118
    %v1087 = vpop.permute.xlu0 %1086
    %1088 = vrot.lane.b32.xlu0 %v1017, 118
    %v1089 = vpop.permute.xlu0 %1088
    %1090 = vrot.lane.b32.xlu0 %v883, 64
    %v1091 = vpop.permute.xlu0 %1090
    %v1092 = vsel %vm1024, %v1087, 0
    %v1094 = vsel %vm1024, %v1089, 0
    %v1096 = vsel %vm1029, %v1091, 0
    %1098 = vmatpush.msra.mxu0 0.0
    %1099 = vmatpush.msra.mxu0 0.0
    %1100 = vmatpush.msra.mxu0 0.0
    %1101 = vmatpush.msra.mxu0 0.0
    %1102 = vmatpush.msra.mxu0 0.0
    %1103 = vmatpush.msra.mxu0 0.0
    %1104 = vmatpush.msra.mxu0 0.0
    %1105 = vmatpush.msra.mxu0 0.0
    %1106 = vmatpush.msra.mxu0 0.0
    %1107 = vmatpush.msra.mxu0 0.0
    %1108 = vmatpush.msra.mxu0 0.0
    %1109 = vmatpush.msra.mxu0 0.0
    %1110 = vmatpush.msra.mxu0 0.0
    %1111 = vmatpush.msra.mxu0 0.0
    %1112 = vmatpush.msra.mxu0 0.0
    %1113 = vmatpush.msra.mxu0 %v1096
    %1114 = vmatmul.f32.gmra.mxu0 %v1092
    %v1115 = vpop.f32.mrf.mxu0
    %v1116 = vadd.f32 0.0, %v1115
    %1117 = vmatmul.f32.gmra.mxu0 %v1094
    %v1118 = vpop.f32.mrf.mxu0
    %v1119 = vadd.f32 0.0, %v1118
    %1120 = vdwg.mxu0
    %1121 = vrot.lane.b32.xlu0 %v1016, 126
    %v1122 = vpop.permute.xlu0 %1121
    %1123 = vrot.lane.b32.xlu0 %v1017, 126
    %v1124 = vpop.permute.xlu0 %1123
    %1125 = vrot.lane.b32.xlu0 %v831, 64
    %v1126 = vpop.permute.xlu0 %1125
    %v1127 = vsel %vm1024, %v1122, 0
    %v1129 = vsel %vm1024, %v1124, 0
    %v1131 = vsel %vm1029, %v1126, 0
    %1133 = vmatpush.msra.mxu0 0.0
    %1134 = vmatpush.msra.mxu0 0.0
    %1135 = vmatpush.msra.mxu0 0.0
    %1136 = vmatpush.msra.mxu0 0.0
    %1137 = vmatpush.msra.mxu0 0.0
    %1138 = vmatpush.msra.mxu0 0.0
    %1139 = vmatpush.msra.mxu0 0.0
    %1140 = vmatpush.msra.mxu0 0.0
    %1141 = vmatpush.msra.mxu0 0.0
    %1142 = vmatpush.msra.mxu0 0.0
    %1143 = vmatpush.msra.mxu0 0.0
    %1144 = vmatpush.msra.mxu0 0.0
    %1145 = vmatpush.msra.mxu0 0.0
    %1146 = vmatpush.msra.mxu0 0.0
    %1147 = vmatpush.msra.mxu0 0.0
    %1148 = vmatpush.msra.mxu0 %v1131
    %1149 = vmatmul.f32.gmra.mxu0 %v1127
    %v1150 = vpop.f32.mrf.mxu0
    %v1151 = vadd.f32 %v1116, %v1150
    %1152 = vmatmul.f32.gmra.mxu0 %v1129
    %v1153 = vpop.f32.mrf.mxu0
    %v1154 = vadd.f32 %v1119, %v1153
    %1155 = vdwg.mxu0
    %1156 = vrot.lane.b32.xlu0 %v1016, 116
    %v1157 = vpop.permute.xlu0 %1156
    %1158 = vrot.lane.b32.xlu0 %v1017, 116
    %v1159 = vpop.permute.xlu0 %1158
    %v1160 = vsel %vm1024, %v1157, 0
    %v1162 = vsel %vm1024, %v1159, 0
    %v1165 = vsel %vm1029, %v909, 0
    %1167 = vmatpush.msra.mxu0 0.0
    %1168 = vmatpush.msra.mxu0 0.0
    %1169 = vmatpush.msra.mxu0 0.0
    %1170 = vmatpush.msra.mxu0 0.0
    %1171 = vmatpush.msra.mxu0 0.0
    %1172 = vmatpush.msra.mxu0 0.0
    %1173 = vmatpush.msra.mxu0 0.0
    %1174 = vmatpush.msra.mxu0 0.0
    %1175 = vmatpush.msra.mxu0 0.0
    %1176 = vmatpush.msra.mxu0 0.0
    %1177 = vmatpush.msra.mxu0 0.0
    %1178 = vmatpush.msra.mxu0 0.0
    %1179 = vmatpush.msra.mxu0 0.0
    %1180 = vmatpush.msra.mxu0 0.0
    %1181 = vmatpush.msra.mxu0 0.0
    %1182 = vmatpush.msra.mxu0 %v1165
    %1183 = vmatmul.f32.gmra.mxu0 %v1160
    %v1184 = vpop.f32.mrf.mxu0
    %v1185 = vadd.f32 0.0, %v1184
    %1186 = vmatmul.f32.gmra.mxu0 %v1162
    %v1187 = vpop.f32.mrf.mxu0
    %v1188 = vadd.f32 0.0, %v1187
    %1189 = vdwg.mxu0
    %1190 = vrot.lane.b32.xlu0 %v1016, 124
    %v1191 = vpop.permute.xlu0 %1190
    %1192 = vrot.lane.b32.xlu0 %v1017, 124
    %v1193 = vpop.permute.xlu0 %1192
    %v1194 = vsel %vm1024, %v1191, 0
    %v1196 = vsel %vm1024, %v1193, 0
    %v1199 = vsel %vm1029, %v857, 0
    %1201 = vmatpush.msra.mxu0 0.0
    %1202 = vmatpush.msra.mxu0 0.0
    %1203 = vmatpush.msra.mxu0 0.0
    %1204 = vmatpush.msra.mxu0 0.0
    %1205 = vmatpush.msra.mxu0 0.0
    %1206 = vmatpush.msra.mxu0 0.0
    %1207 = vmatpush.msra.mxu0 0.0
    %1208 = vmatpush.msra.mxu0 0.0
    %1209 = vmatpush.msra.mxu0 0.0
    %1210 = vmatpush.msra.mxu0 0.0
    %1211 = vmatpush.msra.mxu0 0.0
    %1212 = vmatpush.msra.mxu0 0.0
    %1213 = vmatpush.msra.mxu0 0.0
    %1214 = vmatpush.msra.mxu0 0.0
    %1215 = vmatpush.msra.mxu0 0.0
    %1216 = vmatpush.msra.mxu0 %v1199
    %1217 = vmatmul.f32.gmra.mxu0 %v1194
    %v1218 = vpop.f32.mrf.mxu0
    %v1219 = vadd.f32 %v1185, %v1218
    %1220 = vmatmul.f32.gmra.mxu0 %v1196
    %v1221 = vpop.f32.mrf.mxu0
    %v1222 = vadd.f32 %v1188, %v1221
    %1223 = vdwg.mxu0
    %1224 = vrot.lane.b32.xlu0 %v1016, 114
    %v1225 = vpop.permute.xlu0 %1224
    %1226 = vrot.lane.b32.xlu0 %v1017, 114
    %v1227 = vpop.permute.xlu0 %1226
    %1228 = vrot.lane.b32.xlu0 %v909, 64
    %v1229 = vpop.permute.xlu0 %1228
    %v1230 = vsel %vm1024, %v1225, 0
    %v1232 = vsel %vm1024, %v1227, 0
    %v1234 = vsel %vm1029, %v1229, 0
    %1236 = vmatpush.msra.mxu0 0.0
    %1237 = vmatpush.msra.mxu0 0.0
    %1238 = vmatpush.msra.mxu0 0.0
    %1239 = vmatpush.msra.mxu0 0.0
    %1240 = vmatpush.msra.mxu0 0.0
    %1241 = vmatpush.msra.mxu0 0.0
    %1242 = vmatpush.msra.mxu0 0.0
    %1243 = vmatpush.msra.mxu0 0.0
    %1244 = vmatpush.msra.mxu0 0.0
    %1245 = vmatpush.msra.mxu0 0.0
    %1246 = vmatpush.msra.mxu0 0.0
    %1247 = vmatpush.msra.mxu0 0.0
    %1248 = vmatpush.msra.mxu0 0.0
    %1249 = vmatpush.msra.mxu0 0.0
    %1250 = vmatpush.msra.mxu0 0.0
    %1251 = vmatpush.msra.mxu0 %v1234
    %1252 = vmatmul.f32.gmra.mxu0 %v1230
    %v1253 = vpop.f32.mrf.mxu0
    %v1254 = vadd.f32 0.0, %v1253
    %1255 = vmatmul.f32.gmra.mxu0 %v1232
    %v1256 = vpop.f32.mrf.mxu0
    %v1257 = vadd.f32 0.0, %v1256
    %1258 = vdwg.mxu0
    %1259 = vrot.lane.b32.xlu0 %v1016, 122
    %v1260 = vpop.permute.xlu0 %1259
    %1261 = vrot.lane.b32.xlu0 %v1017, 122
    %v1262 = vpop.permute.xlu0 %1261
    %1263 = vrot.lane.b32.xlu0 %v857, 64
    %v1264 = vpop.permute.xlu0 %1263
    %v1265 = vsel %vm1024, %v1260, 0
    %v1267 = vsel %vm1024, %v1262, 0
    %v1269 = vsel %vm1029, %v1264, 0
    %1271 = vmatpush.msra.mxu0 0.0
    %1272 = vmatpush.msra.mxu0 0.0
    %1273 = vmatpush.msra.mxu0 0.0
    %1274 = vmatpush.msra.mxu0 0.0
    %1275 = vmatpush.msra.mxu0 0.0
    %1276 = vmatpush.msra.mxu0 0.0
    %1277 = vmatpush.msra.mxu0 0.0
    %1278 = vmatpush.msra.mxu0 0.0
    %1279 = vmatpush.msra.mxu0 0.0
    %1280 = vmatpush.msra.mxu0 0.0
    %1281 = vmatpush.msra.mxu0 0.0
    %1282 = vmatpush.msra.mxu0 0.0
    %1283 = vmatpush.msra.mxu0 0.0
    %1284 = vmatpush.msra.mxu0 0.0
    %1285 = vmatpush.msra.mxu0 0.0
    %1286 = vmatpush.msra.mxu0 %v1269
    %1287 = vmatmul.f32.gmra.mxu0 %v1265
    %v1288 = vpop.f32.mrf.mxu0
    %v1289 = vadd.f32 %v1254, %v1288
    %1290 = vmatmul.f32.gmra.mxu0 %v1267
    %v1291 = vpop.f32.mrf.mxu0
    %v1292 = vadd.f32 %v1257, %v1291
    %1293 = vdwg.mxu0
    %1294 = vrot.lane.b32.xlu0 %v1016, 112
    %v1295 = vpop.permute.xlu0 %1294
    %1296 = vrot.lane.b32.xlu0 %v1017, 112
    %v1297 = vpop.permute.xlu0 %1296
    %v1298 = vsel %vm1024, %v1295, 0
    %v1300 = vsel %vm1024, %v1297, 0
    %v1303 = vsel %vm1029, %v935, 0
    %1305 = vmatpush.msra.mxu0 0.0
    %1306 = vmatpush.msra.mxu0 0.0
    %1307 = vmatpush.msra.mxu0 0.0
    %1308 = vmatpush.msra.mxu0 0.0
    %1309 = vmatpush.msra.mxu0 0.0
    %1310 = vmatpush.msra.mxu0 0.0
    %1311 = vmatpush.msra.mxu0 0.0
    %1312 = vmatpush.msra.mxu0 0.0
    %1313 = vmatpush.msra.mxu0 0.0
    %1314 = vmatpush.msra.mxu0 0.0
    %1315 = vmatpush.msra.mxu0 0.0
    %1316 = vmatpush.msra.mxu0 0.0
    %1317 = vmatpush.msra.mxu0 0.0
    %1318 = vmatpush.msra.mxu0 0.0
    %1319 = vmatpush.msra.mxu0 0.0
    %1320 = vmatpush.msra.mxu0 %v1303
    %1321 = vmatmul.f32.gmra.mxu0 %v1298
    %v1322 = vpop.f32.mrf.mxu0
    %v1323 = vadd.f32 0.0, %v1322
    %1324 = vmatmul.f32.gmra.mxu0 %v1300
    %v1325 = vpop.f32.mrf.mxu0
    %v1326 = vadd.f32 0.0, %v1325
    %1327 = vdwg.mxu0
    %v1328 = vadd.f32 %v1081, %v1323
    %v1329 = vadd.f32 %v1084, %v1326
    %1330 = vrot.lane.b32.xlu0 %v1016, 110
    %v1331 = vpop.permute.xlu0 %1330
    %1332 = vrot.lane.b32.xlu0 %v1017, 110
    %v1333 = vpop.permute.xlu0 %1332
    %1334 = vrot.lane.b32.xlu0 %v935, 64
    %v1335 = vpop.permute.xlu0 %1334
    %v1336 = vsel %vm1024, %v1331, 0
    %v1338 = vsel %vm1024, %v1333, 0
    %v1340 = vsel %vm1029, %v1335, 0
    %1342 = vmatpush.msra.mxu0 0.0
    %1343 = vmatpush.msra.mxu0 0.0
    %1344 = vmatpush.msra.mxu0 0.0
    %1345 = vmatpush.msra.mxu0 0.0
    %1346 = vmatpush.msra.mxu0 0.0
    %1347 = vmatpush.msra.mxu0 0.0
    %1348 = vmatpush.msra.mxu0 0.0
    %1349 = vmatpush.msra.mxu0 0.0
    %1350 = vmatpush.msra.mxu0 0.0
    %1351 = vmatpush.msra.mxu0 0.0
    %1352 = vmatpush.msra.mxu0 0.0
    %1353 = vmatpush.msra.mxu0 0.0
    %1354 = vmatpush.msra.mxu0 0.0
    %1355 = vmatpush.msra.mxu0 0.0
    %1356 = vmatpush.msra.mxu0 0.0
    %1357 = vmatpush.msra.mxu0 %v1340
    %1358 = vmatmul.f32.gmra.mxu0 %v1336
    %v1359 = vpop.f32.mrf.mxu0
    %v1360 = vadd.f32 0.0, %v1359
    %1361 = vmatmul.f32.gmra.mxu0 %v1338
    %v1362 = vpop.f32.mrf.mxu0
    %v1363 = vadd.f32 0.0, %v1362
    %1364 = vdwg.mxu0
    %v1365 = vadd.f32 %v1151, %v1360
    %v1366 = vadd.f32 %v1154, %v1363
    %1367 = vrot.lane.b32.xlu0 %v1016, 108
    %v1368 = vpop.permute.xlu0 %1367
    %1369 = vrot.lane.b32.xlu0 %v1017, 108
    %v1370 = vpop.permute.xlu0 %1369
    %v1371 = vsel %vm1024, %v1368, 0
    %v1373 = vsel %vm1024, %v1370, 0
    %v1376 = vsel %vm1029, %v961, 0
    %1378 = vmatpush.msra.mxu0 0.0
    %1379 = vmatpush.msra.mxu0 0.0
    %1380 = vmatpush.msra.mxu0 0.0
    %1381 = vmatpush.msra.mxu0 0.0
    %1382 = vmatpush.msra.mxu0 0.0
    %1383 = vmatpush.msra.mxu0 0.0
    %1384 = vmatpush.msra.mxu0 0.0
    %1385 = vmatpush.msra.mxu0 0.0
    %1386 = vmatpush.msra.mxu0 0.0
    %1387 = vmatpush.msra.mxu0 0.0
    %1388 = vmatpush.msra.mxu0 0.0
    %1389 = vmatpush.msra.mxu0 0.0
    %1390 = vmatpush.msra.mxu0 0.0
    %1391 = vmatpush.msra.mxu0 0.0
    %1392 = vmatpush.msra.mxu0 0.0
    %1393 = vmatpush.msra.mxu0 %v1376
    %1394 = vmatmul.f32.gmra.mxu0 %v1371
    %v1395 = vpop.f32.mrf.mxu0
    %v1396 = vadd.f32 0.0, %v1395
    %1397 = vmatmul.f32.gmra.mxu0 %v1373
    %v1398 = vpop.f32.mrf.mxu0
    %v1399 = vadd.f32 0.0, %v1398
    %1400 = vdwg.mxu0
    %v1401 = vadd.f32 %v1219, %v1396
    %v1402 = vadd.f32 %v1222, %v1399
    %1403 = vrot.lane.b32.xlu0 %v1016, 106
    %v1404 = vpop.permute.xlu0 %1403
    %1405 = vrot.lane.b32.xlu0 %v1017, 106
    %v1406 = vpop.permute.xlu0 %1405
    %1407 = vrot.lane.b32.xlu0 %v961, 64
    %v1408 = vpop.permute.xlu0 %1407
    %v1409 = vsel %vm1024, %v1404, 0
    %v1411 = vsel %vm1024, %v1406, 0
    %v1413 = vsel %vm1029, %v1408, 0
    %1415 = vmatpush.msra.mxu0 0.0
    %1416 = vmatpush.msra.mxu0 0.0
    %1417 = vmatpush.msra.mxu0 0.0
    %1418 = vmatpush.msra.mxu0 0.0
    %1419 = vmatpush.msra.mxu0 0.0
    %1420 = vmatpush.msra.mxu0 0.0
    %1421 = vmatpush.msra.mxu0 0.0
    %1422 = vmatpush.msra.mxu0 0.0
    %1423 = vmatpush.msra.mxu0 0.0
    %1424 = vmatpush.msra.mxu0 0.0
    %1425 = vmatpush.msra.mxu0 0.0
    %1426 = vmatpush.msra.mxu0 0.0
    %1427 = vmatpush.msra.mxu0 0.0
    %1428 = vmatpush.msra.mxu0 0.0
    %1429 = vmatpush.msra.mxu0 0.0
    %1430 = vmatpush.msra.mxu0 %v1413
    %1431 = vmatmul.f32.gmra.mxu0 %v1409
    %v1432 = vpop.f32.mrf.mxu0
    %v1433 = vadd.f32 0.0, %v1432
    %1434 = vmatmul.f32.gmra.mxu0 %v1411
    %v1435 = vpop.f32.mrf.mxu0
    %v1436 = vadd.f32 0.0, %v1435
    %1437 = vdwg.mxu0
    %v1438 = vadd.f32 %v1289, %v1433
    %v1439 = vadd.f32 %v1292, %v1436
    %1440 = vrot.lane.b32.xlu0 %v1016, 104
    %v1441 = vpop.permute.xlu0 %1440
    %1442 = vrot.lane.b32.xlu0 %v1017, 104
    %v1443 = vpop.permute.xlu0 %1442
    %v1444 = vsel %vm1024, %v1441, 0
    %v1446 = vsel %vm1024, %v1443, 0
    %v1449 = vsel %vm1029, %v987, 0
    %1451 = vmatpush.msra.mxu0 0.0
    %1452 = vmatpush.msra.mxu0 0.0
    %1453 = vmatpush.msra.mxu0 0.0
    %1454 = vmatpush.msra.mxu0 0.0
    %1455 = vmatpush.msra.mxu0 0.0
    %1456 = vmatpush.msra.mxu0 0.0
    %1457 = vmatpush.msra.mxu0 0.0
    %1458 = vmatpush.msra.mxu0 0.0
    %1459 = vmatpush.msra.mxu0 0.0
    %1460 = vmatpush.msra.mxu0 0.0
    %1461 = vmatpush.msra.mxu0 0.0
    %1462 = vmatpush.msra.mxu0 0.0
    %1463 = vmatpush.msra.mxu0 0.0
    %1464 = vmatpush.msra.mxu0 0.0
    %1465 = vmatpush.msra.mxu0 0.0
    %1466 = vmatpush.msra.mxu0 %v1449
    %1467 = vmatmul.f32.gmra.mxu0 %v1444
    %v1468 = vpop.f32.mrf.mxu0
    %v1469 = vadd.f32 0.0, %v1468
    %1470 = vmatmul.f32.gmra.mxu0 %v1446
    %v1471 = vpop.f32.mrf.mxu0
    %v1472 = vadd.f32 0.0, %v1471
    %1473 = vdwg.mxu0
    %v1474 = vadd.f32 %v1328, %v1469
    %v1475 = vadd.f32 %v1329, %v1472
    %1476 = vrot.lane.b32.xlu0 %v1016, 102
    %v1477 = vpop.permute.xlu0 %1476
    %1478 = vrot.lane.b32.xlu0 %v1017, 102
    %v1479 = vpop.permute.xlu0 %1478
    %1480 = vrot.lane.b32.xlu0 %v987, 64
    %v1481 = vpop.permute.xlu0 %1480
    %v1482 = vsel %vm1024, %v1477, 0
    %v1484 = vsel %vm1024, %v1479, 0
    %v1486 = vsel %vm1029, %v1481, 0
    %1488 = vmatpush.msra.mxu0 0.0
    %1489 = vmatpush.msra.mxu0 0.0
    %1490 = vmatpush.msra.mxu0 0.0
    %1491 = vmatpush.msra.mxu0 0.0
    %1492 = vmatpush.msra.mxu0 0.0
    %1493 = vmatpush.msra.mxu0 0.0
    %1494 = vmatpush.msra.mxu0 0.0
    %1495 = vmatpush.msra.mxu0 0.0
    %1496 = vmatpush.msra.mxu0 0.0
    %1497 = vmatpush.msra.mxu0 0.0
    %1498 = vmatpush.msra.mxu0 0.0
    %1499 = vmatpush.msra.mxu0 0.0
    %1500 = vmatpush.msra.mxu0 0.0
    %1501 = vmatpush.msra.mxu0 0.0
    %1502 = vmatpush.msra.mxu0 0.0
    %1503 = vmatpush.msra.mxu0 %v1486
    %1504 = vmatmul.f32.gmra.mxu0 %v1482
    %v1505 = vpop.f32.mrf.mxu0
    %v1506 = vadd.f32 0.0, %v1505
    %1507 = vmatmul.f32.gmra.mxu0 %v1484
    %v1508 = vpop.f32.mrf.mxu0
    %v1509 = vadd.f32 0.0, %v1508
    %1510 = vdwg.mxu0
    %v1511 = vadd.f32 %v1365, %v1506
    %v1512 = vadd.f32 %v1366, %v1509
    %1513 = vrot.lane.b32.xlu0 %v1016, 100
    %v1514 = vpop.permute.xlu0 %1513
    %1515 = vrot.lane.b32.xlu0 %v1017, 100
    %v1516 = vpop.permute.xlu0 %1515
    %v1517 = vsel %vm1024, %v1514, 0
    %v1519 = vsel %vm1024, %v1516, 0
    %v1522 = vsel %vm1029, %v1013, 0
    %1524 = vmatpush.msra.mxu0 0.0
    %1525 = vmatpush.msra.mxu0 0.0
    %1526 = vmatpush.msra.mxu0 0.0
    %1527 = vmatpush.msra.mxu0 0.0
    %1528 = vmatpush.msra.mxu0 0.0
    %1529 = vmatpush.msra.mxu0 0.0
    %1530 = vmatpush.msra.mxu0 0.0
    %1531 = vmatpush.msra.mxu0 0.0
    %1532 = vmatpush.msra.mxu0 0.0
    %1533 = vmatpush.msra.mxu0 0.0
    %1534 = vmatpush.msra.mxu0 0.0
    %1535 = vmatpush.msra.mxu0 0.0
    %1536 = vmatpush.msra.mxu0 0.0
    %1537 = vmatpush.msra.mxu0 0.0
    %1538 = vmatpush.msra.mxu0 0.0
    %1539 = vmatpush.msra.mxu0 %v1522
    %1540 = vmatmul.f32.gmra.mxu0 %v1517
    %v1541 = vpop.f32.mrf.mxu0
    %v1542 = vadd.f32 0.0, %v1541
    %1543 = vmatmul.f32.gmra.mxu0 %v1519
    %v1544 = vpop.f32.mrf.mxu0
    %v1545 = vadd.f32 0.0, %v1544
    %1546 = vdwg.mxu0
    %v1547 = vadd.f32 %v1401, %v1542
    %v1548 = vadd.f32 %v1402, %v1545
    %1549 = vrot.lane.b32.xlu0 %v1016, 98
    %v1550 = vpop.permute.xlu0 %1549
    %1551 = vrot.lane.b32.xlu0 %v1017, 98
    %v1552 = vpop.permute.xlu0 %1551
    %1553 = vrot.lane.b32.xlu0 %v1013, 64
    %v1554 = vpop.permute.xlu0 %1553
    %v1555 = vsel %vm1024, %v1550, 0
    %v1557 = vsel %vm1024, %v1552, 0
    %v1559 = vsel %vm1029, %v1554, 0
    %1561 = vmatpush.msra.mxu0 0.0
    %1562 = vmatpush.msra.mxu0 0.0
    %1563 = vmatpush.msra.mxu0 0.0
    %1564 = vmatpush.msra.mxu0 0.0
    %1565 = vmatpush.msra.mxu0 0.0
    %1566 = vmatpush.msra.mxu0 0.0
    %1567 = vmatpush.msra.mxu0 0.0
    %1568 = vmatpush.msra.mxu0 0.0
    %1569 = vmatpush.msra.mxu0 0.0
    %1570 = vmatpush.msra.mxu0 0.0
    %1571 = vmatpush.msra.mxu0 0.0
    %1572 = vmatpush.msra.mxu0 0.0
    %1573 = vmatpush.msra.mxu0 0.0
    %1574 = vmatpush.msra.mxu0 0.0
    %1575 = vmatpush.msra.mxu0 0.0
    %1576 = vmatpush.msra.mxu0 %v1559
    %1577 = vmatmul.f32.gmra.mxu0 %v1555
    %v1578 = vpop.f32.mrf.mxu0
    %v1579 = vadd.f32 0.0, %v1578
    %1580 = vmatmul.f32.gmra.mxu0 %v1557
    %v1581 = vpop.f32.mrf.mxu0
    %v1582 = vadd.f32 0.0, %v1581
    %1583 = vdwg.mxu0
    %v1584 = vadd.f32 %v1438, %v1579
    %v1585 = vadd.f32 %v1439, %v1582
    %v1586 = vadd.f32 %v1474, %v1511
    %v1587 = vadd.f32 %v1475, %v1512
    %v1588 = vadd.f32 %v1547, %v1584
    %v1589 = vadd.f32 %v1548, %v1585
    %v1590 = vadd.f32 %v1586, %v1588
    %v1591 = vadd.f32 %v1587, %v1589
    %v1592 = vld [vmem:[%s2 + $0x150] sm:$0xff]
    %v1593 = vld [vmem:[%s2 + $0x168] sm:$0xff]
    %1595 = vset.pattern.permute.xlu0 0
    %1596 = vperm.xlu0 %1595, %v1592
    %v1597 = vpop.permute.xlu0 %1596
    %1600 = vset.pattern.permute.xlu0 0
    %1601 = vperm.xlu0 %1600, %v1593
    %v1602 = vpop.permute.xlu0 %1601
    %v1604 = vadd.f32 %v1590, %v1597
    %v1605 = vadd.f32 %v1591, %v1602
    %v1606 = vmax.f32 %v1604, 0.0
    %v1607 = vmax.f32 %v1605, 0.0
    %v1608 = vld [vmem:[#allocation2 + $0x400] sm:$0xff]
    %v1609 = vld [vmem:[#allocation2 + $0x420] sm:$0xff]
    %v1610 = vld [vmem:[#allocation2 + $0x440] sm:$0xff]
    %v1611 = vld [vmem:[#allocation2 + $0x460] sm:$0xff]
    %v1612 = vld [vmem:[#allocation2 + $0x480] sm:$0xff]
    %v1613 = vld [vmem:[#allocation2 + $0x4a0] sm:$0xff]
    %v1614 = vld [vmem:[#allocation2 + $0x4c0] sm:$0xff]
    %v1615 = vld [vmem:[#allocation2 + $0x4e0] sm:$0xff]
    %v1616 = vunpack.c.l.bf16 %v1608
    %v1617 = vunpack.c.h.bf16 %v1608
    %v1618 = vunpack.c.l.bf16 %v1609
    %v1619 = vunpack.c.h.bf16 %v1609
    %v1620 = vunpack.c.l.bf16 %v1610
    %v1621 = vunpack.c.h.bf16 %v1610
    %v1622 = vunpack.c.l.bf16 %v1611
    %v1623 = vunpack.c.h.bf16 %v1611
    %v1624 = vunpack.c.l.bf16 %v1612
    %v1625 = vunpack.c.h.bf16 %v1612
    %v1626 = vunpack.c.l.bf16 %v1613
    %v1627 = vunpack.c.h.bf16 %v1613
    %v1628 = vunpack.c.l.bf16 %v1614
    %v1629 = vunpack.c.h.bf16 %v1614
    %v1630 = vunpack.c.l.bf16 %v1615
    %v1631 = vunpack.c.h.bf16 %v1615
    %vm1632 = vcmask 523264
    %v1634 = vsel %vm1632, %v1606, 0
    %v1637 = vsel %vm1632, %v1607, 0
    %1639 = vmatpush.msra.mxu0 0.0
    %1640 = vmatpush.msra.mxu0 0.0
    %1641 = vmatpush.msra.mxu0 0.0
    %1642 = vmatpush.msra.mxu0 0.0
    %1643 = vmatpush.msra.mxu0 0.0
    %1644 = vmatpush.msra.mxu0 0.0
    %1645 = vmatpush.msra.mxu0 0.0
    %1646 = vmatpush.msra.mxu0 0.0
    %1647 = vmatpush.msra.mxu0 %v1630
    %1648 = vmatpush.msra.mxu0 %v1628
    %1649 = vmatpush.msra.mxu0 %v1626
    %1650 = vmatpush.msra.mxu0 %v1624
    %1651 = vmatpush.msra.mxu0 %v1622
    %1652 = vmatpush.msra.mxu0 %v1620
    %1653 = vmatpush.msra.mxu0 %v1618
    %1654 = vmatpush.msra.mxu0 %v1616
    %1655 = vmatmul.f32.gmra.mxu0 %v1634
    %v1656 = vpop.f32.mrf.mxu0
    %v1657 = vadd.f32 0.0, %v1656
    %1658 = vmatmul.f32.gmra.mxu0 %v1637
    %v1659 = vpop.f32.mrf.mxu0
    %v1660 = vadd.f32 0.0, %v1659
    %1661 = vdwg.mxu0
    %1662 = vmatpush.msra.mxu0 0.0
    %1663 = vmatpush.msra.mxu0 0.0
    %1664 = vmatpush.msra.mxu0 0.0
    %1665 = vmatpush.msra.mxu0 0.0
    %1666 = vmatpush.msra.mxu0 0.0
    %1667 = vmatpush.msra.mxu0 0.0
    %1668 = vmatpush.msra.mxu0 0.0
    %1669 = vmatpush.msra.mxu0 0.0
    %1670 = vmatpush.msra.mxu0 %v1631
    %1671 = vmatpush.msra.mxu0 %v1629
    %1672 = vmatpush.msra.mxu0 %v1627
    %1673 = vmatpush.msra.mxu0 %v1625
    %1674 = vmatpush.msra.mxu0 %v1623
    %1675 = vmatpush.msra.mxu0 %v1621
    %1676 = vmatpush.msra.mxu0 %v1619
    %1677 = vmatpush.msra.mxu0 %v1617
    %1678 = vmatmul.f32.gmra.mxu0 %v1634
    %v1679 = vpop.f32.mrf.mxu0
    %v1680 = vadd.f32 0.0, %v1679
    %1681 = vmatmul.f32.gmra.mxu0 %v1637
    %v1682 = vpop.f32.mrf.mxu0
    %v1683 = vadd.f32 0.0, %v1682
    %1684 = vdwg.mxu0
    %v1685 = vld [vmem:[%s2 + $0x30] sm:$0xff]
    %v1686 = vld [vmem:[%s2 + $0x38] sm:$0xff]
    %v1687 = vld [vmem:[%s2 + $0x48] sm:$0xff]
    %v1688 = vld [vmem:[%s2 + $0x50] sm:$0xff]
    %v1689 = vld [vmem:[%s2 + $0x60] sm:$0xff]
    %v1690 = vld [vmem:[%s2 + $0x68] sm:$0xff]
    %v1691 = vld [vmem:[%s2 + $0x78] sm:$0xff]
    %v1692 = vld [vmem:[%s2 + $0x80] sm:$0xff]
    %1697 = vrot.lane.b32.xlu0 %v1685, 64
    %v1698 = vpop.permute.xlu0 %1697
    %1699 = vrot.lane.b32.xlu0 %v1687, 64
    %v1700 = vpop.permute.xlu0 %1699
    %1701 = vrot.lane.b32.xlu0 %v1689, 64
    %v1702 = vpop.permute.xlu0 %1701
    %1703 = vrot.lane.b32.xlu0 %v1691, 64
    %v1704 = vpop.permute.xlu0 %1703
    %1707 = vrot.lane.b32.xlu0 %v1657, 64
    %v1708 = vpop.permute.xlu0 %1707
    %1709 = vrot.lane.b32.xlu0 %v1660, 64
    %v1710 = vpop.permute.xlu0 %1709
    %vm1713 = vcmask 130048
    %v1714 = vsel %vm1713, %v1698, 0
    %v1716 = vsel %vm1713, %v1700, 0
    %v1718 = vsel %vm1713, %v1702, 0
    %v1720 = vsel %vm1713, %v1704, 0
    %1722 = vmatpush.msra.mxu0 0.0
    %1723 = vmatpush.msra.mxu0 0.0
    %1724 = vmatpush.msra.mxu0 0.0
    %1725 = vmatpush.msra.mxu0 0.0
    %1726 = vmatpush.msra.mxu0 0.0
    %1727 = vmatpush.msra.mxu0 0.0
    %1728 = vmatpush.msra.mxu0 0.0
    %1729 = vmatpush.msra.mxu0 0.0
    %1730 = vmatpush.msra.mxu0 0.0
    %1731 = vmatpush.msra.mxu0 0.0
    %1732 = vmatpush.msra.mxu0 0.0
    %1733 = vmatpush.msra.mxu0 0.0
    %1734 = vmatpush.msra.mxu0 0.0
    %1735 = vmatpush.msra.mxu0 0.0
    %1736 = vmatpush.msra.mxu0 %v1710
    %1737 = vmatpush.msra.mxu0 %v1708
    %1738 = vmatmul.f32.gmra.mxu0 %v1714
    %v1739 = vpop.f32.mrf.mxu0
    %v1740 = vadd.f32 0.0, %v1739
    %1741 = vmatmul.f32.gmra.mxu0 %v1716
    %v1742 = vpop.f32.mrf.mxu0
    %v1743 = vadd.f32 0.0, %v1742
    %1744 = vmatmul.f32.gmra.mxu0 %v1718
    %v1745 = vpop.f32.mrf.mxu0
    %v1746 = vadd.f32 0.0, %v1745
    %1747 = vmatmul.f32.gmra.mxu0 %v1720
    %v1748 = vpop.f32.mrf.mxu0
    %v1749 = vadd.f32 0.0, %v1748
    %1750 = vdwg.mxu0
    %v1751 = vsel %vm1713, %v1685, 0
    %v1753 = vsel %vm1713, %v1687, 0
    %v1755 = vsel %vm1713, %v1689, 0
    %v1757 = vsel %vm1713, %v1691, 0
    %1759 = vmatpush.msra.mxu0 0.0
    %1760 = vmatpush.msra.mxu0 0.0
    %1761 = vmatpush.msra.mxu0 0.0
    %1762 = vmatpush.msra.mxu0 0.0
    %1763 = vmatpush.msra.mxu0 0.0
    %1764 = vmatpush.msra.mxu0 0.0
    %1765 = vmatpush.msra.mxu0 0.0
    %1766 = vmatpush.msra.mxu0 0.0
    %1767 = vmatpush.msra.mxu0 0.0
    %1768 = vmatpush.msra.mxu0 0.0
    %1769 = vmatpush.msra.mxu0 0.0
    %1770 = vmatpush.msra.mxu0 0.0
    %1771 = vmatpush.msra.mxu0 0.0
    %1772 = vmatpush.msra.mxu0 0.0
    %1773 = vmatpush.msra.mxu0 %v1660
    %1774 = vmatpush.msra.mxu0 %v1657
    %1775 = vmatmul.f32.gmra.mxu0 %v1751
    %v1776 = vpop.f32.mrf.mxu0
    %v1777 = vadd.f32 %v1740, %v1776
    %1778 = vmatmul.f32.gmra.mxu0 %v1753
    %v1779 = vpop.f32.mrf.mxu0
    %v1780 = vadd.f32 %v1743, %v1779
    %1781 = vmatmul.f32.gmra.mxu0 %v1755
    %v1782 = vpop.f32.mrf.mxu0
    %v1783 = vadd.f32 %v1746, %v1782
    %1784 = vmatmul.f32.gmra.mxu0 %v1757
    %v1785 = vpop.f32.mrf.mxu0
    %v1786 = vadd.f32 %v1749, %v1785
    %1787 = vdwg.mxu0
    %1788 = vrot.lane.b32.xlu0 %v1685, 48
    %v1789 = vpop.permute.xlu0 %1788
    %1790 = vrot.lane.b32.xlu0 %v1687, 48
    %v1791 = vpop.permute.xlu0 %1790
    %1792 = vrot.lane.b32.xlu0 %v1689, 48
    %v1793 = vpop.permute.xlu0 %1792
    %1794 = vrot.lane.b32.xlu0 %v1691, 48
    %v1795 = vpop.permute.xlu0 %1794
    %1796 = vrot.lane.b32.xlu0 %v1657, 48
    %v1797 = vpop.permute.xlu0 %1796
    %1798 = vrot.lane.b32.xlu0 %v1660, 48
    %v1799 = vpop.permute.xlu0 %1798
    %v1802 = vsel %vm1713, %v1789, 0
    %v1804 = vsel %vm1713, %v1791, 0
    %v1806 = vsel %vm1713, %v1793, 0
    %v1808 = vsel %vm1713, %v1795, 0
    %1810 = vmatpush.msra.mxu0 0.0
    %1811 = vmatpush.msra.mxu0 0.0
    %1812 = vmatpush.msra.mxu0 0.0
    %1813 = vmatpush.msra.mxu0 0.0
    %1814 = vmatpush.msra.mxu0 0.0
    %1815 = vmatpush.msra.mxu0 0.0
    %1816 = vmatpush.msra.mxu0 0.0
    %1817 = vmatpush.msra.mxu0 0.0
    %1818 = vmatpush.msra.mxu0 0.0
    %1819 = vmatpush.msra.mxu0 0.0
    %1820 = vmatpush.msra.mxu0 0.0
    %1821 = vmatpush.msra.mxu0 0.0
    %1822 = vmatpush.msra.mxu0 0.0
    %1823 = vmatpush.msra.mxu0 0.0
    %1824 = vmatpush.msra.mxu0 %v1799
    %1825 = vmatpush.msra.mxu0 %v1797
    %1826 = vmatmul.f32.gmra.mxu0 %v1802
    %v1827 = vpop.f32.mrf.mxu0
    %v1828 = vadd.f32 0.0, %v1827
    %1829 = vmatmul.f32.gmra.mxu0 %v1804
    %v1830 = vpop.f32.mrf.mxu0
    %v1831 = vadd.f32 0.0, %v1830
    %1832 = vmatmul.f32.gmra.mxu0 %v1806
    %v1833 = vpop.f32.mrf.mxu0
    %v1834 = vadd.f32 0.0, %v1833
    %1835 = vmatmul.f32.gmra.mxu0 %v1808
    %v1836 = vpop.f32.mrf.mxu0
    %v1837 = vadd.f32 0.0, %v1836
    %1838 = vdwg.mxu0
    %1839 = vrot.lane.b32.xlu0 %v1685, 112
    %v1840 = vpop.permute.xlu0 %1839
    %1841 = vrot.lane.b32.xlu0 %v1687, 112
    %v1842 = vpop.permute.xlu0 %1841
    %1843 = vrot.lane.b32.xlu0 %v1689, 112
    %v1844 = vpop.permute.xlu0 %1843
    %1845 = vrot.lane.b32.xlu0 %v1691, 112
    %v1846 = vpop.permute.xlu0 %1845
    %1847 = vrot.lane.b32.xlu0 %v1657, 112
    %v1848 = vpop.permute.xlu0 %1847
    %1849 = vrot.lane.b32.xlu0 %v1660, 112
    %v1850 = vpop.permute.xlu0 %1849
    %v1853 = vsel %vm1713, %v1840, 0
    %v1855 = vsel %vm1713, %v1842, 0
    %v1857 = vsel %vm1713, %v1844, 0
    %v1859 = vsel %vm1713, %v1846, 0
    %1861 = vmatpush.msra.mxu0 0.0
    %1862 = vmatpush.msra.mxu0 0.0
    %1863 = vmatpush.msra.mxu0 0.0
    %1864 = vmatpush.msra.mxu0 0.0
    %1865 = vmatpush.msra.mxu0 0.0
    %1866 = vmatpush.msra.mxu0 0.0
    %1867 = vmatpush.msra.mxu0 0.0
    %1868 = vmatpush.msra.mxu0 0.0
    %1869 = vmatpush.msra.mxu0 0.0
    %1870 = vmatpush.msra.mxu0 0.0
    %1871 = vmatpush.msra.mxu0 0.0
    %1872 = vmatpush.msra.mxu0 0.0
    %1873 = vmatpush.msra.mxu0 0.0
    %1874 = vmatpush.msra.mxu0 0.0
    %1875 = vmatpush.msra.mxu0 %v1850
    %1876 = vmatpush.msra.mxu0 %v1848
    %1877 = vmatmul.f32.gmra.mxu0 %v1853
    %v1878 = vpop.f32.mrf.mxu0
    %v1879 = vadd.f32 %v1828, %v1878
    %1880 = vmatmul.f32.gmra.mxu0 %v1855
    %v1881 = vpop.f32.mrf.mxu0
    %v1882 = vadd.f32 %v1831, %v1881
    %1883 = vmatmul.f32.gmra.mxu0 %v1857
    %v1884 = vpop.f32.mrf.mxu0
    %v1885 = vadd.f32 %v1834, %v1884
    %1886 = vmatmul.f32.gmra.mxu0 %v1859
    %v1887 = vpop.f32.mrf.mxu0
    %v1888 = vadd.f32 %v1837, %v1887
    %1889 = vdwg.mxu0
    %1890 = vrot.lane.b32.xlu0 %v1685, 32
    %v1891 = vpop.permute.xlu0 %1890
    %1892 = vrot.lane.b32.xlu0 %v1687, 32
    %v1893 = vpop.permute.xlu0 %1892
    %1894 = vrot.lane.b32.xlu0 %v1689, 32
    %v1895 = vpop.permute.xlu0 %1894
    %1896 = vrot.lane.b32.xlu0 %v1691, 32
    %v1897 = vpop.permute.xlu0 %1896
    %1898 = vrot.lane.b32.xlu0 %v1657, 32
    %v1899 = vpop.permute.xlu0 %1898
    %1900 = vrot.lane.b32.xlu0 %v1660, 32
    %v1901 = vpop.permute.xlu0 %1900
    %v1904 = vsel %vm1713, %v1891, 0
    %v1906 = vsel %vm1713, %v1893, 0
    %v1908 = vsel %vm1713, %v1895, 0
    %v1910 = vsel %vm1713, %v1897, 0
    %1912 = vmatpush.msra.mxu0 0.0
    %1913 = vmatpush.msra.mxu0 0.0
    %1914 = vmatpush.msra.mxu0 0.0
    %1915 = vmatpush.msra.mxu0 0.0
    %1916 = vmatpush.msra.mxu0 0.0
    %1917 = vmatpush.msra.mxu0 0.0
    %1918 = vmatpush.msra.mxu0 0.0
    %1919 = vmatpush.msra.mxu0 0.0
    %1920 = vmatpush.msra.mxu0 0.0
    %1921 = vmatpush.msra.mxu0 0.0
    %1922 = vmatpush.msra.mxu0 0.0
    %1923 = vmatpush.msra.mxu0 0.0
    %1924 = vmatpush.msra.mxu0 0.0
    %1925 = vmatpush.msra.mxu0 0.0
    %1926 = vmatpush.msra.mxu0 %v1901
    %1927 = vmatpush.msra.mxu0 %v1899
    %1928 = vmatmul.f32.gmra.mxu0 %v1904
    %v1929 = vpop.f32.mrf.mxu0
    %v1930 = vadd.f32 0.0, %v1929
    %1931 = vmatmul.f32.gmra.mxu0 %v1906
    %v1932 = vpop.f32.mrf.mxu0
    %v1933 = vadd.f32 0.0, %v1932
    %1934 = vmatmul.f32.gmra.mxu0 %v1908
    %v1935 = vpop.f32.mrf.mxu0
    %v1936 = vadd.f32 0.0, %v1935
    %1937 = vmatmul.f32.gmra.mxu0 %v1910
    %v1938 = vpop.f32.mrf.mxu0
    %v1939 = vadd.f32 0.0, %v1938
    %1940 = vdwg.mxu0
    %1941 = vrot.lane.b32.xlu0 %v1685, 96
    %v1942 = vpop.permute.xlu0 %1941
    %1943 = vrot.lane.b32.xlu0 %v1687, 96
    %v1944 = vpop.permute.xlu0 %1943
    %1945 = vrot.lane.b32.xlu0 %v1689, 96
    %v1946 = vpop.permute.xlu0 %1945
    %1947 = vrot.lane.b32.xlu0 %v1691, 96
    %v1948 = vpop.permute.xlu0 %1947
    %1949 = vrot.lane.b32.xlu0 %v1657, 96
    %v1950 = vpop.permute.xlu0 %1949
    %1951 = vrot.lane.b32.xlu0 %v1660, 96
    %v1952 = vpop.permute.xlu0 %1951
    %v1955 = vsel %vm1713, %v1942, 0
    %v1957 = vsel %vm1713, %v1944, 0
    %v1959 = vsel %vm1713, %v1946, 0
    %v1961 = vsel %vm1713, %v1948, 0
    %1963 = vmatpush.msra.mxu0 0.0
    %1964 = vmatpush.msra.mxu0 0.0
    %1965 = vmatpush.msra.mxu0 0.0
    %1966 = vmatpush.msra.mxu0 0.0
    %1967 = vmatpush.msra.mxu0 0.0
    %1968 = vmatpush.msra.mxu0 0.0
    %1969 = vmatpush.msra.mxu0 0.0
    %1970 = vmatpush.msra.mxu0 0.0
    %1971 = vmatpush.msra.mxu0 0.0
    %1972 = vmatpush.msra.mxu0 0.0
    %1973 = vmatpush.msra.mxu0 0.0
    %1974 = vmatpush.msra.mxu0 0.0
    %1975 = vmatpush.msra.mxu0 0.0
    %1976 = vmatpush.msra.mxu0 0.0
    %1977 = vmatpush.msra.mxu0 %v1952
    %1978 = vmatpush.msra.mxu0 %v1950
    %1979 = vmatmul.f32.gmra.mxu0 %v1955
    %v1980 = vpop.f32.mrf.mxu0
    %v1981 = vadd.f32 %v1930, %v1980
    %1982 = vmatmul.f32.gmra.mxu0 %v1957
    %v1983 = vpop.f32.mrf.mxu0
    %v1984 = vadd.f32 %v1933, %v1983
    %1985 = vmatmul.f32.gmra.mxu0 %v1959
    %v1986 = vpop.f32.mrf.mxu0
    %v1987 = vadd.f32 %v1936, %v1986
    %1988 = vmatmul.f32.gmra.mxu0 %v1961
    %v1989 = vpop.f32.mrf.mxu0
    %v1990 = vadd.f32 %v1939, %v1989
    %1991 = vdwg.mxu0
    %1992 = vrot.lane.b32.xlu0 %v1685, 16
    %v1993 = vpop.permute.xlu0 %1992
    %1994 = vrot.lane.b32.xlu0 %v1687, 16
    %v1995 = vpop.permute.xlu0 %1994
    %1996 = vrot.lane.b32.xlu0 %v1689, 16
    %v1997 = vpop.permute.xlu0 %1996
    %1998 = vrot.lane.b32.xlu0 %v1691, 16
    %v1999 = vpop.permute.xlu0 %1998
    %2000 = vrot.lane.b32.xlu0 %v1657, 16
    %v2001 = vpop.permute.xlu0 %2000
    %2002 = vrot.lane.b32.xlu0 %v1660, 16
    %v2003 = vpop.permute.xlu0 %2002
    %v2006 = vsel %vm1713, %v1993, 0
    %v2008 = vsel %vm1713, %v1995, 0
    %v2010 = vsel %vm1713, %v1997, 0
    %v2012 = vsel %vm1713, %v1999, 0
    %2014 = vmatpush.msra.mxu0 0.0
    %2015 = vmatpush.msra.mxu0 0.0
    %2016 = vmatpush.msra.mxu0 0.0
    %2017 = vmatpush.msra.mxu0 0.0
    %2018 = vmatpush.msra.mxu0 0.0
    %2019 = vmatpush.msra.mxu0 0.0
    %2020 = vmatpush.msra.mxu0 0.0
    %2021 = vmatpush.msra.mxu0 0.0
    %2022 = vmatpush.msra.mxu0 0.0
    %2023 = vmatpush.msra.mxu0 0.0
    %2024 = vmatpush.msra.mxu0 0.0
    %2025 = vmatpush.msra.mxu0 0.0
    %2026 = vmatpush.msra.mxu0 0.0
    %2027 = vmatpush.msra.mxu0 0.0
    %2028 = vmatpush.msra.mxu0 %v2003
    %2029 = vmatpush.msra.mxu0 %v2001
    %2030 = vmatmul.f32.gmra.mxu0 %v2006
    %v2031 = vpop.f32.mrf.mxu0
    %v2032 = vadd.f32 0.0, %v2031
    %2033 = vmatmul.f32.gmra.mxu0 %v2008
    %v2034 = vpop.f32.mrf.mxu0
    %v2035 = vadd.f32 0.0, %v2034
    %2036 = vmatmul.f32.gmra.mxu0 %v2010
    %v2037 = vpop.f32.mrf.mxu0
    %v2038 = vadd.f32 0.0, %v2037
    %2039 = vmatmul.f32.gmra.mxu0 %v2012
    %v2040 = vpop.f32.mrf.mxu0
    %v2041 = vadd.f32 0.0, %v2040
    %2042 = vdwg.mxu0
    %2043 = vrot.lane.b32.xlu0 %v1685, 80
    %v2044 = vpop.permute.xlu0 %2043
    %2045 = vrot.lane.b32.xlu0 %v1687, 80
    %v2046 = vpop.permute.xlu0 %2045
    %2047 = vrot.lane.b32.xlu0 %v1689, 80
    %v2048 = vpop.permute.xlu0 %2047
    %2049 = vrot.lane.b32.xlu0 %v1691, 80
    %v2050 = vpop.permute.xlu0 %2049
    %2051 = vrot.lane.b32.xlu0 %v1657, 80
    %v2052 = vpop.permute.xlu0 %2051
    %2053 = vrot.lane.b32.xlu0 %v1660, 80
    %v2054 = vpop.permute.xlu0 %2053
    %v2057 = vsel %vm1713, %v2044, 0
    %v2059 = vsel %vm1713, %v2046, 0
    %v2061 = vsel %vm1713, %v2048, 0
    %v2063 = vsel %vm1713, %v2050, 0
    %2065 = vmatpush.msra.mxu0 0.0
    %2066 = vmatpush.msra.mxu0 0.0
    %2067 = vmatpush.msra.mxu0 0.0
    %2068 = vmatpush.msra.mxu0 0.0
    %2069 = vmatpush.msra.mxu0 0.0
    %2070 = vmatpush.msra.mxu0 0.0
    %2071 = vmatpush.msra.mxu0 0.0
    %2072 = vmatpush.msra.mxu0 0.0
    %2073 = vmatpush.msra.mxu0 0.0
    %2074 = vmatpush.msra.mxu0 0.0
    %2075 = vmatpush.msra.mxu0 0.0
    %2076 = vmatpush.msra.mxu0 0.0
    %2077 = vmatpush.msra.mxu0 0.0
    %2078 = vmatpush.msra.mxu0 0.0
    %2079 = vmatpush.msra.mxu0 %v2054
    %2080 = vmatpush.msra.mxu0 %v2052
    %2081 = vmatmul.f32.gmra.mxu0 %v2057
    %v2082 = vpop.f32.mrf.mxu0
    %v2083 = vadd.f32 %v2032, %v2082
    %2084 = vmatmul.f32.gmra.mxu0 %v2059
    %v2085 = vpop.f32.mrf.mxu0
    %v2086 = vadd.f32 %v2035, %v2085
    %2087 = vmatmul.f32.gmra.mxu0 %v2061
    %v2088 = vpop.f32.mrf.mxu0
    %v2089 = vadd.f32 %v2038, %v2088
    %2090 = vmatmul.f32.gmra.mxu0 %v2063
    %v2091 = vpop.f32.mrf.mxu0
    %v2092 = vadd.f32 %v2041, %v2091
    %2093 = vdwg.mxu0
    %v2095 = vsel %vm1713, %v1686, 0
    %v2098 = vsel %vm1713, %v1688, 0
    %v2101 = vsel %vm1713, %v1690, 0
    %v2104 = vsel %vm1713, %v1692, 0
    %2106 = vmatpush.msra.mxu0 0.0
    %2107 = vmatpush.msra.mxu0 0.0
    %2108 = vmatpush.msra.mxu0 0.0
    %2109 = vmatpush.msra.mxu0 0.0
    %2110 = vmatpush.msra.mxu0 0.0
    %2111 = vmatpush.msra.mxu0 0.0
    %2112 = vmatpush.msra.mxu0 0.0
    %2113 = vmatpush.msra.mxu0 0.0
    %2114 = vmatpush.msra.mxu0 0.0
    %2115 = vmatpush.msra.mxu0 0.0
    %2116 = vmatpush.msra.mxu0 0.0
    %2117 = vmatpush.msra.mxu0 0.0
    %2118 = vmatpush.msra.mxu0 0.0
    %2119 = vmatpush.msra.mxu0 0.0
    %2120 = vmatpush.msra.mxu0 %v1683
    %2121 = vmatpush.msra.mxu0 %v1680
    %2122 = vmatmul.f32.gmra.mxu0 %v2095
    %v2123 = vpop.f32.mrf.mxu0
    %v2124 = vadd.f32 0.0, %v2123
    %2125 = vmatmul.f32.gmra.mxu0 %v2098
    %v2126 = vpop.f32.mrf.mxu0
    %v2127 = vadd.f32 0.0, %v2126
    %2128 = vmatmul.f32.gmra.mxu0 %v2101
    %v2129 = vpop.f32.mrf.mxu0
    %v2130 = vadd.f32 0.0, %v2129
    %2131 = vmatmul.f32.gmra.mxu0 %v2104
    %v2132 = vpop.f32.mrf.mxu0
    %v2133 = vadd.f32 0.0, %v2132
    %2134 = vdwg.mxu0
    %v2135 = vadd.f32 %v1777, %v2124
    %v2136 = vadd.f32 %v1780, %v2127
    %v2137 = vadd.f32 %v1783, %v2130
    %v2138 = vadd.f32 %v1786, %v2133
    %2139 = vrot.lane.b32.xlu0 %v1686, 112
    %v2140 = vpop.permute.xlu0 %2139
    %2141 = vrot.lane.b32.xlu0 %v1688, 112
    %v2142 = vpop.permute.xlu0 %2141
    %2143 = vrot.lane.b32.xlu0 %v1690, 112
    %v2144 = vpop.permute.xlu0 %2143
    %2145 = vrot.lane.b32.xlu0 %v1692, 112
    %v2146 = vpop.permute.xlu0 %2145
    %2149 = vrot.lane.b32.xlu0 %v1680, 112
    %v2150 = vpop.permute.xlu0 %2149
    %2151 = vrot.lane.b32.xlu0 %v1683, 112
    %v2152 = vpop.permute.xlu0 %2151
    %v2155 = vsel %vm1713, %v2140, 0
    %v2157 = vsel %vm1713, %v2142, 0
    %v2159 = vsel %vm1713, %v2144, 0
    %v2161 = vsel %vm1713, %v2146, 0
    %2163 = vmatpush.msra.mxu0 0.0
    %2164 = vmatpush.msra.mxu0 0.0
    %2165 = vmatpush.msra.mxu0 0.0
    %2166 = vmatpush.msra.mxu0 0.0
    %2167 = vmatpush.msra.mxu0 0.0
    %2168 = vmatpush.msra.mxu0 0.0
    %2169 = vmatpush.msra.mxu0 0.0
    %2170 = vmatpush.msra.mxu0 0.0
    %2171 = vmatpush.msra.mxu0 0.0
    %2172 = vmatpush.msra.mxu0 0.0
    %2173 = vmatpush.msra.mxu0 0.0
    %2174 = vmatpush.msra.mxu0 0.0
    %2175 = vmatpush.msra.mxu0 0.0
    %2176 = vmatpush.msra.mxu0 0.0
    %2177 = vmatpush.msra.mxu0 %v2152
    %2178 = vmatpush.msra.mxu0 %v2150
    %2179 = vmatmul.f32.gmra.mxu0 %v2155
    %v2180 = vpop.f32.mrf.mxu0
    %v2181 = vadd.f32 0.0, %v2180
    %2182 = vmatmul.f32.gmra.mxu0 %v2157
    %v2183 = vpop.f32.mrf.mxu0
    %v2184 = vadd.f32 0.0, %v2183
    %2185 = vmatmul.f32.gmra.mxu0 %v2159
    %v2186 = vpop.f32.mrf.mxu0
    %v2187 = vadd.f32 0.0, %v2186
    %2188 = vmatmul.f32.gmra.mxu0 %v2161
    %v2189 = vpop.f32.mrf.mxu0
    %v2190 = vadd.f32 0.0, %v2189
    %2191 = vdwg.mxu0
    %v2192 = vadd.f32 %v1879, %v2181
    %v2193 = vadd.f32 %v1882, %v2184
    %v2194 = vadd.f32 %v1885, %v2187
    %v2195 = vadd.f32 %v1888, %v2190
    %2196 = vrot.lane.b32.xlu0 %v1686, 96
    %v2197 = vpop.permute.xlu0 %2196
    %2198 = vrot.lane.b32.xlu0 %v1688, 96
    %v2199 = vpop.permute.xlu0 %2198
    %2200 = vrot.lane.b32.xlu0 %v1690, 96
    %v2201 = vpop.permute.xlu0 %2200
    %2202 = vrot.lane.b32.xlu0 %v1692, 96
    %v2203 = vpop.permute.xlu0 %2202
    %2204 = vrot.lane.b32.xlu0 %v1680, 96
    %v2205 = vpop.permute.xlu0 %2204
    %2206 = vrot.lane.b32.xlu0 %v1683, 96
    %v2207 = vpop.permute.xlu0 %2206
    %v2210 = vsel %vm1713, %v2197, 0
    %v2212 = vsel %vm1713, %v2199, 0
    %v2214 = vsel %vm1713, %v2201, 0
    %v2216 = vsel %vm1713, %v2203, 0
    %2218 = vmatpush.msra.mxu0 0.0
    %2219 = vmatpush.msra.mxu0 0.0
    %2220 = vmatpush.msra.mxu0 0.0
    %2221 = vmatpush.msra.mxu0 0.0
    %2222 = vmatpush.msra.mxu0 0.0
    %2223 = vmatpush.msra.mxu0 0.0
    %2224 = vmatpush.msra.mxu0 0.0
    %2225 = vmatpush.msra.mxu0 0.0
    %2226 = vmatpush.msra.mxu0 0.0
    %2227 = vmatpush.msra.mxu0 0.0
    %2228 = vmatpush.msra.mxu0 0.0
    %2229 = vmatpush.msra.mxu0 0.0
    %2230 = vmatpush.msra.mxu0 0.0
    %2231 = vmatpush.msra.mxu0 0.0
    %2232 = vmatpush.msra.mxu0 %v2207
    %2233 = vmatpush.msra.mxu0 %v2205
    %2234 = vmatmul.f32.gmra.mxu0 %v2210
    %v2235 = vpop.f32.mrf.mxu0
    %v2236 = vadd.f32 0.0, %v2235
    %2237 = vmatmul.f32.gmra.mxu0 %v2212
    %v2238 = vpop.f32.mrf.mxu0
    %v2239 = vadd.f32 0.0, %v2238
    %2240 = vmatmul.f32.gmra.mxu0 %v2214
    %v2241 = vpop.f32.mrf.mxu0
    %v2242 = vadd.f32 0.0, %v2241
    %2243 = vmatmul.f32.gmra.mxu0 %v2216
    %v2244 = vpop.f32.mrf.mxu0
    %v2245 = vadd.f32 0.0, %v2244
    %2246 = vdwg.mxu0
    %v2247 = vadd.f32 %v1981, %v2236
    %v2248 = vadd.f32 %v1984, %v2239
    %v2249 = vadd.f32 %v1987, %v2242
    %v2250 = vadd.f32 %v1990, %v2245
    %2251 = vrot.lane.b32.xlu0 %v1686, 80
    %v2252 = vpop.permute.xlu0 %2251
    %2253 = vrot.lane.b32.xlu0 %v1688, 80
    %v2254 = vpop.permute.xlu0 %2253
    %2255 = vrot.lane.b32.xlu0 %v1690, 80
    %v2256 = vpop.permute.xlu0 %2255
    %2257 = vrot.lane.b32.xlu0 %v1692, 80
    %v2258 = vpop.permute.xlu0 %2257
    %2259 = vrot.lane.b32.xlu0 %v1680, 80
    %v2260 = vpop.permute.xlu0 %2259
    %2261 = vrot.lane.b32.xlu0 %v1683, 80
    %v2262 = vpop.permute.xlu0 %2261
    %v2265 = vsel %vm1713, %v2252, 0
    %v2267 = vsel %vm1713, %v2254, 0
    %v2269 = vsel %vm1713, %v2256, 0
    %v2271 = vsel %vm1713, %v2258, 0
    %2273 = vmatpush.msra.mxu0 0.0
    %2274 = vmatpush.msra.mxu0 0.0
    %2275 = vmatpush.msra.mxu0 0.0
    %2276 = vmatpush.msra.mxu0 0.0
    %2277 = vmatpush.msra.mxu0 0.0
    %2278 = vmatpush.msra.mxu0 0.0
    %2279 = vmatpush.msra.mxu0 0.0
    %2280 = vmatpush.msra.mxu0 0.0
    %2281 = vmatpush.msra.mxu0 0.0
    %2282 = vmatpush.msra.mxu0 0.0
    %2283 = vmatpush.msra.mxu0 0.0
    %2284 = vmatpush.msra.mxu0 0.0
    %2285 = vmatpush.msra.mxu0 0.0
    %2286 = vmatpush.msra.mxu0 0.0
    %2287 = vmatpush.msra.mxu0 %v2262
    %2288 = vmatpush.msra.mxu0 %v2260
    %2289 = vmatmul.f32.gmra.mxu0 %v2265
    %v2290 = vpop.f32.mrf.mxu0
    %v2291 = vadd.f32 0.0, %v2290
    %2292 = vmatmul.f32.gmra.mxu0 %v2267
    %v2293 = vpop.f32.mrf.mxu0
    %v2294 = vadd.f32 0.0, %v2293
    %2295 = vmatmul.f32.gmra.mxu0 %v2269
    %v2296 = vpop.f32.mrf.mxu0
    %v2297 = vadd.f32 0.0, %v2296
    %2298 = vmatmul.f32.gmra.mxu0 %v2271
    %v2299 = vpop.f32.mrf.mxu0
    %v2300 = vadd.f32 0.0, %v2299
    %2301 = vdwg.mxu0
    %v2302 = vadd.f32 %v2083, %v2291
    %v2303 = vadd.f32 %v2086, %v2294
    %v2304 = vadd.f32 %v2089, %v2297
    %v2305 = vadd.f32 %v2092, %v2300
    %2306 = vrot.lane.b32.xlu0 %v1686, 64
    %v2307 = vpop.permute.xlu0 %2306
    %2308 = vrot.lane.b32.xlu0 %v1688, 64
    %v2309 = vpop.permute.xlu0 %2308
    %2310 = vrot.lane.b32.xlu0 %v1690, 64
    %v2311 = vpop.permute.xlu0 %2310
    %2312 = vrot.lane.b32.xlu0 %v1692, 64
    %v2313 = vpop.permute.xlu0 %2312
    %2314 = vrot.lane.b32.xlu0 %v1680, 64
    %v2315 = vpop.permute.xlu0 %2314
    %2316 = vrot.lane.b32.xlu0 %v1683, 64
    %v2317 = vpop.permute.xlu0 %2316
    %v2320 = vsel %vm1713, %v2307, 0
    %v2322 = vsel %vm1713, %v2309, 0
    %v2324 = vsel %vm1713, %v2311, 0
    %v2326 = vsel %vm1713, %v2313, 0
    %2328 = vmatpush.msra.mxu0 0.0
    %2329 = vmatpush.msra.mxu0 0.0
    %2330 = vmatpush.msra.mxu0 0.0
    %2331 = vmatpush.msra.mxu0 0.0
    %2332 = vmatpush.msra.mxu0 0.0
    %2333 = vmatpush.msra.mxu0 0.0
    %2334 = vmatpush.msra.mxu0 0.0
    %2335 = vmatpush.msra.mxu0 0.0
    %2336 = vmatpush.msra.mxu0 0.0
    %2337 = vmatpush.msra.mxu0 0.0
    %2338 = vmatpush.msra.mxu0 0.0
    %2339 = vmatpush.msra.mxu0 0.0
    %2340 = vmatpush.msra.mxu0 0.0
    %2341 = vmatpush.msra.mxu0 0.0
    %2342 = vmatpush.msra.mxu0 %v2317
    %2343 = vmatpush.msra.mxu0 %v2315
    %2344 = vmatmul.f32.gmra.mxu0 %v2320
    %v2345 = vpop.f32.mrf.mxu0
    %v2346 = vadd.f32 0.0, %v2345
    %2347 = vmatmul.f32.gmra.mxu0 %v2322
    %v2348 = vpop.f32.mrf.mxu0
    %v2349 = vadd.f32 0.0, %v2348
    %2350 = vmatmul.f32.gmra.mxu0 %v2324
    %v2351 = vpop.f32.mrf.mxu0
    %v2352 = vadd.f32 0.0, %v2351
    %2353 = vmatmul.f32.gmra.mxu0 %v2326
    %v2354 = vpop.f32.mrf.mxu0
    %v2355 = vadd.f32 0.0, %v2354
    %2356 = vdwg.mxu0
    %v2357 = vadd.f32 %v2135, %v2346
    %v2358 = vadd.f32 %v2136, %v2349
    %v2359 = vadd.f32 %v2137, %v2352
    %v2360 = vadd.f32 %v2138, %v2355
    %2361 = vrot.lane.b32.xlu0 %v1686, 48
    %v2362 = vpop.permute.xlu0 %2361
    %2363 = vrot.lane.b32.xlu0 %v1688, 48
    %v2364 = vpop.permute.xlu0 %2363
    %2365 = vrot.lane.b32.xlu0 %v1690, 48
    %v2366 = vpop.permute.xlu0 %2365
    %2367 = vrot.lane.b32.xlu0 %v1692, 48
    %v2368 = vpop.permute.xlu0 %2367
    %2369 = vrot.lane.b32.xlu0 %v1680, 48
    %v2370 = vpop.permute.xlu0 %2369
    %2371 = vrot.lane.b32.xlu0 %v1683, 48
    %v2372 = vpop.permute.xlu0 %2371
    %v2375 = vsel %vm1713, %v2362, 0
    %v2377 = vsel %vm1713, %v2364, 0
    %v2379 = vsel %vm1713, %v2366, 0
    %v2381 = vsel %vm1713, %v2368, 0
    %2383 = vmatpush.msra.mxu0 0.0
    %2384 = vmatpush.msra.mxu0 0.0
    %2385 = vmatpush.msra.mxu0 0.0
    %2386 = vmatpush.msra.mxu0 0.0
    %2387 = vmatpush.msra.mxu0 0.0
    %2388 = vmatpush.msra.mxu0 0.0
    %2389 = vmatpush.msra.mxu0 0.0
    %2390 = vmatpush.msra.mxu0 0.0
    %2391 = vmatpush.msra.mxu0 0.0
    %2392 = vmatpush.msra.mxu0 0.0
    %2393 = vmatpush.msra.mxu0 0.0
    %2394 = vmatpush.msra.mxu0 0.0
    %2395 = vmatpush.msra.mxu0 0.0
    %2396 = vmatpush.msra.mxu0 0.0
    %2397 = vmatpush.msra.mxu0 %v2372
    %2398 = vmatpush.msra.mxu0 %v2370
    %2399 = vmatmul.f32.gmra.mxu0 %v2375
    %v2400 = vpop.f32.mrf.mxu0
    %v2401 = vadd.f32 0.0, %v2400
    %2402 = vmatmul.f32.gmra.mxu0 %v2377
    %v2403 = vpop.f32.mrf.mxu0
    %v2404 = vadd.f32 0.0, %v2403
    %2405 = vmatmul.f32.gmra.mxu0 %v2379
    %v2406 = vpop.f32.mrf.mxu0
    %v2407 = vadd.f32 0.0, %v2406
    %2408 = vmatmul.f32.gmra.mxu0 %v2381
    %v2409 = vpop.f32.mrf.mxu0
    %v2410 = vadd.f32 0.0, %v2409
    %2411 = vdwg.mxu0
    %v2412 = vadd.f32 %v2192, %v2401
    %v2413 = vadd.f32 %v2193, %v2404
    %v2414 = vadd.f32 %v2194, %v2407
    %v2415 = vadd.f32 %v2195, %v2410
    %2416 = vrot.lane.b32.xlu0 %v1686, 32
    %v2417 = vpop.permute.xlu0 %2416
    %2418 = vrot.lane.b32.xlu0 %v1688, 32
    %v2419 = vpop.permute.xlu0 %2418
    %2420 = vrot.lane.b32.xlu0 %v1690, 32
    %v2421 = vpop.permute.xlu0 %2420
    %2422 = vrot.lane.b32.xlu0 %v1692, 32
    %v2423 = vpop.permute.xlu0 %2422
    %2424 = vrot.lane.b32.xlu0 %v1680, 32
    %v2425 = vpop.permute.xlu0 %2424
    %2426 = vrot.lane.b32.xlu0 %v1683, 32
    %v2427 = vpop.permute.xlu0 %2426
    %v2430 = vsel %vm1713, %v2417, 0
    %v2432 = vsel %vm1713, %v2419, 0
    %v2434 = vsel %vm1713, %v2421, 0
    %v2436 = vsel %vm1713, %v2423, 0
    %2438 = vmatpush.msra.mxu0 0.0
    %2439 = vmatpush.msra.mxu0 0.0
    %2440 = vmatpush.msra.mxu0 0.0
    %2441 = vmatpush.msra.mxu0 0.0
    %2442 = vmatpush.msra.mxu0 0.0
    %2443 = vmatpush.msra.mxu0 0.0
    %2444 = vmatpush.msra.mxu0 0.0
    %2445 = vmatpush.msra.mxu0 0.0
    %2446 = vmatpush.msra.mxu0 0.0
    %2447 = vmatpush.msra.mxu0 0.0
    %2448 = vmatpush.msra.mxu0 0.0
    %2449 = vmatpush.msra.mxu0 0.0
    %2450 = vmatpush.msra.mxu0 0.0
    %2451 = vmatpush.msra.mxu0 0.0
    %2452 = vmatpush.msra.mxu0 %v2427
    %2453 = vmatpush.msra.mxu0 %v2425
    %2454 = vmatmul.f32.gmra.mxu0 %v2430
    %v2455 = vpop.f32.mrf.mxu0
    %v2456 = vadd.f32 0.0, %v2455
    %2457 = vmatmul.f32.gmra.mxu0 %v2432
    %v2458 = vpop.f32.mrf.mxu0
    %v2459 = vadd.f32 0.0, %v2458
    %2460 = vmatmul.f32.gmra.mxu0 %v2434
    %v2461 = vpop.f32.mrf.mxu0
    %v2462 = vadd.f32 0.0, %v2461
    %2463 = vmatmul.f32.gmra.mxu0 %v2436
    %v2464 = vpop.f32.mrf.mxu0
    %v2465 = vadd.f32 0.0, %v2464
    %2466 = vdwg.mxu0
    %v2467 = vadd.f32 %v2247, %v2456
    %v2468 = vadd.f32 %v2248, %v2459
    %v2469 = vadd.f32 %v2249, %v2462
    %v2470 = vadd.f32 %v2250, %v2465
    %2471 = vrot.lane.b32.xlu0 %v1686, 16
    %v2472 = vpop.permute.xlu0 %2471
    %2473 = vrot.lane.b32.xlu0 %v1688, 16
    %v2474 = vpop.permute.xlu0 %2473
    %2475 = vrot.lane.b32.xlu0 %v1690, 16
    %v2476 = vpop.permute.xlu0 %2475
    %2477 = vrot.lane.b32.xlu0 %v1692, 16
    %v2478 = vpop.permute.xlu0 %2477
    %2479 = vrot.lane.b32.xlu0 %v1680, 16
    %v2480 = vpop.permute.xlu0 %2479
    %2481 = vrot.lane.b32.xlu0 %v1683, 16
    %v2482 = vpop.permute.xlu0 %2481
    %v2485 = vsel %vm1713, %v2472, 0
    %v2487 = vsel %vm1713, %v2474, 0
    %v2489 = vsel %vm1713, %v2476, 0
    %v2491 = vsel %vm1713, %v2478, 0
    %2493 = vmatpush.msra.mxu0 0.0
    %2494 = vmatpush.msra.mxu0 0.0
    %2495 = vmatpush.msra.mxu0 0.0
    %2496 = vmatpush.msra.mxu0 0.0
    %2497 = vmatpush.msra.mxu0 0.0
    %2498 = vmatpush.msra.mxu0 0.0
    %2499 = vmatpush.msra.mxu0 0.0
    %2500 = vmatpush.msra.mxu0 0.0
    %2501 = vmatpush.msra.mxu0 0.0
    %2502 = vmatpush.msra.mxu0 0.0
    %2503 = vmatpush.msra.mxu0 0.0
    %2504 = vmatpush.msra.mxu0 0.0
    %2505 = vmatpush.msra.mxu0 0.0
    %2506 = vmatpush.msra.mxu0 0.0
    %2507 = vmatpush.msra.mxu0 %v2482
    %2508 = vmatpush.msra.mxu0 %v2480
    %2509 = vmatmul.f32.gmra.mxu0 %v2485
    %v2510 = vpop.f32.mrf.mxu0
    %v2511 = vadd.f32 0.0, %v2510
    %2512 = vmatmul.f32.gmra.mxu0 %v2487
    %v2513 = vpop.f32.mrf.mxu0
    %v2514 = vadd.f32 0.0, %v2513
    %2515 = vmatmul.f32.gmra.mxu0 %v2489
    %v2516 = vpop.f32.mrf.mxu0
    %v2517 = vadd.f32 0.0, %v2516
    %2518 = vmatmul.f32.gmra.mxu0 %v2491
    %v2519 = vpop.f32.mrf.mxu0
    %v2520 = vadd.f32 0.0, %v2519
    %2521 = vdwg.mxu0
    %v2522 = vadd.f32 %v2302, %v2511
    %v2523 = vadd.f32 %v2303, %v2514
    %v2524 = vadd.f32 %v2304, %v2517
    %v2525 = vadd.f32 %v2305, %v2520
    %v2526 = vadd.f32 %v2357, %v2412
    %v2527 = vadd.f32 %v2358, %v2413
    %v2528 = vadd.f32 %v2359, %v2414
    %v2529 = vadd.f32 %v2360, %v2415
    %v2530 = vadd.f32 %v2467, %v2522
    %v2531 = vadd.f32 %v2468, %v2523
    %v2532 = vadd.f32 %v2469, %v2524
    %v2533 = vadd.f32 %v2470, %v2525
    %v2534 = vadd.f32 %v2526, %v2530
    %v2535 = vadd.f32 %v2527, %v2531
    %v2536 = vadd.f32 %v2528, %v2532
    %v2537 = vadd.f32 %v2529, %v2533
    %v2538 = vld [vmem:[%s2 + $0x180] sm:$0xff]
    %v2539 = vld [vmem:[%s2 + $0x198] sm:$0xff]
    %v2540 = vld [vmem:[%s2 + $0x1b0] sm:$0xff]
    %v2541 = vld [vmem:[%s2 + $0x1c8] sm:$0xff]
    %2543 = vset.pattern.permute.xlu0 0
    %2544 = vperm.xlu0 %2543, %v2538
    %v2545 = vpop.permute.xlu0 %2544
    %2548 = vset.pattern.permute.xlu0 0
    %2549 = vperm.xlu0 %2548, %v2539
    %v2550 = vpop.permute.xlu0 %2549
    %2553 = vset.pattern.permute.xlu0 0
    %2554 = vperm.xlu0 %2553, %v2540
    %v2555 = vpop.permute.xlu0 %2554
    %2558 = vset.pattern.permute.xlu0 0
    %2559 = vperm.xlu0 %2558, %v2541
    %v2560 = vpop.permute.xlu0 %2559
    %v2562 = vadd.f32 %v2534, %v2545
    %v2563 = vadd.f32 %v2535, %v2550
    %v2564 = vadd.f32 %v2536, %v2555
    %v2565 = vadd.f32 %v2537, %v2560
    %v2566 = vmax.f32 %v2562, 0.0
    %v2567 = vmax.f32 %v2563, 0.0
    %v2568 = vmax.f32 %v2564, 0.0
    %v2569 = vmax.f32 %v2565, 0.0
    %v2570 = vld [vmem:[#allocation2 + $0x500] sm:$0xff]
    %v2571 = vld [vmem:[#allocation2 + $0x520] sm:$0xff]
    %v2572 = vunpack.c.l.bf16 %v2570
    %v2573 = vunpack.c.h.bf16 %v2570
    %v2574 = vunpack.c.l.bf16 %v2571
    %v2575 = vunpack.c.h.bf16 %v2571
    %v2577 = vsel %vm1713, %v2566, 0
    %v2580 = vsel %vm1713, %v2567, 0
    %v2583 = vsel %vm1713, %v2568, 0
    %v2586 = vsel %vm1713, %v2569, 0
    %2588 = vmatpush.msra.mxu0 0.0
    %2589 = vmatpush.msra.mxu0 0.0
    %2590 = vmatpush.msra.mxu0 0.0
    %2591 = vmatpush.msra.mxu0 0.0
    %2592 = vmatpush.msra.mxu0 0.0
    %2593 = vmatpush.msra.mxu0 0.0
    %2594 = vmatpush.msra.mxu0 0.0
    %2595 = vmatpush.msra.mxu0 0.0
    %2596 = vmatpush.msra.mxu0 0.0
    %2597 = vmatpush.msra.mxu0 0.0
    %2598 = vmatpush.msra.mxu0 0.0
    %2599 = vmatpush.msra.mxu0 0.0
    %2600 = vmatpush.msra.mxu0 0.0
    %2601 = vmatpush.msra.mxu0 0.0
    %2602 = vmatpush.msra.mxu0 %v2574
    %2603 = vmatpush.msra.mxu0 %v2572
    %2604 = vmatmul.f32.gmra.mxu0 %v2577
    %v2605 = vpop.f32.mrf.mxu0
    %v2606 = vadd.f32 0.0, %v2605
    %2607 = vmatmul.f32.gmra.mxu0 %v2580
    %v2608 = vpop.f32.mrf.mxu0
    %v2609 = vadd.f32 0.0, %v2608
    %2610 = vmatmul.f32.gmra.mxu0 %v2583
    %v2611 = vpop.f32.mrf.mxu0
    %v2612 = vadd.f32 0.0, %v2611
    %2613 = vmatmul.f32.gmra.mxu0 %v2586
    %v2614 = vpop.f32.mrf.mxu0
    %v2615 = vadd.f32 0.0, %v2614
    %2616 = vdwg.mxu0
    %2617 = vmatpush.msra.mxu0 0.0
    %2618 = vmatpush.msra.mxu0 0.0
    %2619 = vmatpush.msra.mxu0 0.0
    %2620 = vmatpush.msra.mxu0 0.0
    %2621 = vmatpush.msra.mxu0 0.0
    %2622 = vmatpush.msra.mxu0 0.0
    %2623 = vmatpush.msra.mxu0 0.0
    %2624 = vmatpush.msra.mxu0 0.0
    %2625 = vmatpush.msra.mxu0 0.0
    %2626 = vmatpush.msra.mxu0 0.0
    %2627 = vmatpush.msra.mxu0 0.0
    %2628 = vmatpush.msra.mxu0 0.0
    %2629 = vmatpush.msra.mxu0 0.0
    %2630 = vmatpush.msra.mxu0 0.0
    %2631 = vmatpush.msra.mxu0 %v2575
    %2632 = vmatpush.msra.mxu0 %v2573
    %2633 = vmatmul.f32.gmra.mxu0 %v2577
    %v2634 = vpop.f32.mrf.mxu0
    %v2635 = vadd.f32 0.0, %v2634
    %2636 = vmatmul.f32.gmra.mxu0 %v2580
    %v2637 = vpop.f32.mrf.mxu0
    %v2638 = vadd.f32 0.0, %v2637
    %2639 = vmatmul.f32.gmra.mxu0 %v2583
    %v2640 = vpop.f32.mrf.mxu0
    %v2641 = vadd.f32 0.0, %v2640
    %2642 = vmatmul.f32.gmra.mxu0 %v2586
    %v2643 = vpop.f32.mrf.mxu0
    %v2644 = vadd.f32 0.0, %v2643
    %2645 = vdwg.mxu0
    %v2646 = vld [vmem:[%s2 + $0x90] sm:$0xff]
    %v2647 = vld [vmem:[%s2 + $0x98] sm:$0xff]
    %v2648 = vld [vmem:[%s2 + $0xa0] sm:$0xff]
    %v2649 = vld [vmem:[%s2 + $0xa8] sm:$0xff]
    %v2650 = vld [vmem:[%s2 + $0xb0] sm:$0xff]
    %v2651 = vld [vmem:[%s2 + $0xb8] sm:$0xff]
    %2656 = vrot.lane.b32.xlu0 %v2606, 64
    %v2657 = vpop.permute.xlu0 %2656
    %2658 = vrot.lane.b32.xlu0 %v2609, 64
    %v2659 = vpop.permute.xlu0 %2658
    %2660 = vrot.lane.b32.xlu0 %v2612, 64
    %v2661 = vpop.permute.xlu0 %2660
    %2662 = vrot.lane.b32.xlu0 %v2615, 64
    %v2663 = vpop.permute.xlu0 %2662
    %vm2668 = vcmask 261120
    %v2670 = vsel %vm2668, %v2647, 0
    %v2673 = vsel %vm2668, %v2650, 0
    %2675 = vmatpush.msra.mxu0 0.0
    %2676 = vmatpush.msra.mxu0 0.0
    %2677 = vmatpush.msra.mxu0 0.0
    %2678 = vmatpush.msra.mxu0 0.0
    %2679 = vmatpush.msra.mxu0 0.0
    %2680 = vmatpush.msra.mxu0 0.0
    %2681 = vmatpush.msra.mxu0 0.0
    %2682 = vmatpush.msra.mxu0 0.0
    %2683 = vmatpush.msra.mxu0 0.0
    %2684 = vmatpush.msra.mxu0 0.0
    %2685 = vmatpush.msra.mxu0 0.0
    %2686 = vmatpush.msra.mxu0 0.0
    %2687 = vmatpush.msra.mxu0 %v2663
    %2688 = vmatpush.msra.mxu0 %v2661
    %2689 = vmatpush.msra.mxu0 %v2659
    %2690 = vmatpush.msra.mxu0 %v2657
    %2691 = vmatmul.f32.gmra.mxu0 %v2670
    %v2692 = vpop.f32.mrf.mxu0
    %v2693 = vadd.f32 0.0, %v2692
    %2694 = vmatmul.f32.gmra.mxu0 %v2673
    %v2695 = vpop.f32.mrf.mxu0
    %v2696 = vadd.f32 0.0, %v2695
    %2697 = vdwg.mxu0
    %v2699 = vsel %vm2668, %v2646, 0
    %v2702 = vsel %vm2668, %v2649, 0
    %2704 = vmatpush.msra.mxu0 0.0
    %2705 = vmatpush.msra.mxu0 0.0
    %2706 = vmatpush.msra.mxu0 0.0
    %2707 = vmatpush.msra.mxu0 0.0
    %2708 = vmatpush.msra.mxu0 0.0
    %2709 = vmatpush.msra.mxu0 0.0
    %2710 = vmatpush.msra.mxu0 0.0
    %2711 = vmatpush.msra.mxu0 0.0
    %2712 = vmatpush.msra.mxu0 0.0
    %2713 = vmatpush.msra.mxu0 0.0
    %2714 = vmatpush.msra.mxu0 0.0
    %2715 = vmatpush.msra.mxu0 0.0
    %2716 = vmatpush.msra.mxu0 %v2615
    %2717 = vmatpush.msra.mxu0 %v2612
    %2718 = vmatpush.msra.mxu0 %v2609
    %2719 = vmatpush.msra.mxu0 %v2606
    %2720 = vmatmul.f32.gmra.mxu0 %v2699
    %v2721 = vpop.f32.mrf.mxu0
    %v2722 = vadd.f32 %v2693, %v2721
    %2723 = vmatmul.f32.gmra.mxu0 %v2702
    %v2724 = vpop.f32.mrf.mxu0
    %v2725 = vadd.f32 %v2696, %v2724
    %2726 = vdwg.mxu0
    %2727 = vrot.lane.b32.xlu0 %v2647, 96
    %v2728 = vpop.permute.xlu0 %2727
    %2729 = vrot.lane.b32.xlu0 %v2650, 96
    %v2730 = vpop.permute.xlu0 %2729
    %2731 = vrot.lane.b32.xlu0 %v2606, 48
    %v2732 = vpop.permute.xlu0 %2731
    %2733 = vrot.lane.b32.xlu0 %v2609, 48
    %v2734 = vpop.permute.xlu0 %2733
    %2735 = vrot.lane.b32.xlu0 %v2612, 48
    %v2736 = vpop.permute.xlu0 %2735
    %2737 = vrot.lane.b32.xlu0 %v2615, 48
    %v2738 = vpop.permute.xlu0 %2737
    %v2743 = vsel %vm2668, %v2728, 0
    %v2745 = vsel %vm2668, %v2730, 0
    %2747 = vmatpush.msra.mxu0 0.0
    %2748 = vmatpush.msra.mxu0 0.0
    %2749 = vmatpush.msra.mxu0 0.0
    %2750 = vmatpush.msra.mxu0 0.0
    %2751 = vmatpush.msra.mxu0 0.0
    %2752 = vmatpush.msra.mxu0 0.0
    %2753 = vmatpush.msra.mxu0 0.0
    %2754 = vmatpush.msra.mxu0 0.0
    %2755 = vmatpush.msra.mxu0 0.0
    %2756 = vmatpush.msra.mxu0 0.0
    %2757 = vmatpush.msra.mxu0 0.0
    %2758 = vmatpush.msra.mxu0 0.0
    %2759 = vmatpush.msra.mxu0 %v2738
    %2760 = vmatpush.msra.mxu0 %v2736
    %2761 = vmatpush.msra.mxu0 %v2734
    %2762 = vmatpush.msra.mxu0 %v2732
    %2763 = vmatmul.f32.gmra.mxu0 %v2743
    %v2764 = vpop.f32.mrf.mxu0
    %v2765 = vadd.f32 0.0, %v2764
    %2766 = vmatmul.f32.gmra.mxu0 %v2745
    %v2767 = vpop.f32.mrf.mxu0
    %v2768 = vadd.f32 0.0, %v2767
    %2769 = vdwg.mxu0
    %2770 = vrot.lane.b32.xlu0 %v2646, 96
    %v2771 = vpop.permute.xlu0 %2770
    %2772 = vrot.lane.b32.xlu0 %v2649, 96
    %v2773 = vpop.permute.xlu0 %2772
    %2774 = vrot.lane.b32.xlu0 %v2606, 112
    %v2775 = vpop.permute.xlu0 %2774
    %2776 = vrot.lane.b32.xlu0 %v2609, 112
    %v2777 = vpop.permute.xlu0 %2776
    %2778 = vrot.lane.b32.xlu0 %v2612, 112
    %v2779 = vpop.permute.xlu0 %2778
    %2780 = vrot.lane.b32.xlu0 %v2615, 112
    %v2781 = vpop.permute.xlu0 %2780
    %v2786 = vsel %vm2668, %v2771, 0
    %v2788 = vsel %vm2668, %v2773, 0
    %2790 = vmatpush.msra.mxu0 0.0
    %2791 = vmatpush.msra.mxu0 0.0
    %2792 = vmatpush.msra.mxu0 0.0
    %2793 = vmatpush.msra.mxu0 0.0
    %2794 = vmatpush.msra.mxu0 0.0
    %2795 = vmatpush.msra.mxu0 0.0
    %2796 = vmatpush.msra.mxu0 0.0
    %2797 = vmatpush.msra.mxu0 0.0
    %2798 = vmatpush.msra.mxu0 0.0
    %2799 = vmatpush.msra.mxu0 0.0
    %2800 = vmatpush.msra.mxu0 0.0
    %2801 = vmatpush.msra.mxu0 0.0
    %2802 = vmatpush.msra.mxu0 %v2781
    %2803 = vmatpush.msra.mxu0 %v2779
    %2804 = vmatpush.msra.mxu0 %v2777
    %2805 = vmatpush.msra.mxu0 %v2775
    %2806 = vmatmul.f32.gmra.mxu0 %v2786
    %v2807 = vpop.f32.mrf.mxu0
    %v2808 = vadd.f32 %v2765, %v2807
    %2809 = vmatmul.f32.gmra.mxu0 %v2788
    %v2810 = vpop.f32.mrf.mxu0
    %v2811 = vadd.f32 %v2768, %v2810
    %2812 = vdwg.mxu0
    %2813 = vrot.lane.b32.xlu0 %v2647, 64
    %v2814 = vpop.permute.xlu0 %2813
    %2815 = vrot.lane.b32.xlu0 %v2650, 64
    %v2816 = vpop.permute.xlu0 %2815
    %2817 = vrot.lane.b32.xlu0 %v2606, 32
    %v2818 = vpop.permute.xlu0 %2817
    %2819 = vrot.lane.b32.xlu0 %v2609, 32
    %v2820 = vpop.permute.xlu0 %2819
    %2821 = vrot.lane.b32.xlu0 %v2612, 32
    %v2822 = vpop.permute.xlu0 %2821
    %2823 = vrot.lane.b32.xlu0 %v2615, 32
    %v2824 = vpop.permute.xlu0 %2823
    %v2829 = vsel %vm2668, %v2814, 0
    %v2831 = vsel %vm2668, %v2816, 0
    %2833 = vmatpush.msra.mxu0 0.0
    %2834 = vmatpush.msra.mxu0 0.0
    %2835 = vmatpush.msra.mxu0 0.0
    %2836 = vmatpush.msra.mxu0 0.0
    %2837 = vmatpush.msra.mxu0 0.0
    %2838 = vmatpush.msra.mxu0 0.0
    %2839 = vmatpush.msra.mxu0 0.0
    %2840 = vmatpush.msra.mxu0 0.0
    %2841 = vmatpush.msra.mxu0 0.0
    %2842 = vmatpush.msra.mxu0 0.0
    %2843 = vmatpush.msra.mxu0 0.0
    %2844 = vmatpush.msra.mxu0 0.0
    %2845 = vmatpush.msra.mxu0 %v2824
    %2846 = vmatpush.msra.mxu0 %v2822
    %2847 = vmatpush.msra.mxu0 %v2820
    %2848 = vmatpush.msra.mxu0 %v2818
    %2849 = vmatmul.f32.gmra.mxu0 %v2829
    %v2850 = vpop.f32.mrf.mxu0
    %v2851 = vadd.f32 0.0, %v2850
    %2852 = vmatmul.f32.gmra.mxu0 %v2831
    %v2853 = vpop.f32.mrf.mxu0
    %v2854 = vadd.f32 0.0, %v2853
    %2855 = vdwg.mxu0
    %2856 = vrot.lane.b32.xlu0 %v2646, 64
    %v2857 = vpop.permute.xlu0 %2856
    %2858 = vrot.lane.b32.xlu0 %v2649, 64
    %v2859 = vpop.permute.xlu0 %2858
    %2860 = vrot.lane.b32.xlu0 %v2606, 96
    %v2861 = vpop.permute.xlu0 %2860
    %2862 = vrot.lane.b32.xlu0 %v2609, 96
    %v2863 = vpop.permute.xlu0 %2862
    %2864 = vrot.lane.b32.xlu0 %v2612, 96
    %v2865 = vpop.permute.xlu0 %2864
    %2866 = vrot.lane.b32.xlu0 %v2615, 96
    %v2867 = vpop.permute.xlu0 %2866
    %v2872 = vsel %vm2668, %v2857, 0
    %v2874 = vsel %vm2668, %v2859, 0
    %2876 = vmatpush.msra.mxu0 0.0
    %2877 = vmatpush.msra.mxu0 0.0
    %2878 = vmatpush.msra.mxu0 0.0
    %2879 = vmatpush.msra.mxu0 0.0
    %2880 = vmatpush.msra.mxu0 0.0
    %2881 = vmatpush.msra.mxu0 0.0
    %2882 = vmatpush.msra.mxu0 0.0
    %2883 = vmatpush.msra.mxu0 0.0
    %2884 = vmatpush.msra.mxu0 0.0
    %2885 = vmatpush.msra.mxu0 0.0
    %2886 = vmatpush.msra.mxu0 0.0
    %2887 = vmatpush.msra.mxu0 0.0
    %2888 = vmatpush.msra.mxu0 %v2867
    %2889 = vmatpush.msra.mxu0 %v2865
    %2890 = vmatpush.msra.mxu0 %v2863
    %2891 = vmatpush.msra.mxu0 %v2861
    %2892 = vmatmul.f32.gmra.mxu0 %v2872
    %v2893 = vpop.f32.mrf.mxu0
    %v2894 = vadd.f32 %v2851, %v2893
    %2895 = vmatmul.f32.gmra.mxu0 %v2874
    %v2896 = vpop.f32.mrf.mxu0
    %v2897 = vadd.f32 %v2854, %v2896
    %2898 = vdwg.mxu0
    %2899 = vrot.lane.b32.xlu0 %v2647, 32
    %v2900 = vpop.permute.xlu0 %2899
    %2901 = vrot.lane.b32.xlu0 %v2650, 32
    %v2902 = vpop.permute.xlu0 %2901
    %2903 = vrot.lane.b32.xlu0 %v2606, 16
    %v2904 = vpop.permute.xlu0 %2903
    %2905 = vrot.lane.b32.xlu0 %v2609, 16
    %v2906 = vpop.permute.xlu0 %2905
    %2907 = vrot.lane.b32.xlu0 %v2612, 16
    %v2908 = vpop.permute.xlu0 %2907
    %2909 = vrot.lane.b32.xlu0 %v2615, 16
    %v2910 = vpop.permute.xlu0 %2909
    %v2915 = vsel %vm2668, %v2900, 0
    %v2917 = vsel %vm2668, %v2902, 0
    %2919 = vmatpush.msra.mxu0 0.0
    %2920 = vmatpush.msra.mxu0 0.0
    %2921 = vmatpush.msra.mxu0 0.0
    %2922 = vmatpush.msra.mxu0 0.0
    %2923 = vmatpush.msra.mxu0 0.0
    %2924 = vmatpush.msra.mxu0 0.0
    %2925 = vmatpush.msra.mxu0 0.0
    %2926 = vmatpush.msra.mxu0 0.0
    %2927 = vmatpush.msra.mxu0 0.0
    %2928 = vmatpush.msra.mxu0 0.0
    %2929 = vmatpush.msra.mxu0 0.0
    %2930 = vmatpush.msra.mxu0 0.0
    %2931 = vmatpush.msra.mxu0 %v2910
    %2932 = vmatpush.msra.mxu0 %v2908
    %2933 = vmatpush.msra.mxu0 %v2906
    %2934 = vmatpush.msra.mxu0 %v2904
    %2935 = vmatmul.f32.gmra.mxu0 %v2915
    %v2936 = vpop.f32.mrf.mxu0
    %v2937 = vadd.f32 0.0, %v2936
    %2938 = vmatmul.f32.gmra.mxu0 %v2917
    %v2939 = vpop.f32.mrf.mxu0
    %v2940 = vadd.f32 0.0, %v2939
    %2941 = vdwg.mxu0
    %2942 = vrot.lane.b32.xlu0 %v2646, 32
    %v2943 = vpop.permute.xlu0 %2942
    %2944 = vrot.lane.b32.xlu0 %v2649, 32
    %v2945 = vpop.permute.xlu0 %2944
    %2946 = vrot.lane.b32.xlu0 %v2606, 80
    %v2947 = vpop.permute.xlu0 %2946
    %2948 = vrot.lane.b32.xlu0 %v2609, 80
    %v2949 = vpop.permute.xlu0 %2948
    %2950 = vrot.lane.b32.xlu0 %v2612, 80
    %v2951 = vpop.permute.xlu0 %2950
    %2952 = vrot.lane.b32.xlu0 %v2615, 80
    %v2953 = vpop.permute.xlu0 %2952
    %v2958 = vsel %vm2668, %v2943, 0
    %v2960 = vsel %vm2668, %v2945, 0
    %2962 = vmatpush.msra.mxu0 0.0
    %2963 = vmatpush.msra.mxu0 0.0
    %2964 = vmatpush.msra.mxu0 0.0
    %2965 = vmatpush.msra.mxu0 0.0
    %2966 = vmatpush.msra.mxu0 0.0
    %2967 = vmatpush.msra.mxu0 0.0
    %2968 = vmatpush.msra.mxu0 0.0
    %2969 = vmatpush.msra.mxu0 0.0
    %2970 = vmatpush.msra.mxu0 0.0
    %2971 = vmatpush.msra.mxu0 0.0
    %2972 = vmatpush.msra.mxu0 0.0
    %2973 = vmatpush.msra.mxu0 0.0
    %2974 = vmatpush.msra.mxu0 %v2953
    %2975 = vmatpush.msra.mxu0 %v2951
    %2976 = vmatpush.msra.mxu0 %v2949
    %2977 = vmatpush.msra.mxu0 %v2947
    %2978 = vmatmul.f32.gmra.mxu0 %v2958
    %v2979 = vpop.f32.mrf.mxu0
    %v2980 = vadd.f32 %v2937, %v2979
    %2981 = vmatmul.f32.gmra.mxu0 %v2960
    %v2982 = vpop.f32.mrf.mxu0
    %v2983 = vadd.f32 %v2940, %v2982
    %2984 = vdwg.mxu0
    %v2986 = vsel %vm2668, %v2648, 0
    %v2989 = vsel %vm2668, %v2651, 0
    %2991 = vmatpush.msra.mxu0 0.0
    %2992 = vmatpush.msra.mxu0 0.0
    %2993 = vmatpush.msra.mxu0 0.0
    %2994 = vmatpush.msra.mxu0 0.0
    %2995 = vmatpush.msra.mxu0 0.0
    %2996 = vmatpush.msra.mxu0 0.0
    %2997 = vmatpush.msra.mxu0 0.0
    %2998 = vmatpush.msra.mxu0 0.0
    %2999 = vmatpush.msra.mxu0 0.0
    %3000 = vmatpush.msra.mxu0 0.0
    %3001 = vmatpush.msra.mxu0 0.0
    %3002 = vmatpush.msra.mxu0 0.0
    %3003 = vmatpush.msra.mxu0 %v2644
    %3004 = vmatpush.msra.mxu0 %v2641
    %3005 = vmatpush.msra.mxu0 %v2638
    %3006 = vmatpush.msra.mxu0 %v2635
    %3007 = vmatmul.f32.gmra.mxu0 %v2986
    %v3008 = vpop.f32.mrf.mxu0
    %v3009 = vadd.f32 0.0, %v3008
    %3010 = vmatmul.f32.gmra.mxu0 %v2989
    %v3011 = vpop.f32.mrf.mxu0
    %v3012 = vadd.f32 0.0, %v3011
    %3013 = vdwg.mxu0
    %v3014 = vadd.f32 %v2722, %v3009
    %v3015 = vadd.f32 %v2725, %v3012
    %v3016 = vadd.f32 %v3014, %v2808
    %v3017 = vadd.f32 %v3015, %v2811
    %v3018 = vadd.f32 %v2894, %v2980
    %v3019 = vadd.f32 %v2897, %v2983
    %v3020 = vadd.f32 %v3016, %v3018
    %v3021 = vadd.f32 %v3017, %v3019
    %v3022 = vld [vmem:[%s2 + $0x1e0] sm:$0xff]
    %v3023 = vld [vmem:[%s2 + $0x1f8] sm:$0xff]
    %3025 = vset.pattern.permute.xlu0 0
    %3026 = vperm.xlu0 %3025, %v3022
    %v3027 = vpop.permute.xlu0 %3026
    %3030 = vset.pattern.permute.xlu0 0
    %3031 = vperm.xlu0 %3030, %v3023
    %v3032 = vpop.permute.xlu0 %3031
    %v3034 = vadd.f32 %v3020, %v3027
    %v3035 = vadd.f32 %v3021, %v3032
    %v3036 = vld [vmem:[%s2 + $0xc0] sm:$0xff]
    %v3037 = vld [vmem:[%s2 + $0xd8] sm:$0xff]
    %v3038 = vld [vmem:[%s2 + $0xf0] sm:$0xff]
    %v3039 = vld [vmem:[%s2 + $0x108] sm:$0xff]
    %v3041 = vsel %vm1713, %v3036, 0
    %v3044 = vsel %vm1713, %v3037, 0
    %v3047 = vsel %vm1713, %v3038, 0
    %v3050 = vsel %vm1713, %v3039, 0
    %3052 = vmatpush.msra.mxu0 0.0
    %3053 = vmatpush.msra.mxu0 0.0
    %3054 = vmatpush.msra.mxu0 0.0
    %3055 = vmatpush.msra.mxu0 0.0
    %3056 = vmatpush.msra.mxu0 0.0
    %3057 = vmatpush.msra.mxu0 0.0
    %3058 = vmatpush.msra.mxu0 0.0
    %3059 = vmatpush.msra.mxu0 0.0
    %3060 = vmatpush.msra.mxu0 0.0
    %3061 = vmatpush.msra.mxu0 0.0
    %3062 = vmatpush.msra.mxu0 0.0
    %3063 = vmatpush.msra.mxu0 0.0
    %3064 = vmatpush.msra.mxu0 0.0
    %3065 = vmatpush.msra.mxu0 0.0
    %3066 = vmatpush.msra.mxu0 %v3035
    %3067 = vmatpush.msra.mxu0 %v3034
    %3068 = vmatmul.f32.gmra.mxu0 %v3041
    %v3069 = vpop.f32.mrf.mxu0
    %v3070 = vadd.f32 0.0, %v3069
    %3071 = vmatmul.f32.gmra.mxu0 %v3044
    %v3072 = vpop.f32.mrf.mxu0
    %v3073 = vadd.f32 0.0, %v3072
    %3074 = vmatmul.f32.gmra.mxu0 %v3047
    %v3075 = vpop.f32.mrf.mxu0
    %v3076 = vadd.f32 0.0, %v3075
    %3077 = vmatmul.f32.gmra.mxu0 %v3050
    %v3078 = vpop.f32.mrf.mxu0
    %v3079 = vadd.f32 0.0, %v3078
    %3080 = vdwg.mxu0
    %v3081 = vld [vmem:[%s2 + $0x210] sm:$0xff]
    %v3082 = vld [vmem:[%s2 + $0x228] sm:$0xff]
    %v3083 = vld [vmem:[%s2 + $0x240] sm:$0xff]
    %v3084 = vld [vmem:[%s2 + $0x258] sm:$0xff]
    %3086 = vset.pattern.permute.xlu0 0
    %3087 = vperm.xlu0 %3086, %v3081
    %v3088 = vpop.permute.xlu0 %3087
    %3091 = vset.pattern.permute.xlu0 0
    %3092 = vperm.xlu0 %3091, %v3082
    %v3093 = vpop.permute.xlu0 %3092
    %3096 = vset.pattern.permute.xlu0 0
    %3097 = vperm.xlu0 %3096, %v3083
    %v3098 = vpop.permute.xlu0 %3097
    %3101 = vset.pattern.permute.xlu0 0
    %3102 = vperm.xlu0 %3101, %v3084
    %v3103 = vpop.permute.xlu0 %3102
    %v3105 = vsub.f32 %v3070, %v3088
    %v3106 = vsub.f32 %v3073, %v3093
    %v3107 = vsub.f32 %v3076, %v3098
    %v3108 = vsub.f32 %v3079, %v3103
    %v3109 = vlaneseq
    %v3110 = vshrl.u32 %v3109, 7
    %v3111 = vadd.s32 %v3110, 8
    %v3112 = vadd.s32 %v3110, 16
    %v3113 = vadd.s32 %v3110, 24
    %v3114 = vsel %vm1713, %v3105, -inf
    %v3115 = vsel %vm1713, %v3106, -inf
    %v3116 = vsel %vm1713, %v3107, -inf
    %v3117 = vsel %vm1713, %v3108, -inf
    %v3118 = vmax.f32 %v3114, %v3115
    %v3119 = vmax.f32 %v3116, %v3117
    %v3120 = vmax.f32 %v3118, %v3119
    %v3121 = vrot.slane %v3120, 4
    %v3122 = vmax.f32 %v3120, %v3121
    %v3123 = vrot.slane %v3122, 2
    %v3124 = vmax.f32 %v3122, %v3123
    %v3125 = vrot.slane %v3124, 1
    %v3126 = vmax.f32 %v3124, %v3125
    %vm3127 = vcmp.eq.f32.partialorder %v3105, %v3126
    %vm3128 = vcmp.eq.f32.partialorder %v3106, %v3126
    %vm3129 = vcmp.eq.f32.partialorder %v3107, %v3126
    %vm3130 = vcmp.eq.f32.partialorder %v3108, %v3126
    %v3131 = vsel %vm3127, %v3110, 32
    %v3132 = vsel %vm3128, %v3111, 32
    %v3133 = vsel %vm3129, %v3112, 32
    %v3134 = vsel %vm3130, %v3113, 32
    %v3135 = vsel %vm1713, %v3131, 2147483647
    %v3136 = vsel %vm1713, %v3132, 2147483647
    %v3137 = vsel %vm1713, %v3133, 2147483647
    %v3138 = vsel %vm1713, %v3134, 2147483647
    %vm3139 = vcmp.lt.s32.totalorder %v3135, %v3136
    %v3140 = vsel %vm3139, %v3135, %v3136
    %vm3141 = vcmp.lt.s32.totalorder %v3137, %v3138
    %v3142 = vsel %vm3141, %v3137, %v3138
    %vm3143 = vcmp.lt.s32.totalorder %v3140, %v3142
    %v3144 = vsel %vm3143, %v3140, %v3142
    %v3145 = vrot.slane %v3144, 4
    %vm3146 = vcmp.lt.s32.totalorder %v3144, %v3145
    %v3147 = vsel %vm3146, %v3144, %v3145
    %v3148 = vrot.slane %v3147, 2
    %vm3149 = vcmp.lt.s32.totalorder %v3147, %v3148
    %v3150 = vsel %vm3149, %v3147, %v3148
    %v3151 = vrot.slane %v3150, 1
    %vm3152 = vcmp.lt.s32.totalorder %v3150, %v3151
    %v3153 = vsel %vm3152, %v3150, %v3151
    %vm3154 = vcmp.eq.s32.totalorder %v3110, %v3153
    %vm3155 = vcmp.eq.s32.totalorder %v3111, %v3153
    %vm3156 = vcmp.eq.s32.totalorder %v3112, %v3153
    %vm3157 = vcmp.eq.s32.totalorder %v3113, %v3153
    %v3158 = vsel %vm3154, 1, 0
    %v3159 = vsel %vm3155, 1, 0
    %v3160 = vsel %vm3156, 1, 0
    %v3161 = vsel %vm3157, 1, 0
    %v3162 = vcvt.s32.f32 %v3158
    %v3163 = vcvt.s32.f32 %v3159
    %v3164 = vcvt.s32.f32 %v3160
    %v3165 = vcvt.s32.f32 %v3161
    %v3166 = vld [vmem:[%s2 + $0x120] sm:$0xff]
    %v3167 = vld [vmem:[%s2 + $0x138] sm:$0xff]
    %v3169 = vsel %vm2668, %v3166, 0
    %v3172 = vsel %vm2668, %v3167, 0
    %3174 = vmatpush.msra.mxu0 0.0
    %3175 = vmatpush.msra.mxu0 0.0
    %3176 = vmatpush.msra.mxu0 0.0
    %3177 = vmatpush.msra.mxu0 0.0
    %3178 = vmatpush.msra.mxu0 0.0
    %3179 = vmatpush.msra.mxu0 0.0
    %3180 = vmatpush.msra.mxu0 0.0
    %3181 = vmatpush.msra.mxu0 0.0
    %3182 = vmatpush.msra.mxu0 0.0
    %3183 = vmatpush.msra.mxu0 0.0
    %3184 = vmatpush.msra.mxu0 0.0
    %3185 = vmatpush.msra.mxu0 0.0
    %3186 = vmatpush.msra.mxu0 %v3165
    %3187 = vmatpush.msra.mxu0 %v3164
    %3188 = vmatpush.msra.mxu0 %v3163
    %3189 = vmatpush.msra.mxu0 %v3162
    %3190 = vmatmul.f32.gmra.mxu0 %v3169
    %v3191 = vpop.f32.mrf.mxu0
    %v3192 = vadd.f32 0.0, %v3191
    %3193 = vmatmul.f32.gmra.mxu0 %v3172
    %v3194 = vpop.f32.mrf.mxu0
    %v3195 = vadd.f32 0.0, %v3194
    %3196 = vdwg.mxu0
    %3197 = vst.msk [vmem:[%s3] sm:$0xff] %vm1713, %v3192
    %3198 = vst.msk [vmem:[%s3 + $0x8] sm:$0xff] %vm1713, %v3195
    // Predicated region
    $region18: #{sensor_forward.1} parent=1 // pred_check
      _
    $region19: #{sensor_forward.1} parent=1 // pred_check_branch
      %3200 = sbr.rel (0) target = $region21
    $region20: #{sensor_forward.1} parent=1 // pred_region
      _
    $region21: #{sensor_forward.1} parent=1 // pred_fallthru
      _
    // Predicated region
    $region22: #{sensor_forward.1} parent=1 // pred_check
      _
    $region23: #{sensor_forward.1} parent=1 // pred_check_branch
      %3202 = sbr.rel (0) target = $region25
    $region24: #{sensor_forward.1} parent=1 // pred_region
      _
    $region25: #{sensor_forward.1} parent=1 // pred_fallthru
      _
    %3203 = vsyncpa [#allocation3], 1

</llo_original>
